<compile_context>
chip_gen: v5e
topology: v5e:2x2
jax: 0.10.0
libtpu: 0.0.40
codegen_flags: <defaults>
</compile_context>

<pallas_src>
import jax
import jax.numpy as jnp
from jax import lax
from jax.experimental import pallas as pl
from jax.experimental.pallas import tpu as pltpu


def _round_up(x, m):
    return ((x + m - 1) // m) * m


# ---------------------------------------------------------------------------
# Pallas kernels
# ---------------------------------------------------------------------------

def _mm_kernel(a_ref, b_ref, o_ref, acc_ref):
    @pl.when(pl.program_id(2) == 0)
    def _init():
        acc_ref[...] = jnp.zeros_like(acc_ref)

    acc_ref[...] += jnp.dot(a_ref[...], b_ref[...],
                            preferred_element_type=jnp.float32)

    @pl.when(pl.program_id(2) == pl.num_programs(2) - 1)
    def _done():
        o_ref[...] = acc_ref[...].astype(o_ref.dtype)


def _mm_bn_relu_kernel(a_ref, s_ref, t_ref, b_ref, o_ref, acc_ref):
    # Fused BatchNorm (as per-K-column scale/shift) + ReLU prologue on the A
    # tile, then MXU matmul with f32 accumulation.
    @pl.when(pl.program_id(2) == 0)
    def _init():
        acc_ref[...] = jnp.zeros_like(acc_ref)

    a = a_ref[...].astype(jnp.float32) * s_ref[...] + t_ref[...]
    a = jnp.maximum(a, 0.0).astype(b_ref.dtype)
    acc_ref[...] += jnp.dot(a, b_ref[...], preferred_element_type=jnp.float32)

    @pl.when(pl.program_id(2) == pl.num_programs(2) - 1)
    def _done():
        o_ref[...] = acc_ref[...].astype(o_ref.dtype)


def pallas_matmul(a, b, scale=None, shift=None, out_dtype=jnp.bfloat16,
                  tm=256, tn=256, tk=512):
    """Tiled (M,K)@(K,N) with bf16 operands and f32 VMEM accumulation.

    If scale/shift (length-K f32 vectors) are given, ReLU((a*scale)+shift) is
    applied to the A tile inside the kernel before the dot (fused BN+ReLU).
    Operands are zero-padded to lane-dense (8,128)-aligned tiles; the result
    is sliced back to (M, N).
    """
    M, K = a.shape
    K2, N = b.shape
    assert K == K2

    tm = min(tm, _round_up(M, 8))
    tn = min(tn, _round_up(N, 128))
    tk = min(tk, _round_up(K, 128))
    Mp, Np, Kp = _round_up(M, tm), _round_up(N, tn), _round_up(K, tk)

    a_p = jnp.pad(a.astype(jnp.bfloat16), ((0, Mp - M), (0, Kp - K)))
    b_p = jnp.pad(b.astype(jnp.bfloat16), ((0, Kp - K), (0, Np - N)))

    grid = (Mp // tm, Np // tn, Kp // tk)
    common = dict(
        out_shape=jax.ShapeDtypeStruct((Mp, Np), out_dtype),
        grid=grid,
        out_specs=pl.BlockSpec((tm, tn), lambda i, j, k: (i, j)),
        scratch_shapes=[pltpu.VMEM((tm, tn), jnp.float32)],
        compiler_params=pltpu.CompilerParams(
            dimension_semantics=("parallel", "parallel", "arbitrary"),
            vmem_limit_bytes=32 * 1024 * 1024,
        ),
    )

    if scale is None:
        out = pl.pallas_call(
            _mm_kernel,
            in_specs=[pl.BlockSpec((tm, tk), lambda i, j, k: (i, k)),
                      pl.BlockSpec((tk, tn), lambda i, j, k: (k, j))],
            **common,
        )(a_p, b_p)
    else:
        s_p = jnp.pad(scale.astype(jnp.float32).reshape(1, K),
                      ((0, 0), (0, Kp - K)))
        t_p = jnp.pad(shift.astype(jnp.float32).reshape(1, K),
                      ((0, 0), (0, Kp - K)))
        out = pl.pallas_call(
            _mm_bn_relu_kernel,
            in_specs=[pl.BlockSpec((tm, tk), lambda i, j, k: (i, k)),
                      pl.BlockSpec((1, tk), lambda i, j, k: (0, k)),
                      pl.BlockSpec((1, tk), lambda i, j, k: (0, k)),
                      pl.BlockSpec((tk, tn), lambda i, j, k: (k, j))],
            **common,
        )(a_p, s_p, t_p, b_p)
    return out[:M, :N]


def _scale_shift_relu_kernel(x_ref, s_ref, t_ref, o_ref):
    y = x_ref[...].astype(jnp.float32) * s_ref[...] + t_ref[...]
    o_ref[...] = jnp.maximum(y, 0.0).astype(o_ref.dtype)


def pallas_scale_shift_relu(x2d, scale, shift, out_dtype=jnp.bfloat16, tm=512):
    """Row-tiled standalone BN(scale/shift)+ReLU: (M,C) -> (M,C)."""
    M, C = x2d.shape
    Cp = _round_up(C, 128)
    tm = min(tm, _round_up(M, 8))
    Mp = _round_up(M, tm)
    x_p = jnp.pad(x2d, ((0, Mp - M), (0, Cp - C)))
    s_p = jnp.pad(scale.astype(jnp.float32).reshape(1, C), ((0, 0), (0, Cp - C)))
    t_p = jnp.pad(shift.astype(jnp.float32).reshape(1, C), ((0, 0), (0, Cp - C)))
    out = pl.pallas_call(
        _scale_shift_relu_kernel,
        out_shape=jax.ShapeDtypeStruct((Mp, Cp), out_dtype),
        grid=(Mp // tm,),
        in_specs=[pl.BlockSpec((tm, Cp), lambda i: (i, 0)),
                  pl.BlockSpec((1, Cp), lambda i: (0, 0)),
                  pl.BlockSpec((1, Cp), lambda i: (0, 0))],
        out_specs=pl.BlockSpec((tm, Cp), lambda i: (i, 0)),
        compiler_params=pltpu.CompilerParams(
            dimension_semantics=("parallel",)),
    )(x_p, s_p, t_p)
    return out[:M, :C]


# ---------------------------------------------------------------------------
# JAX glue: BN stats, conv-as-im2col, pooling, parameter init
# ---------------------------------------------------------------------------

def bn_scale_shift(x2d, gamma, beta, eps=1e-5):
    """Training-mode BatchNorm folded to per-channel scale/shift.

    Batch statistics over rows (= N*H*W), biased variance (PyTorch forward),
    one-pass E[x^2]-mean^2 form, f32 accumulation.
    """
    x32 = x2d.astype(jnp.float32)
    mean = jnp.mean(x32, axis=0)
    var = jnp.maximum(jnp.mean(x32 * x32, axis=0) - mean * mean, 0.0)
    inv = lax.rsqrt(var + eps)
    scale = gamma * inv
    shift = beta - mean * scale
    return scale, shift


def conv2d_fused(x, w, stride=1, pad=0, scale=None, shift=None,
                 out_dtype=jnp.bfloat16):
    """NHWC conv via im2col + Pallas matmul.  x: NHWC, w: (Cout,Cin,kh,kw).

    If scale/shift are given, BatchNorm+ReLU on the conv INPUT is fused into
    the matmul prologue (exact for 1x1 convs; for padded convs the spatial
    padding uses the per-channel value the affine maps to exactly 0 so padded
    taps contribute nothing, as in PyTorch — exact whenever gamma != 0).
    """
    N, H, W, Cin = x.shape
    Cout, _, kh, kw = w.shape
    Hout = (H + 2 * pad - kh) // stride + 1
    Wout = (W + 2 * pad - kw) // stride + 1
    w2d = jnp.transpose(w, (2, 3, 1, 0)).reshape(kh * kw * Cin, Cout)

    if kh == 1 and kw == 1 and stride == 1 and pad == 0:
        a = x.reshape(N * H * W, Cin)
        y = pallas_matmul(a, w2d, scale=scale, shift=shift, out_dtype=out_dtype)
        return y.reshape(N, H, W, Cout)

    # TODO(synk): replace the materialized im2col slab with a kh*kw "tap" grid
    # axis that accumulates shifted 1x1 matmuls directly in the VMEM accumulator.
    if pad > 0:
        if scale is None:
            xp = jnp.pad(x, ((0, 0), (pad, pad), (pad, pad), (0, 0)))
        else:
            safe = jnp.where(scale == 0, 1.0, scale)
            pad_val = jnp.where(scale == 0, 0.0, -shift / safe).astype(jnp.float32)
            xp = jnp.pad(x.astype(jnp.float32) - pad_val,
                         ((0, 0), (pad, pad), (pad, pad), (0, 0))) + pad_val
    else:
        xp = x
    xp = xp.astype(jnp.bfloat16)

    patches = []
    for i in range(kh):
        for j in range(kw):
            patches.append(
                xp[:, i:i + stride * Hout:stride, j:j + stride * Wout:stride, :]
            )
    a = jnp.stack(patches, axis=3).reshape(N * Hout * Wout, kh * kw * Cin)
    if scale is not None:
        scale = jnp.tile(scale, kh * kw)   # K layout is tap-major, channel-minor
        shift = jnp.tile(shift, kh * kw)
    y = pallas_matmul(a, w2d, scale=scale, shift=shift, out_dtype=out_dtype)
    return y.reshape(N, Hout, Wout, Cout)


def maxpool_3x3_s2_p1(x):
    init = jnp.array(-jnp.inf, dtype=x.dtype)
    return lax.reduce_window(
        x, init, lax.max,
        window_dimensions=(1, 3, 3, 1),
        window_strides=(1, 2, 2, 1),
        padding=((0, 0), (1, 1), (1, 1), (0, 0)),
    )


def avgpool_2x2(x):
    N, H, W, C = x.shape
    return x.reshape(N, H // 2, 2, W // 2, 2, C).mean(
        axis=(2, 4), dtype=jnp.float32).astype(x.dtype)


def init_densenet_params(key, block_config=(6, 12, 24, 16), growth_rate=32,
                         num_classes=10):
    keys = iter(jax.random.split(key, 4096))

    def conv_w(cout, cin, k):
        fan_in = cin * k * k
        return jax.random.normal(next(keys), (cout, cin, k, k), jnp.float32) * \
            jnp.sqrt(2.0 / fan_in)

    def bn_p(c):
        return {"gamma": jnp.ones((c,), jnp.float32),
                "beta": jnp.zeros((c,), jnp.float32)}

    params = {
        "conv1": conv_w(2 * growth_rate, 1, 7),
        "bn1": bn_p(2 * growth_rate),
        "blocks": [],
    }
    num_channels = 2 * growth_rate
    for i, num_layers in enumerate(block_config):
        layers = []
        for l in range(num_layers):
            cin = num_channels + l * growth_rate
            layers.append({
                "bn1": bn_p(cin),
                "conv1": conv_w(4 * growth_rate, cin, 1),
                "bn2": bn_p(4 * growth_rate),
                "conv2": conv_w(growth_rate, 4 * growth_rate, 3),
            })
        num_channels += num_layers * growth_rate
        trans = None
        if i != len(block_config) - 1:
            trans = {"bn": bn_p(num_channels),
                     "conv": conv_w(num_channels // 2, num_channels, 1)}
            num_channels //= 2
        params["blocks"].append({"layers": layers, "trans": trans})

    params["bn2"] = bn_p(num_channels)
    bound = 1.0 / float(num_channels) ** 0.5
    params["fc_w"] = jax.random.uniform(
        next(keys), (num_classes, num_channels), jnp.float32, -bound, bound)
    params["fc_b"] = jax.random.uniform(
        next(keys), (num_classes,), jnp.float32, -bound, bound)
    return params


# ---------------------------------------------------------------------------
# DenseNet forward
# ---------------------------------------------------------------------------

def densenet_forward(params, x_nchw):
    batch = x_nchw.shape[0]
    x = jnp.transpose(x_nchw, (0, 2, 3, 1)).astype(jnp.bfloat16)  # NCHW -> NHWC

    # Stem: 7x7 s2 p3 conv, then BN+ReLU (standalone Pallas kernel), then maxpool.
    x = conv2d_fused(x, params["conv1"], stride=2, pad=3)
    N, H, W, C = x.shape
    s, t = bn_scale_shift(x.reshape(-1, C),
                          params["bn1"]["gamma"], params["bn1"]["beta"])
    x = pallas_scale_shift_relu(x.reshape(-1, C), s, t).reshape(N, H, W, C)
    x = maxpool_3x3_s2_p1(x)

    for blk in params["blocks"]:
        for lp in blk["layers"]:                       # BottleneckLayer
            cin = x.shape[-1]
            s1, t1 = bn_scale_shift(x.reshape(-1, cin),
                                    lp["bn1"]["gamma"], lp["bn1"]["beta"])
            out = conv2d_fused(x, lp["conv1"], scale=s1, shift=t1)   # BN+ReLU+1x1
            cm = out.shape[-1]
            s2, t2 = bn_scale_shift(out.reshape(-1, cm),
                                    lp["bn2"]["gamma"], lp["bn2"]["beta"])
            out = conv2d_fused(out, lp["conv2"], stride=1, pad=1,
                               scale=s2, shift=t2)                   # BN+ReLU+3x3
            # TODO(synk): write conv2's output directly into a pre-allocated
            # concatenated feature buffer (aliased Pallas output slice) instead
            # of re-copying the growing feature map each layer.
            x = jnp.concatenate([x, out], axis=-1)     # torch.cat(dim=1)
        if blk["trans"] is not None:                   # TransitionLayer
            cin = x.shape[-1]
            s, t = bn_scale_shift(x.reshape(-1, cin),
                                  blk["trans"]["bn"]["gamma"],
                                  blk["trans"]["bn"]["beta"])
            x = conv2d_fused(x, blk["trans"]["conv"], scale=s, shift=t)
            x = avgpool_2x2(x)

    C = x.shape[-1]
    s, t = bn_scale_shift(x.reshape(-1, C),
                          params["bn2"]["gamma"], params["bn2"]["beta"])
    x = pallas_scale_shift_relu(x.reshape(-1, C), s, t, out_dtype=jnp.float32)
    x = x.reshape(batch, -1, C).mean(axis=1)           # adaptive_avg_pool2d((1,1))
    # Final FC: N = num_classes (10) << 128 lanes — plain dot beats a Pallas launch.
    logits = x @ params["fc_w"].T + params["fc_b"][None, :]
    return logits


if __name__ == "__main__":
    key = jax.random.PRNGKey(0)
    pkey, xkey = jax.random.split(key)

    # Small instantiation of the same module (constructor args of DenseNet):
    block_config = (2, 2, 2, 2)
    growth_rate = 8
    num_classes = 10

    params = init_densenet_params(pkey, block_config, growth_rate, num_classes)
    # PyTorch-convention NCHW grayscale input.
    x = jax.random.normal(xkey, (2, 1, 32, 32), jnp.float32)

    logits = jax.jit(densenet_forward)(params, x)
    jax.block_until_ready(logits)
    assert logits.shape == (2, num_classes)
    assert bool(jnp.all(jnp.isfinite(logits)))
    print("KERNEL_OK")
</pallas_src>

<mosaic_0001>
module attributes {stable_mosaic.version = 11 : i64} {
  func.func @_mm_kernel(%arg0: i32, %arg1: i32, %arg2: i32, %arg3: memref<256x128xbf16, #tpu.memory_space<vmem>>, %arg4: memref<128x128xbf16, #tpu.memory_space<vmem>>, %arg5: memref<256x128xbf16, #tpu.memory_space<vmem>>, %arg6: memref<256x128xf32, #tpu.memory_space<vmem>>) attributes {dimension_semantics = [#tpu.dimension_semantics<parallel>, #tpu.dimension_semantics<parallel>, #tpu.dimension_semantics<arbitrary>], iteration_bounds = array<i64: 2, 1, 1>, scalar_prefetch = 0 : i64, scratch_operands = 1 : i64, tpu.core_type = #tpu.core_type<tc>, window_params = [{transform_indices = @transform_0, window_bounds = array<i64: 256, 128>}, {transform_indices = @transform_1, window_bounds = array<i64: 128, 128>}, {transform_indices = @transform_2, window_bounds = array<i64: 256, 128>}]} {
    %c0_i32 = arith.constant 0 : i32
    %0 = arith.cmpi eq, %arg2, %c0_i32 : i32
    %1 = arith.extui %0 : i1 to i32
    %c0_i32_0 = arith.constant 0 : i32
    %2 = arith.cmpi ne, %1, %c0_i32_0 : i32
    scf.if %2 {
      %cst_10 = arith.constant 0.000000e+00 : f32
      %12 = vector.broadcast %cst_10 : f32 to vector<256x128xf32>
      %c0_11 = arith.constant 0 : index
      %c0_12 = arith.constant 0 : index
      %13 = vector.load %arg6[%c0_11, %c0_12] : memref<256x128xf32, #tpu.memory_space<vmem>>, vector<256x128xf32>
      tpu.vector_store %arg6[%c0_11, %c0_12], %12 {strides = array<i32>} : memref<256x128xf32, #tpu.memory_space<vmem>>, vector<256x128xf32>,
    } else {
    }
    %c0 = arith.constant 0 : index
    %c0_1 = arith.constant 0 : index
    %3 = vector.load %arg6[%c0, %c0_1] : memref<256x128xf32, #tpu.memory_space<vmem>>, vector<256x128xf32>
    %c0_2 = arith.constant 0 : index
    %c0_3 = arith.constant 0 : index
    %4 = vector.load %arg3[%c0_2, %c0_3] : memref<256x128xbf16, #tpu.memory_space<vmem>>, vector<256x128xbf16>
    %c0_4 = arith.constant 0 : index
    %c0_5 = arith.constant 0 : index
    %5 = vector.load %arg4[%c0_4, %c0_5] : memref<128x128xbf16, #tpu.memory_space<vmem>>, vector<128x128xbf16>
    %cst = arith.constant dense<0.000000e+00> : vector<256x128xf32>
    %6 = tpu.matmul %4, %5, %cst {dimension_numbers = #tpu.dot_dimension_numbers<[1], [0], [0], [1], [0, 0, 1, 1], [], []>} : vector<256x128xbf16>, vector<128x128xbf16>, vector<256x128xf32> -> vector<256x128xf32>
    %7 = arith.addf %3, %6 : vector<256x128xf32>
    %c0_6 = arith.constant 0 : index
    %c0_7 = arith.constant 0 : index
    %8 = vector.load %arg6[%c0_6, %c0_7] : memref<256x128xf32, #tpu.memory_space<vmem>>, vector<256x128xf32>
    tpu.vector_store %arg6[%c0_6, %c0_7], %7 {strides = array<i32>} : memref<256x128xf32, #tpu.memory_space<vmem>>, vector<256x128xf32>,
    %c0_i32_8 = arith.constant 0 : i32
    %9 = arith.cmpi eq, %arg2, %c0_i32_8 : i32
    %10 = arith.extui %9 : i1 to i32
    %c0_i32_9 = arith.constant 0 : i32
    %11 = arith.cmpi ne, %10, %c0_i32_9 : i32
    scf.if %11 {
      %c0_10 = arith.constant 0 : index
      %c0_11 = arith.constant 0 : index
      %12 = vector.load %arg6[%c0_10, %c0_11] : memref<256x128xf32, #tpu.memory_space<vmem>>, vector<256x128xf32>
      %13 = arith.truncf %12 : vector<256x128xf32> to vector<256x128xbf16>
      %c0_12 = arith.constant 0 : index
      %c0_13 = arith.constant 0 : index
      %14 = vector.load %arg5[%c0_12, %c0_13] : memref<256x128xbf16, #tpu.memory_space<vmem>>, vector<256x128xbf16>
      tpu.vector_store %arg5[%c0_12, %c0_13], %13 {strides = array<i32>} : memref<256x128xbf16, #tpu.memory_space<vmem>>, vector<256x128xbf16>,
    } else {
    }
    return
  }
  func.func @transform_0(%arg0: i32, %arg1: i32, %arg2: i32) -> (i32, i32) {
    %c0_i32 = arith.constant 0 : i32
    return %arg0, %arg2 : i32, i32
  }
  func.func @transform_1(%arg0: i32, %arg1: i32, %arg2: i32) -> (i32, i32) {
    %c0_i32 = arith.constant 0 : i32
    return %arg2, %arg1 : i32, i32
  }
  func.func @transform_2(%arg0: i32, %arg1: i32, %arg2: i32) -> (i32, i32) {
    %c0_i32 = arith.constant 0 : i32
    return %arg0, %arg1 : i32, i32
  }
}

module attributes {stable_mosaic.version = 11 : i64} {
  func.func @_scale_shift_relu_kernel(%arg0: i32, %arg1: memref<512x128xbf16, #tpu.memory_space<vmem>>, %arg2: memref<1x128xf32, #tpu.memory_space<vmem>>, %arg3: memref<1x128xf32, #tpu.memory_space<vmem>>, %arg4: memref<512x128xbf16, #tpu.memory_space<vmem>>) attributes {dimension_semantics = [#tpu.dimension_semantics<parallel>], iteration_bounds = array<i64: 1>, scalar_prefetch = 0 : i64, scratch_operands = 0 : i64, tpu.core_type = #tpu.core_type<tc>, window_params = [{transform_indices = @transform_0, window_bounds = array<i64: 512, 128>}, {pipeline_mode = #tpu.pipeline_mode<synchronous>, transform_indices = @transform_1, window_bounds = array<i64: 1, 128>}, {pipeline_mode = #tpu.pipeline_mode<synchronous>, transform_indices = @transform_2, window_bounds = array<i64: 1, 128>}, {transform_indices = @transform_3, window_bounds = array<i64: 512, 128>}]} {
    %c0 = arith.constant 0 : index
    %c0_0 = arith.constant 0 : index
    %0 = vector.load %arg1[%c0, %c0_0] : memref<512x128xbf16, #tpu.memory_space<vmem>>, vector<512x128xbf16>
    %1 = arith.extf %0 : vector<512x128xbf16> to vector<512x128xf32>
    %c0_1 = arith.constant 0 : index
    %c0_2 = arith.constant 0 : index
    %2 = vector.load %arg2[%c0_1, %c0_2] : memref<1x128xf32, #tpu.memory_space<vmem>>, vector<1x128xf32>
    %3 = vector.broadcast %2 : vector<1x128xf32> to vector<512x128xf32>
    %4 = arith.mulf %1, %3 : vector<512x128xf32>
    %c0_3 = arith.constant 0 : index
    %c0_4 = arith.constant 0 : index
    %5 = vector.load %arg3[%c0_3, %c0_4] : memref<1x128xf32, #tpu.memory_space<vmem>>, vector<1x128xf32>
    %6 = vector.broadcast %5 : vector<1x128xf32> to vector<512x128xf32>
    %7 = arith.addf %4, %6 : vector<512x128xf32>
    %cst = arith.constant 0.000000e+00 : f32
    %8 = vector.broadcast %cst : f32 to vector<512x128xf32>
    %9 = arith.maximumf %7, %8 : vector<512x128xf32>
    %10 = arith.truncf %9 : vector<512x128xf32> to vector<512x128xbf16>
    %c0_5 = arith.constant 0 : index
    %c0_6 = arith.constant 0 : index
    %11 = vector.load %arg4[%c0_5, %c0_6] : memref<512x128xbf16, #tpu.memory_space<vmem>>, vector<512x128xbf16>
    tpu.vector_store %arg4[%c0_5, %c0_6], %10 {strides = array<i32>} : memref<512x128xbf16, #tpu.memory_space<vmem>>, vector<512x128xbf16>,
    return
  }
  func.func @transform_0(%arg0: i32) -> (i32, i32) {
    %c0_i32 = arith.constant 0 : i32
    %c0_i32_0 = arith.constant 0 : i32
    return %arg0, %c0_i32 : i32, i32
  }
  func.func @transform_1(%arg0: i32) -> (i32, i32) {
    %c0_i32 = arith.constant 0 : i32
    %c0_i32_0 = arith.constant 0 : i32
    %c0_i32_1 = arith.constant 0 : i32
    return %c0_i32, %c0_i32_0 : i32, i32
  }
  func.func @transform_2(%arg0: i32) -> (i32, i32) {
    %c0_i32 = arith.constant 0 : i32
    %c0_i32_0 = arith.constant 0 : i32
    %c0_i32_1 = arith.constant 0 : i32
    return %c0_i32, %c0_i32_0 : i32, i32
  }
  func.func @transform_3(%arg0: i32) -> (i32, i32) {
    %c0_i32 = arith.constant 0 : i32
    %c0_i32_0 = arith.constant 0 : i32
    return %arg0, %c0_i32 : i32, i32
  }
}

module attributes {stable_mosaic.version = 11 : i64} {
  func.func @_mm_bn_relu_kernel(%arg0: i32, %arg1: i32, %arg2: i32, %arg3: memref<128x128xbf16, #tpu.memory_space<vmem>>, %arg4: memref<1x128xf32, #tpu.memory_space<vmem>>, %arg5: memref<1x128xf32, #tpu.memory_space<vmem>>, %arg6: memref<128x128xbf16, #tpu.memory_space<vmem>>, %arg7: memref<128x128xbf16, #tpu.memory_space<vmem>>, %arg8: memref<128x128xf32, #tpu.memory_space<vmem>>) attributes {dimension_semantics = [#tpu.dimension_semantics<parallel>, #tpu.dimension_semantics<parallel>, #tpu.dimension_semantics<arbitrary>], iteration_bounds = array<i64: 1, 1, 1>, scalar_prefetch = 0 : i64, scratch_operands = 1 : i64, tpu.core_type = #tpu.core_type<tc>, window_params = [{transform_indices = @transform_0, window_bounds = array<i64: 128, 128>}, {transform_indices = @transform_1, window_bounds = array<i64: 1, 128>}, {transform_indices = @transform_2, window_bounds = array<i64: 1, 128>}, {transform_indices = @transform_3, window_bounds = array<i64: 128, 128>}, {transform_indices = @transform_4, window_bounds = array<i64: 128, 128>}]} {
    %c0_i32 = arith.constant 0 : i32
    %0 = arith.cmpi eq, %arg2, %c0_i32 : i32
    %1 = arith.extui %0 : i1 to i32
    %c0_i32_0 = arith.constant 0 : i32
    %2 = arith.cmpi ne, %1, %c0_i32_0 : i32
    scf.if %2 {
      %cst_15 = arith.constant 0.000000e+00 : f32
      %22 = vector.broadcast %cst_15 : f32 to vector<128x128xf32>
      %c0_16 = arith.constant 0 : index
      %c0_17 = arith.constant 0 : index
      %23 = vector.load %arg8[%c0_16, %c0_17] : memref<128x128xf32, #tpu.memory_space<vmem>>, vector<128x128xf32>
      tpu.vector_store %arg8[%c0_16, %c0_17], %22 {strides = array<i32>} : memref<128x128xf32, #tpu.memory_space<vmem>>, vector<128x128xf32>,
    } else {
    }
    %c0 = arith.constant 0 : index
    %c0_1 = arith.constant 0 : index
    %3 = vector.load %arg3[%c0, %c0_1] : memref<128x128xbf16, #tpu.memory_space<vmem>>, vector<128x128xbf16>
    %4 = arith.extf %3 : vector<128x128xbf16> to vector<128x128xf32>
    %c0_2 = arith.constant 0 : index
    %c0_3 = arith.constant 0 : index
    %5 = vector.load %arg4[%c0_2, %c0_3] : memref<1x128xf32, #tpu.memory_space<vmem>>, vector<1x128xf32>
    %6 = vector.broadcast %5 : vector<1x128xf32> to vector<128x128xf32>
    %7 = arith.mulf %4, %6 : vector<128x128xf32>
    %c0_4 = arith.constant 0 : index
    %c0_5 = arith.constant 0 : index
    %8 = vector.load %arg5[%c0_4, %c0_5] : memref<1x128xf32, #tpu.memory_space<vmem>>, vector<1x128xf32>
    %9 = vector.broadcast %8 : vector<1x128xf32> to vector<128x128xf32>
    %10 = arith.addf %7, %9 : vector<128x128xf32>
    %cst = arith.constant 0.000000e+00 : f32
    %11 = vector.broadcast %cst : f32 to vector<128x128xf32>
    %12 = arith.maximumf %10, %11 : vector<128x128xf32>
    %13 = arith.truncf %12 : vector<128x128xf32> to vector<128x128xbf16>
    %c0_6 = arith.constant 0 : index
    %c0_7 = arith.constant 0 : index
    %14 = vector.load %arg8[%c0_6, %c0_7] : memref<128x128xf32, #tpu.memory_space<vmem>>, vector<128x128xf32>
    %c0_8 = arith.constant 0 : index
    %c0_9 = arith.constant 0 : index
    %15 = vector.load %arg6[%c0_8, %c0_9] : memref<128x128xbf16, #tpu.memory_space<vmem>>, vector<128x128xbf16>
    %cst_10 = arith.constant dense<0.000000e+00> : vector<128x128xf32>
    %16 = tpu.matmul %13, %15, %cst_10 {dimension_numbers = #tpu.dot_dimension_numbers<[1], [0], [0], [1], [0, 0, 1, 1], [], []>} : vector<128x128xbf16>, vector<128x128xbf16>, vector<128x128xf32> -> vector<128x128xf32>
    %17 = arith.addf %14, %16 : vector<128x128xf32>
    %c0_11 = arith.constant 0 : index
    %c0_12 = arith.constant 0 : index
    %18 = vector.load %arg8[%c0_11, %c0_12] : memref<128x128xf32, #tpu.memory_space<vmem>>, vector<128x128xf32>
    tpu.vector_store %arg8[%c0_11, %c0_12], %17 {strides = array<i32>} : memref<128x128xf32, #tpu.memory_space<vmem>>, vector<128x128xf32>,
    %c0_i32_13 = arith.constant 0 : i32
    %19 = arith.cmpi eq, %arg2, %c0_i32_13 : i32
    %20 = arith.extui %19 : i1 to i32
    %c0_i32_14 = arith.constant 0 : i32
    %21 = arith.cmpi ne, %20, %c0_i32_14 : i32
    scf.if %21 {
      %c0_15 = arith.constant 0 : index
      %c0_16 = arith.constant 0 : index
      %22 = vector.load %arg8[%c0_15, %c0_16] : memref<128x128xf32, #tpu.memory_space<vmem>>, vector<128x128xf32>
      %23 = arith.truncf %22 : vector<128x128xf32> to vector<128x128xbf16>
      %c0_17 = arith.constant 0 : index
      %c0_18 = arith.constant 0 : index
      %24 = vector.load %arg7[%c0_17, %c0_18] : memref<128x128xbf16, #tpu.memory_space<vmem>>, vector<128x128xbf16>
      tpu.vector_store %arg7[%c0_17, %c0_18], %23 {strides = array<i32>} : memref<128x128xbf16, #tpu.memory_space<vmem>>, vector<128x128xbf16>,
    } else {
    }
    return
  }
  func.func @transform_0(%arg0: i32, %arg1: i32, %arg2: i32) -> (i32, i32) {
    %c0_i32 = arith.constant 0 : i32
    return %arg0, %arg2 : i32, i32
  }
  func.func @transform_1(%arg0: i32, %arg1: i32, %arg2: i32) -> (i32, i32) {
    %c0_i32 = arith.constant 0 : i32
    %c0_i32_0 = arith.constant 0 : i32
    return %c0_i32, %arg2 : i32, i32
  }
  func.func @transform_2(%arg0: i32, %arg1: i32, %arg2: i32) -> (i32, i32) {
    %c0_i32 = arith.constant 0 : i32
    %c0_i32_0 = arith.constant 0 : i32
    return %c0_i32, %arg2 : i32, i32
  }
  func.func @transform_3(%arg0: i32, %arg1: i32, %arg2: i32) -> (i32, i32) {
    %c0_i32 = arith.constant 0 : i32
    return %arg2, %arg1 : i32, i32
  }
  func.func @transform_4(%arg0: i32, %arg1: i32, %arg2: i32) -> (i32, i32) {
    %c0_i32 = arith.constant 0 : i32
    return %arg0, %arg1 : i32, i32
  }
}

module attributes {stable_mosaic.version = 11 : i64} {
  func.func @_mm_bn_relu_kernel(%arg0: i32, %arg1: i32, %arg2: i32, %arg3: memref<128x384xbf16, #tpu.memory_space<vmem>>, %arg4: memref<1x384xf32, #tpu.memory_space<vmem>>, %arg5: memref<1x384xf32, #tpu.memory_space<vmem>>, %arg6: memref<384x128xbf16, #tpu.memory_space<vmem>>, %arg7: memref<128x128xbf16, #tpu.memory_space<vmem>>, %arg8: memref<128x128xf32, #tpu.memory_space<vmem>>) attributes {dimension_semantics = [#tpu.dimension_semantics<parallel>, #tpu.dimension_semantics<parallel>, #tpu.dimension_semantics<arbitrary>], iteration_bounds = array<i64: 1, 1, 1>, scalar_prefetch = 0 : i64, scratch_operands = 1 : i64, tpu.core_type = #tpu.core_type<tc>, window_params = [{transform_indices = @transform_0, window_bounds = array<i64: 128, 384>}, {transform_indices = @transform_1, window_bounds = array<i64: 1, 384>}, {transform_indices = @transform_2, window_bounds = array<i64: 1, 384>}, {transform_indices = @transform_3, window_bounds = array<i64: 384, 128>}, {transform_indices = @transform_4, window_bounds = array<i64: 128, 128>}]} {
    %c0_i32 = arith.constant 0 : i32
    %0 = arith.cmpi eq, %arg2, %c0_i32 : i32
    %1 = arith.extui %0 : i1 to i32
    %c0_i32_0 = arith.constant 0 : i32
    %2 = arith.cmpi ne, %1, %c0_i32_0 : i32
    scf.if %2 {
      %cst_15 = arith.constant 0.000000e+00 : f32
      %22 = vector.broadcast %cst_15 : f32 to vector<128x128xf32>
      %c0_16 = arith.constant 0 : index
      %c0_17 = arith.constant 0 : index
      %23 = vector.load %arg8[%c0_16, %c0_17] : memref<128x128xf32, #tpu.memory_space<vmem>>, vector<128x128xf32>
      tpu.vector_store %arg8[%c0_16, %c0_17], %22 {strides = array<i32>} : memref<128x128xf32, #tpu.memory_space<vmem>>, vector<128x128xf32>,
    } else {
    }
    %c0 = arith.constant 0 : index
    %c0_1 = arith.constant 0 : index
    %3 = vector.load %arg3[%c0, %c0_1] : memref<128x384xbf16, #tpu.memory_space<vmem>>, vector<128x384xbf16>
    %4 = arith.extf %3 : vector<128x384xbf16> to vector<128x384xf32>
    %c0_2 = arith.constant 0 : index
    %c0_3 = arith.constant 0 : index
    %5 = vector.load %arg4[%c0_2, %c0_3] : memref<1x384xf32, #tpu.memory_space<vmem>>, vector<1x384xf32>
    %6 = vector.broadcast %5 : vector<1x384xf32> to vector<128x384xf32>
    %7 = arith.mulf %4, %6 : vector<128x384xf32>
    %c0_4 = arith.constant 0 : index
    %c0_5 = arith.constant 0 : index
    %8 = vector.load %arg5[%c0_4, %c0_5] : memref<1x384xf32, #tpu.memory_space<vmem>>, vector<1x384xf32>
    %9 = vector.broadcast %8 : vector<1x384xf32> to vector<128x384xf32>
    %10 = arith.addf %7, %9 : vector<128x384xf32>
    %cst = arith.constant 0.000000e+00 : f32
    %11 = vector.broadcast %cst : f32 to vector<128x384xf32>
    %12 = arith.maximumf %10, %11 : vector<128x384xf32>
    %13 = arith.truncf %12 : vector<128x384xf32> to vector<128x384xbf16>
    %c0_6 = arith.constant 0 : index
    %c0_7 = arith.constant 0 : index
    %14 = vector.load %arg8[%c0_6, %c0_7] : memref<128x128xf32, #tpu.memory_space<vmem>>, vector<128x128xf32>
    %c0_8 = arith.constant 0 : index
    %c0_9 = arith.constant 0 : index
    %15 = vector.load %arg6[%c0_8, %c0_9] : memref<384x128xbf16, #tpu.memory_space<vmem>>, vector<384x128xbf16>
    %cst_10 = arith.constant dense<0.000000e+00> : vector<128x128xf32>
    %16 = tpu.matmul %13, %15, %cst_10 {dimension_numbers = #tpu.dot_dimension_numbers<[1], [0], [0], [1], [0, 0, 1, 1], [], []>} : vector<128x384xbf16>, vector<384x128xbf16>, vector<128x128xf32> -> vector<128x128xf32>
    %17 = arith.addf %14, %16 : vector<128x128xf32>
    %c0_11 = arith.constant 0 : index
    %c0_12 = arith.constant 0 : index
    %18 = vector.load %arg8[%c0_11, %c0_12] : memref<128x128xf32, #tpu.memory_space<vmem>>, vector<128x128xf32>
    tpu.vector_store %arg8[%c0_11, %c0_12], %17 {strides = array<i32>} : memref<128x128xf32, #tpu.memory_space<vmem>>, vector<128x128xf32>,
    %c0_i32_13 = arith.constant 0 : i32
    %19 = arith.cmpi eq, %arg2, %c0_i32_13 : i32
    %20 = arith.extui %19 : i1 to i32
    %c0_i32_14 = arith.constant 0 : i32
    %21 = arith.cmpi ne, %20, %c0_i32_14 : i32
    scf.if %21 {
      %c0_15 = arith.constant 0 : index
      %c0_16 = arith.constant 0 : index
      %22 = vector.load %arg8[%c0_15, %c0_16] : memref<128x128xf32, #tpu.memory_space<vmem>>, vector<128x128xf32>
      %23 = arith.truncf %22 : vector<128x128xf32> to vector<128x128xbf16>
      %c0_17 = arith.constant 0 : index
      %c0_18 = arith.constant 0 : index
      %24 = vector.load %arg7[%c0_17, %c0_18] : memref<128x128xbf16, #tpu.memory_space<vmem>>, vector<128x128xbf16>
      tpu.vector_store %arg7[%c0_17, %c0_18], %23 {strides = array<i32>} : memref<128x128xbf16, #tpu.memory_space<vmem>>, vector<128x128xbf16>,
    } else {
    }
    return
  }
  func.func @transform_0(%arg0: i32, %arg1: i32, %arg2: i32) -> (i32, i32) {
    %c0_i32 = arith.constant 0 : i32
    return %arg0, %arg2 : i32, i32
  }
  func.func @transform_1(%arg0: i32, %arg1: i32, %arg2: i32) -> (i32, i32) {
    %c0_i32 = arith.constant 0 : i32
    %c0_i32_0 = arith.constant 0 : i32
    return %c0_i32, %arg2 : i32, i32
  }
  func.func @transform_2(%arg0: i32, %arg1: i32, %arg2: i32) -> (i32, i32) {
    %c0_i32 = arith.constant 0 : i32
    %c0_i32_0 = arith.constant 0 : i32
    return %c0_i32, %arg2 : i32, i32
  }
  func.func @transform_3(%arg0: i32, %arg1: i32, %arg2: i32) -> (i32, i32) {
    %c0_i32 = arith.constant 0 : i32
    return %arg2, %arg1 : i32, i32
  }
  func.func @transform_4(%arg0: i32, %arg1: i32, %arg2: i32) -> (i32, i32) {
    %c0_i32 = arith.constant 0 : i32
    return %arg0, %arg1 : i32, i32
  }
}

module attributes {stable_mosaic.version = 11 : i64} {
  func.func @_mm_bn_relu_kernel(%arg0: i32, %arg1: i32, %arg2: i32, %arg3: memref<32x128xbf16, #tpu.memory_space<vmem>>, %arg4: memref<1x128xf32, #tpu.memory_space<vmem>>, %arg5: memref<1x128xf32, #tpu.memory_space<vmem>>, %arg6: memref<128x128xbf16, #tpu.memory_space<vmem>>, %arg7: memref<32x128xbf16, #tpu.memory_space<vmem>>, %arg8: memref<32x128xf32, #tpu.memory_space<vmem>>) attributes {dimension_semantics = [#tpu.dimension_semantics<parallel>, #tpu.dimension_semantics<parallel>, #tpu.dimension_semantics<arbitrary>], iteration_bounds = array<i64: 1, 1, 1>, scalar_prefetch = 0 : i64, scratch_operands = 1 : i64, tpu.core_type = #tpu.core_type<tc>, window_params = [{transform_indices = @transform_0, window_bounds = array<i64: 32, 128>}, {transform_indices = @transform_1, window_bounds = array<i64: 1, 128>}, {transform_indices = @transform_2, window_bounds = array<i64: 1, 128>}, {transform_indices = @transform_3, window_bounds = array<i64: 128, 128>}, {transform_indices = @transform_4, window_bounds = array<i64: 32, 128>}]} {
    %c0_i32 = arith.constant 0 : i32
    %0 = arith.cmpi eq, %arg2, %c0_i32 : i32
    %1 = arith.extui %0 : i1 to i32
    %c0_i32_0 = arith.constant 0 : i32
    %2 = arith.cmpi ne, %1, %c0_i32_0 : i32
    scf.if %2 {
      %cst_15 = arith.constant 0.000000e+00 : f32
      %22 = vector.broadcast %cst_15 : f32 to vector<32x128xf32>
      %c0_16 = arith.constant 0 : index
      %c0_17 = arith.constant 0 : index
      %23 = vector.load %arg8[%c0_16, %c0_17] : memref<32x128xf32, #tpu.memory_space<vmem>>, vector<32x128xf32>
      tpu.vector_store %arg8[%c0_16, %c0_17], %22 {strides = array<i32>} : memref<32x128xf32, #tpu.memory_space<vmem>>, vector<32x128xf32>,
    } else {
    }
    %c0 = arith.constant 0 : index
    %c0_1 = arith.constant 0 : index
    %3 = vector.load %arg3[%c0, %c0_1] : memref<32x128xbf16, #tpu.memory_space<vmem>>, vector<32x128xbf16>
    %4 = arith.extf %3 : vector<32x128xbf16> to vector<32x128xf32>
    %c0_2 = arith.constant 0 : index
    %c0_3 = arith.constant 0 : index
    %5 = vector.load %arg4[%c0_2, %c0_3] : memref<1x128xf32, #tpu.memory_space<vmem>>, vector<1x128xf32>
    %6 = vector.broadcast %5 : vector<1x128xf32> to vector<32x128xf32>
    %7 = arith.mulf %4, %6 : vector<32x128xf32>
    %c0_4 = arith.constant 0 : index
    %c0_5 = arith.constant 0 : index
    %8 = vector.load %arg5[%c0_4, %c0_5] : memref<1x128xf32, #tpu.memory_space<vmem>>, vector<1x128xf32>
    %9 = vector.broadcast %8 : vector<1x128xf32> to vector<32x128xf32>
    %10 = arith.addf %7, %9 : vector<32x128xf32>
    %cst = arith.constant 0.000000e+00 : f32
    %11 = vector.broadcast %cst : f32 to vector<32x128xf32>
    %12 = arith.maximumf %10, %11 : vector<32x128xf32>
    %13 = arith.truncf %12 : vector<32x128xf32> to vector<32x128xbf16>
    %c0_6 = arith.constant 0 : index
    %c0_7 = arith.constant 0 : index
    %14 = vector.load %arg8[%c0_6, %c0_7] : memref<32x128xf32, #tpu.memory_space<vmem>>, vector<32x128xf32>
    %c0_8 = arith.constant 0 : index
    %c0_9 = arith.constant 0 : index
    %15 = vector.load %arg6[%c0_8, %c0_9] : memref<128x128xbf16, #tpu.memory_space<vmem>>, vector<128x128xbf16>
    %cst_10 = arith.constant dense<0.000000e+00> : vector<32x128xf32>
    %16 = tpu.matmul %13, %15, %cst_10 {dimension_numbers = #tpu.dot_dimension_numbers<[1], [0], [0], [1], [0, 0, 1, 1], [], []>} : vector<32x128xbf16>, vector<128x128xbf16>, vector<32x128xf32> -> vector<32x128xf32>
    %17 = arith.addf %14, %16 : vector<32x128xf32>
    %c0_11 = arith.constant 0 : index
    %c0_12 = arith.constant 0 : index
    %18 = vector.load %arg8[%c0_11, %c0_12] : memref<32x128xf32, #tpu.memory_space<vmem>>, vector<32x128xf32>
    tpu.vector_store %arg8[%c0_11, %c0_12], %17 {strides = array<i32>} : memref<32x128xf32, #tpu.memory_space<vmem>>, vector<32x128xf32>,
    %c0_i32_13 = arith.constant 0 : i32
    %19 = arith.cmpi eq, %arg2, %c0_i32_13 : i32
    %20 = arith.extui %19 : i1 to i32
    %c0_i32_14 = arith.constant 0 : i32
    %21 = arith.cmpi ne, %20, %c0_i32_14 : i32
    scf.if %21 {
      %c0_15 = arith.constant 0 : index
      %c0_16 = arith.constant 0 : index
      %22 = vector.load %arg8[%c0_15, %c0_16] : memref<32x128xf32, #tpu.memory_space<vmem>>, vector<32x128xf32>
      %23 = arith.truncf %22 : vector<32x128xf32> to vector<32x128xbf16>
      %c0_17 = arith.constant 0 : index
      %c0_18 = arith.constant 0 : index
      %24 = vector.load %arg7[%c0_17, %c0_18] : memref<32x128xbf16, #tpu.memory_space<vmem>>, vector<32x128xbf16>
      tpu.vector_store %arg7[%c0_17, %c0_18], %23 {strides = array<i32>} : memref<32x128xbf16, #tpu.memory_space<vmem>>, vector<32x128xbf16>,
    } else {
    }
    return
  }
  func.func @transform_0(%arg0: i32, %arg1: i32, %arg2: i32) -> (i32, i32) {
    %c0_i32 = arith.constant 0 : i32
    return %arg0, %arg2 : i32, i32
  }
  func.func @transform_1(%arg0: i32, %arg1: i32, %arg2: i32) -> (i32, i32) {
    %c0_i32 = arith.constant 0 : i32
    %c0_i32_0 = arith.constant 0 : i32
    return %c0_i32, %arg2 : i32, i32
  }
  func.func @transform_2(%arg0: i32, %arg1: i32, %arg2: i32) -> (i32, i32) {
    %c0_i32 = arith.constant 0 : i32
    %c0_i32_0 = arith.constant 0 : i32
    return %c0_i32, %arg2 : i32, i32
  }
  func.func @transform_3(%arg0: i32, %arg1: i32, %arg2: i32) -> (i32, i32) {
    %c0_i32 = arith.constant 0 : i32
    return %arg2, %arg1 : i32, i32
  }
  func.func @transform_4(%arg0: i32, %arg1: i32, %arg2: i32) -> (i32, i32) {
    %c0_i32 = arith.constant 0 : i32
    return %arg0, %arg1 : i32, i32
  }
}

module attributes {stable_mosaic.version = 11 : i64} {
  func.func @_mm_bn_relu_kernel(%arg0: i32, %arg1: i32, %arg2: i32, %arg3: memref<32x384xbf16, #tpu.memory_space<vmem>>, %arg4: memref<1x384xf32, #tpu.memory_space<vmem>>, %arg5: memref<1x384xf32, #tpu.memory_space<vmem>>, %arg6: memref<384x128xbf16, #tpu.memory_space<vmem>>, %arg7: memref<32x128xbf16, #tpu.memory_space<vmem>>, %arg8: memref<32x128xf32, #tpu.memory_space<vmem>>) attributes {dimension_semantics = [#tpu.dimension_semantics<parallel>, #tpu.dimension_semantics<parallel>, #tpu.dimension_semantics<arbitrary>], iteration_bounds = array<i64: 1, 1, 1>, scalar_prefetch = 0 : i64, scratch_operands = 1 : i64, tpu.core_type = #tpu.core_type<tc>, window_params = [{transform_indices = @transform_0, window_bounds = array<i64: 32, 384>}, {transform_indices = @transform_1, window_bounds = array<i64: 1, 384>}, {transform_indices = @transform_2, window_bounds = array<i64: 1, 384>}, {transform_indices = @transform_3, window_bounds = array<i64: 384, 128>}, {transform_indices = @transform_4, window_bounds = array<i64: 32, 128>}]} {
    %c0_i32 = arith.constant 0 : i32
    %0 = arith.cmpi eq, %arg2, %c0_i32 : i32
    %1 = arith.extui %0 : i1 to i32
    %c0_i32_0 = arith.constant 0 : i32
    %2 = arith.cmpi ne, %1, %c0_i32_0 : i32
    scf.if %2 {
      %cst_15 = arith.constant 0.000000e+00 : f32
      %22 = vector.broadcast %cst_15 : f32 to vector<32x128xf32>
      %c0_16 = arith.constant 0 : index
      %c0_17 = arith.constant 0 : index
      %23 = vector.load %arg8[%c0_16, %c0_17] : memref<32x128xf32, #tpu.memory_space<vmem>>, vector<32x128xf32>
      tpu.vector_store %arg8[%c0_16, %c0_17], %22 {strides = array<i32>} : memref<32x128xf32, #tpu.memory_space<vmem>>, vector<32x128xf32>,
    } else {
    }
    %c0 = arith.constant 0 : index
    %c0_1 = arith.constant 0 : index
    %3 = vector.load %arg3[%c0, %c0_1] : memref<32x384xbf16, #tpu.memory_space<vmem>>, vector<32x384xbf16>
    %4 = arith.extf %3 : vector<32x384xbf16> to vector<32x384xf32>
    %c0_2 = arith.constant 0 : index
    %c0_3 = arith.constant 0 : index
    %5 = vector.load %arg4[%c0_2, %c0_3] : memref<1x384xf32, #tpu.memory_space<vmem>>, vector<1x384xf32>
    %6 = vector.broadcast %5 : vector<1x384xf32> to vector<32x384xf32>
    %7 = arith.mulf %4, %6 : vector<32x384xf32>
    %c0_4 = arith.constant 0 : index
    %c0_5 = arith.constant 0 : index
    %8 = vector.load %arg5[%c0_4, %c0_5] : memref<1x384xf32, #tpu.memory_space<vmem>>, vector<1x384xf32>
    %9 = vector.broadcast %8 : vector<1x384xf32> to vector<32x384xf32>
    %10 = arith.addf %7, %9 : vector<32x384xf32>
    %cst = arith.constant 0.000000e+00 : f32
    %11 = vector.broadcast %cst : f32 to vector<32x384xf32>
    %12 = arith.maximumf %10, %11 : vector<32x384xf32>
    %13 = arith.truncf %12 : vector<32x384xf32> to vector<32x384xbf16>
    %c0_6 = arith.constant 0 : index
    %c0_7 = arith.constant 0 : index
    %14 = vector.load %arg8[%c0_6, %c0_7] : memref<32x128xf32, #tpu.memory_space<vmem>>, vector<32x128xf32>
    %c0_8 = arith.constant 0 : index
    %c0_9 = arith.constant 0 : index
    %15 = vector.load %arg6[%c0_8, %c0_9] : memref<384x128xbf16, #tpu.memory_space<vmem>>, vector<384x128xbf16>
    %cst_10 = arith.constant dense<0.000000e+00> : vector<32x128xf32>
    %16 = tpu.matmul %13, %15, %cst_10 {dimension_numbers = #tpu.dot_dimension_numbers<[1], [0], [0], [1], [0, 0, 1, 1], [], []>} : vector<32x384xbf16>, vector<384x128xbf16>, vector<32x128xf32> -> vector<32x128xf32>
    %17 = arith.addf %14, %16 : vector<32x128xf32>
    %c0_11 = arith.constant 0 : index
    %c0_12 = arith.constant 0 : index
    %18 = vector.load %arg8[%c0_11, %c0_12] : memref<32x128xf32, #tpu.memory_space<vmem>>, vector<32x128xf32>
    tpu.vector_store %arg8[%c0_11, %c0_12], %17 {strides = array<i32>} : memref<32x128xf32, #tpu.memory_space<vmem>>, vector<32x128xf32>,
    %c0_i32_13 = arith.constant 0 : i32
    %19 = arith.cmpi eq, %arg2, %c0_i32_13 : i32
    %20 = arith.extui %19 : i1 to i32
    %c0_i32_14 = arith.constant 0 : i32
    %21 = arith.cmpi ne, %20, %c0_i32_14 : i32
    scf.if %21 {
      %c0_15 = arith.constant 0 : index
      %c0_16 = arith.constant 0 : index
      %22 = vector.load %arg8[%c0_15, %c0_16] : memref<32x128xf32, #tpu.memory_space<vmem>>, vector<32x128xf32>
      %23 = arith.truncf %22 : vector<32x128xf32> to vector<32x128xbf16>
      %c0_17 = arith.constant 0 : index
      %c0_18 = arith.constant 0 : index
      %24 = vector.load %arg7[%c0_17, %c0_18] : memref<32x128xbf16, #tpu.memory_space<vmem>>, vector<32x128xbf16>
      tpu.vector_store %arg7[%c0_17, %c0_18], %23 {strides = array<i32>} : memref<32x128xbf16, #tpu.memory_space<vmem>>, vector<32x128xbf16>,
    } else {
    }
    return
  }
  func.func @transform_0(%arg0: i32, %arg1: i32, %arg2: i32) -> (i32, i32) {
    %c0_i32 = arith.constant 0 : i32
    return %arg0, %arg2 : i32, i32
  }
  func.func @transform_1(%arg0: i32, %arg1: i32, %arg2: i32) -> (i32, i32) {
    %c0_i32 = arith.constant 0 : i32
    %c0_i32_0 = arith.constant 0 : i32
    return %c0_i32, %arg2 : i32, i32
  }
  func.func @transform_2(%arg0: i32, %arg1: i32, %arg2: i32) -> (i32, i32) {
    %c0_i32 = arith.constant 0 : i32
    %c0_i32_0 = arith.constant 0 : i32
    return %c0_i32, %arg2 : i32, i32
  }
  func.func @transform_3(%arg0: i32, %arg1: i32, %arg2: i32) -> (i32, i32) {
    %c0_i32 = arith.constant 0 : i32
    return %arg2, %arg1 : i32, i32
  }
  func.func @transform_4(%arg0: i32, %arg1: i32, %arg2: i32) -> (i32, i32) {
    %c0_i32 = arith.constant 0 : i32
    return %arg0, %arg1 : i32, i32
  }
}

module attributes {stable_mosaic.version = 11 : i64} {
  func.func @_mm_bn_relu_kernel(%arg0: i32, %arg1: i32, %arg2: i32, %arg3: memref<8x128xbf16, #tpu.memory_space<vmem>>, %arg4: memref<1x128xf32, #tpu.memory_space<vmem>>, %arg5: memref<1x128xf32, #tpu.memory_space<vmem>>, %arg6: memref<128x128xbf16, #tpu.memory_space<vmem>>, %arg7: memref<8x128xbf16, #tpu.memory_space<vmem>>, %arg8: memref<8x128xf32, #tpu.memory_space<vmem>>) attributes {dimension_semantics = [#tpu.dimension_semantics<parallel>, #tpu.dimension_semantics<parallel>, #tpu.dimension_semantics<arbitrary>], iteration_bounds = array<i64: 1, 1, 1>, scalar_prefetch = 0 : i64, scratch_operands = 1 : i64, tpu.core_type = #tpu.core_type<tc>, window_params = [{transform_indices = @transform_0, window_bounds = array<i64: 8, 128>}, {transform_indices = @transform_1, window_bounds = array<i64: 1, 128>}, {transform_indices = @transform_2, window_bounds = array<i64: 1, 128>}, {transform_indices = @transform_3, window_bounds = array<i64: 128, 128>}, {transform_indices = @transform_4, window_bounds = array<i64: 8, 128>}]} {
    %c0_i32 = arith.constant 0 : i32
    %0 = arith.cmpi eq, %arg2, %c0_i32 : i32
    %1 = arith.extui %0 : i1 to i32
    %c0_i32_0 = arith.constant 0 : i32
    %2 = arith.cmpi ne, %1, %c0_i32_0 : i32
    scf.if %2 {
      %cst_15 = arith.constant 0.000000e+00 : f32
      %22 = vector.broadcast %cst_15 : f32 to vector<8x128xf32>
      %c0_16 = arith.constant 0 : index
      %c0_17 = arith.constant 0 : index
      %23 = vector.load %arg8[%c0_16, %c0_17] : memref<8x128xf32, #tpu.memory_space<vmem>>, vector<8x128xf32>
      tpu.vector_store %arg8[%c0_16, %c0_17], %22 {strides = array<i32>} : memref<8x128xf32, #tpu.memory_space<vmem>>, vector<8x128xf32>,
    } else {
    }
    %c0 = arith.constant 0 : index
    %c0_1 = arith.constant 0 : index
    %3 = vector.load %arg3[%c0, %c0_1] : memref<8x128xbf16, #tpu.memory_space<vmem>>, vector<8x128xbf16>
    %4 = arith.extf %3 : vector<8x128xbf16> to vector<8x128xf32>
    %c0_2 = arith.constant 0 : index
    %c0_3 = arith.constant 0 : index
    %5 = vector.load %arg4[%c0_2, %c0_3] : memref<1x128xf32, #tpu.memory_space<vmem>>, vector<1x128xf32>
    %6 = vector.broadcast %5 : vector<1x128xf32> to vector<8x128xf32>
    %7 = arith.mulf %4, %6 : vector<8x128xf32>
    %c0_4 = arith.constant 0 : index
    %c0_5 = arith.constant 0 : index
    %8 = vector.load %arg5[%c0_4, %c0_5] : memref<1x128xf32, #tpu.memory_space<vmem>>, vector<1x128xf32>
    %9 = vector.broadcast %8 : vector<1x128xf32> to vector<8x128xf32>
    %10 = arith.addf %7, %9 : vector<8x128xf32>
    %cst = arith.constant 0.000000e+00 : f32
    %11 = vector.broadcast %cst : f32 to vector<8x128xf32>
    %12 = arith.maximumf %10, %11 : vector<8x128xf32>
    %13 = arith.truncf %12 : vector<8x128xf32> to vector<8x128xbf16>
    %c0_6 = arith.constant 0 : index
    %c0_7 = arith.constant 0 : index
    %14 = vector.load %arg8[%c0_6, %c0_7] : memref<8x128xf32, #tpu.memory_space<vmem>>, vector<8x128xf32>
    %c0_8 = arith.constant 0 : index
    %c0_9 = arith.constant 0 : index
    %15 = vector.load %arg6[%c0_8, %c0_9] : memref<128x128xbf16, #tpu.memory_space<vmem>>, vector<128x128xbf16>
    %cst_10 = arith.constant dense<0.000000e+00> : vector<8x128xf32>
    %16 = tpu.matmul %13, %15, %cst_10 {dimension_numbers = #tpu.dot_dimension_numbers<[1], [0], [0], [1], [0, 0, 1, 1], [], []>} : vector<8x128xbf16>, vector<128x128xbf16>, vector<8x128xf32> -> vector<8x128xf32>
    %17 = arith.addf %14, %16 : vector<8x128xf32>
    %c0_11 = arith.constant 0 : index
    %c0_12 = arith.constant 0 : index
    %18 = vector.load %arg8[%c0_11, %c0_12] : memref<8x128xf32, #tpu.memory_space<vmem>>, vector<8x128xf32>
    tpu.vector_store %arg8[%c0_11, %c0_12], %17 {strides = array<i32>} : memref<8x128xf32, #tpu.memory_space<vmem>>, vector<8x128xf32>,
    %c0_i32_13 = arith.constant 0 : i32
    %19 = arith.cmpi eq, %arg2, %c0_i32_13 : i32
    %20 = arith.extui %19 : i1 to i32
    %c0_i32_14 = arith.constant 0 : i32
    %21 = arith.cmpi ne, %20, %c0_i32_14 : i32
    scf.if %21 {
      %c0_15 = arith.constant 0 : index
      %c0_16 = arith.constant 0 : index
      %22 = vector.load %arg8[%c0_15, %c0_16] : memref<8x128xf32, #tpu.memory_space<vmem>>, vector<8x128xf32>
      %23 = arith.truncf %22 : vector<8x128xf32> to vector<8x128xbf16>
      %c0_17 = arith.constant 0 : index
      %c0_18 = arith.constant 0 : index
      %24 = vector.load %arg7[%c0_17, %c0_18] : memref<8x128xbf16, #tpu.memory_space<vmem>>, vector<8x128xbf16>
      tpu.vector_store %arg7[%c0_17, %c0_18], %23 {strides = array<i32>} : memref<8x128xbf16, #tpu.memory_space<vmem>>, vector<8x128xbf16>,
    } else {
    }
    return
  }
  func.func @transform_0(%arg0: i32, %arg1: i32, %arg2: i32) -> (i32, i32) {
    %c0_i32 = arith.constant 0 : i32
    return %arg0, %arg2 : i32, i32
  }
  func.func @transform_1(%arg0: i32, %arg1: i32, %arg2: i32) -> (i32, i32) {
    %c0_i32 = arith.constant 0 : i32
    %c0_i32_0 = arith.constant 0 : i32
    return %c0_i32, %arg2 : i32, i32
  }
  func.func @transform_2(%arg0: i32, %arg1: i32, %arg2: i32) -> (i32, i32) {
    %c0_i32 = arith.constant 0 : i32
    %c0_i32_0 = arith.constant 0 : i32
    return %c0_i32, %arg2 : i32, i32
  }
  func.func @transform_3(%arg0: i32, %arg1: i32, %arg2: i32) -> (i32, i32) {
    %c0_i32 = arith.constant 0 : i32
    return %arg2, %arg1 : i32, i32
  }
  func.func @transform_4(%arg0: i32, %arg1: i32, %arg2: i32) -> (i32, i32) {
    %c0_i32 = arith.constant 0 : i32
    return %arg0, %arg1 : i32, i32
  }
}

module attributes {stable_mosaic.version = 11 : i64} {
  func.func @_mm_bn_relu_kernel(%arg0: i32, %arg1: i32, %arg2: i32, %arg3: memref<8x384xbf16, #tpu.memory_space<vmem>>, %arg4: memref<1x384xf32, #tpu.memory_space<vmem>>, %arg5: memref<1x384xf32, #tpu.memory_space<vmem>>, %arg6: memref<384x128xbf16, #tpu.memory_space<vmem>>, %arg7: memref<8x128xbf16, #tpu.memory_space<vmem>>, %arg8: memref<8x128xf32, #tpu.memory_space<vmem>>) attributes {dimension_semantics = [#tpu.dimension_semantics<parallel>, #tpu.dimension_semantics<parallel>, #tpu.dimension_semantics<arbitrary>], iteration_bounds = array<i64: 1, 1, 1>, scalar_prefetch = 0 : i64, scratch_operands = 1 : i64, tpu.core_type = #tpu.core_type<tc>, window_params = [{transform_indices = @transform_0, window_bounds = array<i64: 8, 384>}, {transform_indices = @transform_1, window_bounds = array<i64: 1, 384>}, {transform_indices = @transform_2, window_bounds = array<i64: 1, 384>}, {transform_indices = @transform_3, window_bounds = array<i64: 384, 128>}, {transform_indices = @transform_4, window_bounds = array<i64: 8, 128>}]} {
    %c0_i32 = arith.constant 0 : i32
    %0 = arith.cmpi eq, %arg2, %c0_i32 : i32
    %1 = arith.extui %0 : i1 to i32
    %c0_i32_0 = arith.constant 0 : i32
    %2 = arith.cmpi ne, %1, %c0_i32_0 : i32
    scf.if %2 {
      %cst_15 = arith.constant 0.000000e+00 : f32
      %22 = vector.broadcast %cst_15 : f32 to vector<8x128xf32>
      %c0_16 = arith.constant 0 : index
      %c0_17 = arith.constant 0 : index
      %23 = vector.load %arg8[%c0_16, %c0_17] : memref<8x128xf32, #tpu.memory_space<vmem>>, vector<8x128xf32>
      tpu.vector_store %arg8[%c0_16, %c0_17], %22 {strides = array<i32>} : memref<8x128xf32, #tpu.memory_space<vmem>>, vector<8x128xf32>,
    } else {
    }
    %c0 = arith.constant 0 : index
    %c0_1 = arith.constant 0 : index
    %3 = vector.load %arg3[%c0, %c0_1] : memref<8x384xbf16, #tpu.memory_space<vmem>>, vector<8x384xbf16>
    %4 = arith.extf %3 : vector<8x384xbf16> to vector<8x384xf32>
    %c0_2 = arith.constant 0 : index
    %c0_3 = arith.constant 0 : index
    %5 = vector.load %arg4[%c0_2, %c0_3] : memref<1x384xf32, #tpu.memory_space<vmem>>, vector<1x384xf32>
    %6 = vector.broadcast %5 : vector<1x384xf32> to vector<8x384xf32>
    %7 = arith.mulf %4, %6 : vector<8x384xf32>
    %c0_4 = arith.constant 0 : index
    %c0_5 = arith.constant 0 : index
    %8 = vector.load %arg5[%c0_4, %c0_5] : memref<1x384xf32, #tpu.memory_space<vmem>>, vector<1x384xf32>
    %9 = vector.broadcast %8 : vector<1x384xf32> to vector<8x384xf32>
    %10 = arith.addf %7, %9 : vector<8x384xf32>
    %cst = arith.constant 0.000000e+00 : f32
    %11 = vector.broadcast %cst : f32 to vector<8x384xf32>
    %12 = arith.maximumf %10, %11 : vector<8x384xf32>
    %13 = arith.truncf %12 : vector<8x384xf32> to vector<8x384xbf16>
    %c0_6 = arith.constant 0 : index
    %c0_7 = arith.constant 0 : index
    %14 = vector.load %arg8[%c0_6, %c0_7] : memref<8x128xf32, #tpu.memory_space<vmem>>, vector<8x128xf32>
    %c0_8 = arith.constant 0 : index
    %c0_9 = arith.constant 0 : index
    %15 = vector.load %arg6[%c0_8, %c0_9] : memref<384x128xbf16, #tpu.memory_space<vmem>>, vector<384x128xbf16>
    %cst_10 = arith.constant dense<0.000000e+00> : vector<8x128xf32>
    %16 = tpu.matmul %13, %15, %cst_10 {dimension_numbers = #tpu.dot_dimension_numbers<[1], [0], [0], [1], [0, 0, 1, 1], [], []>} : vector<8x384xbf16>, vector<384x128xbf16>, vector<8x128xf32> -> vector<8x128xf32>
    %17 = arith.addf %14, %16 : vector<8x128xf32>
    %c0_11 = arith.constant 0 : index
    %c0_12 = arith.constant 0 : index
    %18 = vector.load %arg8[%c0_11, %c0_12] : memref<8x128xf32, #tpu.memory_space<vmem>>, vector<8x128xf32>
    tpu.vector_store %arg8[%c0_11, %c0_12], %17 {strides = array<i32>} : memref<8x128xf32, #tpu.memory_space<vmem>>, vector<8x128xf32>,
    %c0_i32_13 = arith.constant 0 : i32
    %19 = arith.cmpi eq, %arg2, %c0_i32_13 : i32
    %20 = arith.extui %19 : i1 to i32
    %c0_i32_14 = arith.constant 0 : i32
    %21 = arith.cmpi ne, %20, %c0_i32_14 : i32
    scf.if %21 {
      %c0_15 = arith.constant 0 : index
      %c0_16 = arith.constant 0 : index
      %22 = vector.load %arg8[%c0_15, %c0_16] : memref<8x128xf32, #tpu.memory_space<vmem>>, vector<8x128xf32>
      %23 = arith.truncf %22 : vector<8x128xf32> to vector<8x128xbf16>
      %c0_17 = arith.constant 0 : index
      %c0_18 = arith.constant 0 : index
      %24 = vector.load %arg7[%c0_17, %c0_18] : memref<8x128xbf16, #tpu.memory_space<vmem>>, vector<8x128xbf16>
      tpu.vector_store %arg7[%c0_17, %c0_18], %23 {strides = array<i32>} : memref<8x128xbf16, #tpu.memory_space<vmem>>, vector<8x128xbf16>,
    } else {
    }
    return
  }
  func.func @transform_0(%arg0: i32, %arg1: i32, %arg2: i32) -> (i32, i32) {
    %c0_i32 = arith.constant 0 : i32
    return %arg0, %arg2 : i32, i32
  }
  func.func @transform_1(%arg0: i32, %arg1: i32, %arg2: i32) -> (i32, i32) {
    %c0_i32 = arith.constant 0 : i32
    %c0_i32_0 = arith.constant 0 : i32
    return %c0_i32, %arg2 : i32, i32
  }
  func.func @transform_2(%arg0: i32, %arg1: i32, %arg2: i32) -> (i32, i32) {
    %c0_i32 = arith.constant 0 : i32
    %c0_i32_0 = arith.constant 0 : i32
    return %c0_i32, %arg2 : i32, i32
  }
  func.func @transform_3(%arg0: i32, %arg1: i32, %arg2: i32) -> (i32, i32) {
    %c0_i32 = arith.constant 0 : i32
    return %arg2, %arg1 : i32, i32
  }
  func.func @transform_4(%arg0: i32, %arg1: i32, %arg2: i32) -> (i32, i32) {
    %c0_i32 = arith.constant 0 : i32
    return %arg0, %arg1 : i32, i32
  }
}

module attributes {stable_mosaic.version = 11 : i64} {
  func.func @_scale_shift_relu_kernel(%arg0: i32, %arg1: memref<8x128xbf16, #tpu.memory_space<vmem>>, %arg2: memref<1x128xf32, #tpu.memory_space<vmem>>, %arg3: memref<1x128xf32, #tpu.memory_space<vmem>>, %arg4: memref<8x128xf32, #tpu.memory_space<vmem>>) attributes {dimension_semantics = [#tpu.dimension_semantics<parallel>], iteration_bounds = array<i64: 1>, scalar_prefetch = 0 : i64, scratch_operands = 0 : i64, tpu.core_type = #tpu.core_type<tc>, window_params = [{transform_indices = @transform_0, window_bounds = array<i64: 8, 128>}, {pipeline_mode = #tpu.pipeline_mode<synchronous>, transform_indices = @transform_1, window_bounds = array<i64: 1, 128>}, {pipeline_mode = #tpu.pipeline_mode<synchronous>, transform_indices = @transform_2, window_bounds = array<i64: 1, 128>}, {transform_indices = @transform_3, window_bounds = array<i64: 8, 128>}]} {
    %c0 = arith.constant 0 : index
    %c0_0 = arith.constant 0 : index
    %0 = vector.load %arg1[%c0, %c0_0] : memref<8x128xbf16, #tpu.memory_space<vmem>>, vector<8x128xbf16>
    %1 = arith.extf %0 : vector<8x128xbf16> to vector<8x128xf32>
    %c0_1 = arith.constant 0 : index
    %c0_2 = arith.constant 0 : index
    %2 = vector.load %arg2[%c0_1, %c0_2] : memref<1x128xf32, #tpu.memory_space<vmem>>, vector<1x128xf32>
    %3 = vector.broadcast %2 : vector<1x128xf32> to vector<8x128xf32>
    %4 = arith.mulf %1, %3 : vector<8x128xf32>
    %c0_3 = arith.constant 0 : index
    %c0_4 = arith.constant 0 : index
    %5 = vector.load %arg3[%c0_3, %c0_4] : memref<1x128xf32, #tpu.memory_space<vmem>>, vector<1x128xf32>
    %6 = vector.broadcast %5 : vector<1x128xf32> to vector<8x128xf32>
    %7 = arith.addf %4, %6 : vector<8x128xf32>
    %cst = arith.constant 0.000000e+00 : f32
    %8 = vector.broadcast %cst : f32 to vector<8x128xf32>
    %9 = arith.maximumf %7, %8 : vector<8x128xf32>
    %c0_5 = arith.constant 0 : index
    %c0_6 = arith.constant 0 : index
    %10 = vector.load %arg4[%c0_5, %c0_6] : memref<8x128xf32, #tpu.memory_space<vmem>>, vector<8x128xf32>
    tpu.vector_store %arg4[%c0_5, %c0_6], %9 {strides = array<i32>} : memref<8x128xf32, #tpu.memory_space<vmem>>, vector<8x128xf32>,
    return
  }
  func.func @transform_0(%arg0: i32) -> (i32, i32) {
    %c0_i32 = arith.constant 0 : i32
    %c0_i32_0 = arith.constant 0 : i32
    return %arg0, %c0_i32 : i32, i32
  }
  func.func @transform_1(%arg0: i32) -> (i32, i32) {
    %c0_i32 = arith.constant 0 : i32
    %c0_i32_0 = arith.constant 0 : i32
    %c0_i32_1 = arith.constant 0 : i32
    return %c0_i32, %c0_i32_0 : i32, i32
  }
  func.func @transform_2(%arg0: i32) -> (i32, i32) {
    %c0_i32 = arith.constant 0 : i32
    %c0_i32_0 = arith.constant 0 : i32
    %c0_i32_1 = arith.constant 0 : i32
    return %c0_i32, %c0_i32_0 : i32, i32
  }
  func.func @transform_3(%arg0: i32) -> (i32, i32) {
    %c0_i32 = arith.constant 0 : i32
    %c0_i32_0 = arith.constant 0 : i32
    return %arg0, %c0_i32 : i32, i32
  }
}

</mosaic_0001>

<llo_original>
// kernel: densenet_forward.23
$region0: #{densenet_forward.23}
  #allocation0 [shape = 'u32[]', space=smem, size = 0x4, offset = 0x4, fixed_abs, tag = 'smem constant byte address 0x4 - core index']
  #allocation1 [shape = 'u32[72,128]{1,0:T(1,128)}', space=vmem, size = 0x9000, scoped, tag = 'internal scratch']
  %s0 = inlined_call_operand.vmem [shape: bf16[512,128], index: 0, kind: input, shape index: {}]
  %s1 = inlined_call_operand.vmem [shape: f32[1,128], index: 1, kind: input, shape index: {}]
  %s2 = inlined_call_operand.vmem [shape: f32[1,128], index: 2, kind: input, shape index: {}]
  %s3 = inlined_call_operand.vmem [shape: bf16[512,128], index: 3, kind: output, shape index: {}]
  %s4 = sld [smem:[#allocation0]]
  $region22: #{densenet_forward.23} parent=0
    _
  %s6 = ssub.s32 1, %s4
  %s7 = scalar_select 0, %s6, %s4
  // Predicated region
  $region2: #{densenet_forward.23} parent=0 // pred_check
    _
  $region3: #{densenet_forward.23} parent=0 // pred_check_branch
    %9 = sbr.rel (0) target = $region5
  $region4: #{densenet_forward.23} parent=0 // pred_region
    _
  $region5: #{densenet_forward.23} parent=0 // pred_fallthru
    _
  // Predicated region
  $region6: #{densenet_forward.23} parent=0 // pred_check
    _
  $region7: #{densenet_forward.23} parent=0 // pred_check_branch
    %11 = sbr.rel (0) target = $region9
  $region8: #{densenet_forward.23} parent=0 // pred_region
    _
  $region9: #{densenet_forward.23} parent=0 // pred_fallthru
    _
  // Predicated region
  $region10: #{densenet_forward.23} parent=0 // pred_check
    _
  $region11: #{densenet_forward.23} parent=0 // pred_check_branch
    %13 = sbr.rel (0) target = $region13
  $region12: #{densenet_forward.23} parent=0 // pred_region
    _
  $region13: #{densenet_forward.23} parent=0 // pred_fallthru
    _
  %v14 = vld [vmem:[%s0] sm:$0xf]
  %v15 = vld [vmem:[%s0 + $0x4] sm:$0xf]
  %v16 = vld [vmem:[%s0 + $0x8] sm:$0xf]
  %v17 = vld [vmem:[%s0 + $0xc] sm:$0xf]
  %v18 = vld [vmem:[%s0 + $0x10] sm:$0xf]
  %v19 = vld [vmem:[%s0 + $0x14] sm:$0xf]
  %v20 = vld [vmem:[%s0 + $0x18] sm:$0xf]
  %v21 = vld [vmem:[%s0 + $0x1c] sm:$0xf]
  %v22 = vld [vmem:[%s0 + $0x20] sm:$0xf]
  %v23 = vld [vmem:[%s0 + $0x24] sm:$0xf]
  %v24 = vld [vmem:[%s0 + $0x28] sm:$0xf]
  %v25 = vld [vmem:[%s0 + $0x2c] sm:$0xf]
  %v26 = vld [vmem:[%s0 + $0x30] sm:$0xf]
  %v27 = vld [vmem:[%s0 + $0x34] sm:$0xf]
  %v28 = vld [vmem:[%s0 + $0x38] sm:$0xf]
  %v29 = vld [vmem:[%s0 + $0x3c] sm:$0xf]
  %v30 = vld [vmem:[%s0 + $0x40] sm:$0xf]
  %v31 = vld [vmem:[%s0 + $0x44] sm:$0xf]
  %v32 = vld [vmem:[%s0 + $0x48] sm:$0xf]
  %v33 = vld [vmem:[%s0 + $0x4c] sm:$0xf]
  %v34 = vld [vmem:[%s0 + $0x50] sm:$0xf]
  %v35 = vld [vmem:[%s0 + $0x54] sm:$0xf]
  %v36 = vld [vmem:[%s0 + $0x58] sm:$0xf]
  %v37 = vld [vmem:[%s0 + $0x5c] sm:$0xf]
  %v38 = vld [vmem:[%s0 + $0x60] sm:$0xf]
  %v39 = vld [vmem:[%s0 + $0x64] sm:$0xf]
  %v40 = vld [vmem:[%s0 + $0x68] sm:$0xf]
  %v41 = vld [vmem:[%s0 + $0x6c] sm:$0xf]
  %v42 = vld [vmem:[%s0 + $0x70] sm:$0xf]
  %v43 = vld [vmem:[%s0 + $0x74] sm:$0xf]
  %v44 = vld [vmem:[%s0 + $0x78] sm:$0xf]
  %v45 = vld [vmem:[%s0 + $0x7c] sm:$0xf]
  %v46 = vld [vmem:[%s0 + $0x80] sm:$0xf]
  %v47 = vld [vmem:[%s0 + $0x84] sm:$0xf]
  %v48 = vld [vmem:[%s0 + $0x88] sm:$0xf]
  %v49 = vld [vmem:[%s0 + $0x8c] sm:$0xf]
  %v50 = vld [vmem:[%s0 + $0x90] sm:$0xf]
  %v51 = vld [vmem:[%s0 + $0x94] sm:$0xf]
  %v52 = vld [vmem:[%s0 + $0x98] sm:$0xf]
  %v53 = vld [vmem:[%s0 + $0x9c] sm:$0xf]
  %v54 = vld [vmem:[%s0 + $0xa0] sm:$0xf]
  %v55 = vld [vmem:[%s0 + $0xa4] sm:$0xf]
  %v56 = vld [vmem:[%s0 + $0xa8] sm:$0xf]
  %v57 = vld [vmem:[%s0 + $0xac] sm:$0xf]
  %v58 = vld [vmem:[%s0 + $0xb0] sm:$0xf]
  %v59 = vld [vmem:[%s0 + $0xb4] sm:$0xf]
  %v60 = vld [vmem:[%s0 + $0xb8] sm:$0xf]
  %v61 = vld [vmem:[%s0 + $0xbc] sm:$0xf]
  %v62 = vld [vmem:[%s0 + $0xc0] sm:$0xf]
  %v63 = vld [vmem:[%s0 + $0xc4] sm:$0xf]
  %v64 = vld [vmem:[%s0 + $0xc8] sm:$0xf]
  %v65 = vld [vmem:[%s0 + $0xcc] sm:$0xf]
  %v66 = vld [vmem:[%s0 + $0xd0] sm:$0xf]
  %v67 = vld [vmem:[%s0 + $0xd4] sm:$0xf]
  %v68 = vld [vmem:[%s0 + $0xd8] sm:$0xf]
  %v69 = vld [vmem:[%s0 + $0xdc] sm:$0xf]
  %v70 = vld [vmem:[%s0 + $0xe0] sm:$0xf]
  %v71 = vld [vmem:[%s0 + $0xe4] sm:$0xf]
  %v72 = vld [vmem:[%s0 + $0xe8] sm:$0xf]
  %v73 = vld [vmem:[%s0 + $0xec] sm:$0xf]
  %v74 = vld [vmem:[%s0 + $0xf0] sm:$0xf]
  %v75 = vld [vmem:[%s0 + $0xf4] sm:$0xf]
  %v76 = vld [vmem:[%s0 + $0xf8] sm:$0xf]
  %v77 = vld [vmem:[%s0 + $0xfc] sm:$0xf]
  %v78 = vunpack.c.l.bf16 %v14
  %v79 = vunpack.c.l.bf16 %v15
  %v80 = vunpack.c.l.bf16 %v16
  %v81 = vunpack.c.l.bf16 %v17
  %v82 = vunpack.c.l.bf16 %v18
  %v83 = vunpack.c.l.bf16 %v19
  %v84 = vunpack.c.l.bf16 %v20
  %v85 = vunpack.c.l.bf16 %v21
  %v86 = vunpack.c.l.bf16 %v22
  %v87 = vunpack.c.l.bf16 %v23
  %v88 = vunpack.c.l.bf16 %v24
  %v89 = vunpack.c.l.bf16 %v25
  %v90 = vunpack.c.l.bf16 %v26
  %v91 = vunpack.c.l.bf16 %v27
  %v92 = vunpack.c.l.bf16 %v28
  %v93 = vunpack.c.l.bf16 %v29
  %v94 = vunpack.c.l.bf16 %v30
  %v95 = vunpack.c.l.bf16 %v31
  %v96 = vunpack.c.l.bf16 %v32
  %v97 = vunpack.c.l.bf16 %v33
  %v98 = vunpack.c.l.bf16 %v34
  %v99 = vunpack.c.l.bf16 %v35
  %v100 = vunpack.c.l.bf16 %v36
  %v101 = vunpack.c.l.bf16 %v37
  %v102 = vunpack.c.l.bf16 %v38
  %v103 = vunpack.c.l.bf16 %v39
  %v104 = vunpack.c.l.bf16 %v40
  %v105 = vunpack.c.l.bf16 %v41
  %v106 = vunpack.c.l.bf16 %v42
  %v107 = vunpack.c.l.bf16 %v43
  %v108 = vunpack.c.l.bf16 %v44
  %v109 = vunpack.c.l.bf16 %v45
  %v110 = vunpack.c.l.bf16 %v46
  %v111 = vunpack.c.l.bf16 %v47
  %v112 = vunpack.c.l.bf16 %v48
  %v113 = vunpack.c.l.bf16 %v49
  %v114 = vunpack.c.l.bf16 %v50
  %v115 = vunpack.c.l.bf16 %v51
  %v116 = vunpack.c.l.bf16 %v52
  %v117 = vunpack.c.l.bf16 %v53
  %v118 = vunpack.c.l.bf16 %v54
  %v119 = vunpack.c.l.bf16 %v55
  %v120 = vunpack.c.l.bf16 %v56
  %v121 = vunpack.c.l.bf16 %v57
  %v122 = vunpack.c.l.bf16 %v58
  %v123 = vunpack.c.l.bf16 %v59
  %v124 = vunpack.c.l.bf16 %v60
  %v125 = vunpack.c.l.bf16 %v61
  %v126 = vunpack.c.l.bf16 %v62
  %v127 = vunpack.c.l.bf16 %v63
  %v128 = vunpack.c.l.bf16 %v64
  %v129 = vunpack.c.l.bf16 %v65
  %v130 = vunpack.c.l.bf16 %v66
  %v131 = vunpack.c.l.bf16 %v67
  %v132 = vunpack.c.l.bf16 %v68
  %v133 = vunpack.c.l.bf16 %v69
  %v134 = vunpack.c.l.bf16 %v70
  %v135 = vunpack.c.l.bf16 %v71
  %v136 = vunpack.c.l.bf16 %v72
  %v137 = vunpack.c.l.bf16 %v73
  %v138 = vunpack.c.l.bf16 %v74
  %v139 = vunpack.c.l.bf16 %v75
  %v140 = vunpack.c.l.bf16 %v76
  %v141 = vunpack.c.l.bf16 %v77
  %v142 = vld [vmem:[%s1] sm:$0x1]
  %v144 = vperm.slane %v142, 0
  %v146 = vmul.f32 %v78, %v144
  %v147 = vmul.f32 %v79, %v144
  %v148 = vmul.f32 %v80, %v144
  %v149 = vmul.f32 %v81, %v144
  %v150 = vmul.f32 %v82, %v144
  %v151 = vmul.f32 %v83, %v144
  %v152 = vmul.f32 %v84, %v144
  %v153 = vmul.f32 %v85, %v144
  %v154 = vmul.f32 %v86, %v144
  %v155 = vmul.f32 %v87, %v144
  %v156 = vmul.f32 %v88, %v144
  %v157 = vmul.f32 %v89, %v144
  %v158 = vmul.f32 %v90, %v144
  %v159 = vmul.f32 %v91, %v144
  %v160 = vmul.f32 %v92, %v144
  %v161 = vmul.f32 %v93, %v144
  %v162 = vmul.f32 %v94, %v144
  %v163 = vmul.f32 %v95, %v144
  %v164 = vmul.f32 %v96, %v144
  %v165 = vmul.f32 %v97, %v144
  %v166 = vmul.f32 %v98, %v144
  %v167 = vmul.f32 %v99, %v144
  %v168 = vmul.f32 %v100, %v144
  %v169 = vmul.f32 %v101, %v144
  %v170 = vmul.f32 %v102, %v144
  %v171 = vmul.f32 %v103, %v144
  %v172 = vmul.f32 %v104, %v144
  %v173 = vmul.f32 %v105, %v144
  %v174 = vmul.f32 %v106, %v144
  %v175 = vmul.f32 %v107, %v144
  %v176 = vmul.f32 %v108, %v144
  %v177 = vmul.f32 %v109, %v144
  %v178 = vmul.f32 %v110, %v144
  %v179 = vmul.f32 %v111, %v144
  %v180 = vmul.f32 %v112, %v144
  %v181 = vmul.f32 %v113, %v144
  %v182 = vmul.f32 %v114, %v144
  %v183 = vmul.f32 %v115, %v144
  %v184 = vmul.f32 %v116, %v144
  %v185 = vmul.f32 %v117, %v144
  %v186 = vmul.f32 %v118, %v144
  %v187 = vmul.f32 %v119, %v144
  %v188 = vmul.f32 %v120, %v144
  %v189 = vmul.f32 %v121, %v144
  %v190 = vmul.f32 %v122, %v144
  %v191 = vmul.f32 %v123, %v144
  %v192 = vmul.f32 %v124, %v144
  %v193 = vmul.f32 %v125, %v144
  %v194 = vmul.f32 %v126, %v144
  %v195 = vmul.f32 %v127, %v144
  %v196 = vmul.f32 %v128, %v144
  %v197 = vmul.f32 %v129, %v144
  %v198 = vmul.f32 %v130, %v144
  %v199 = vmul.f32 %v131, %v144
  %v200 = vmul.f32 %v132, %v144
  %v201 = vmul.f32 %v133, %v144
  %v202 = vmul.f32 %v134, %v144
  %v203 = vmul.f32 %v135, %v144
  %v204 = vmul.f32 %v136, %v144
  %v205 = vmul.f32 %v137, %v144
  %v206 = vmul.f32 %v138, %v144
  %v207 = vmul.f32 %v139, %v144
  %v208 = vmul.f32 %v140, %v144
  %v209 = vmul.f32 %v141, %v144
  %v210 = vld [vmem:[%s2] sm:$0x1]
  %v212 = vperm.slane %v210, 0
  %v214 = vadd.f32 %v146, %v212
  %v215 = vadd.f32 %v147, %v212
  %v216 = vadd.f32 %v148, %v212
  %v217 = vadd.f32 %v149, %v212
  %v218 = vadd.f32 %v150, %v212
  %v219 = vadd.f32 %v151, %v212
  %v220 = vadd.f32 %v152, %v212
  %v221 = vadd.f32 %v153, %v212
  %v222 = vadd.f32 %v154, %v212
  %v223 = vadd.f32 %v155, %v212
  %v224 = vadd.f32 %v156, %v212
  %v225 = vadd.f32 %v157, %v212
  %v226 = vadd.f32 %v158, %v212
  %v227 = vadd.f32 %v159, %v212
  %v228 = vadd.f32 %v160, %v212
  %v229 = vadd.f32 %v161, %v212
  %v230 = vadd.f32 %v162, %v212
  %v231 = vadd.f32 %v163, %v212
  %v232 = vadd.f32 %v164, %v212
  %v233 = vadd.f32 %v165, %v212
  %v234 = vadd.f32 %v166, %v212
  %v235 = vadd.f32 %v167, %v212
  %v236 = vadd.f32 %v168, %v212
  %v237 = vadd.f32 %v169, %v212
  %v238 = vadd.f32 %v170, %v212
  %v239 = vadd.f32 %v171, %v212
  %v240 = vadd.f32 %v172, %v212
  %v241 = vadd.f32 %v173, %v212
  %v242 = vadd.f32 %v174, %v212
  %v243 = vadd.f32 %v175, %v212
  %v244 = vadd.f32 %v176, %v212
  %v245 = vadd.f32 %v177, %v212
  %v246 = vadd.f32 %v178, %v212
  %v247 = vadd.f32 %v179, %v212
  %v248 = vadd.f32 %v180, %v212
  %v249 = vadd.f32 %v181, %v212
  %v250 = vadd.f32 %v182, %v212
  %v251 = vadd.f32 %v183, %v212
  %v252 = vadd.f32 %v184, %v212
  %v253 = vadd.f32 %v185, %v212
  %v254 = vadd.f32 %v186, %v212
  %v255 = vadd.f32 %v187, %v212
  %v256 = vadd.f32 %v188, %v212
  %v257 = vadd.f32 %v189, %v212
  %v258 = vadd.f32 %v190, %v212
  %v259 = vadd.f32 %v191, %v212
  %v260 = vadd.f32 %v192, %v212
  %v261 = vadd.f32 %v193, %v212
  %v262 = vadd.f32 %v194, %v212
  %v263 = vadd.f32 %v195, %v212
  %v264 = vadd.f32 %v196, %v212
  %v265 = vadd.f32 %v197, %v212
  %v266 = vadd.f32 %v198, %v212
  %v267 = vadd.f32 %v199, %v212
  %v268 = vadd.f32 %v200, %v212
  %v269 = vadd.f32 %v201, %v212
  %v270 = vadd.f32 %v202, %v212
  %v271 = vadd.f32 %v203, %v212
  %v272 = vadd.f32 %v204, %v212
  %v273 = vadd.f32 %v205, %v212
  %v274 = vadd.f32 %v206, %v212
  %v275 = vadd.f32 %v207, %v212
  %v276 = vadd.f32 %v208, %v212
  %v277 = vadd.f32 %v209, %v212
  %v278 = vmax.f32 %v214, 0.0
  %v279 = vmax.f32 %v215, 0.0
  %v280 = vmax.f32 %v216, 0.0
  %v281 = vmax.f32 %v217, 0.0
  %v282 = vmax.f32 %v218, 0.0
  %v283 = vmax.f32 %v219, 0.0
  %v284 = vmax.f32 %v220, 0.0
  %v285 = vmax.f32 %v221, 0.0
  %v286 = vmax.f32 %v222, 0.0
  %v287 = vmax.f32 %v223, 0.0
  %v288 = vmax.f32 %v224, 0.0
  %v289 = vmax.f32 %v225, 0.0
  %v290 = vmax.f32 %v226, 0.0
  %v291 = vmax.f32 %v227, 0.0
  %v292 = vmax.f32 %v228, 0.0
  %v293 = vmax.f32 %v229, 0.0
  %v294 = vmax.f32 %v230, 0.0
  %v295 = vmax.f32 %v231, 0.0
  %v296 = vmax.f32 %v232, 0.0
  %v297 = vmax.f32 %v233, 0.0
  %v298 = vmax.f32 %v234, 0.0
  %v299 = vmax.f32 %v235, 0.0
  %v300 = vmax.f32 %v236, 0.0
  %v301 = vmax.f32 %v237, 0.0
  %v302 = vmax.f32 %v238, 0.0
  %v303 = vmax.f32 %v239, 0.0
  %v304 = vmax.f32 %v240, 0.0
  %v305 = vmax.f32 %v241, 0.0
  %v306 = vmax.f32 %v242, 0.0
  %v307 = vmax.f32 %v243, 0.0
  %v308 = vmax.f32 %v244, 0.0
  %v309 = vmax.f32 %v245, 0.0
  %v310 = vmax.f32 %v246, 0.0
  %v311 = vmax.f32 %v247, 0.0
  %v312 = vmax.f32 %v248, 0.0
  %v313 = vmax.f32 %v249, 0.0
  %v314 = vmax.f32 %v250, 0.0
  %v315 = vmax.f32 %v251, 0.0
  %v316 = vmax.f32 %v252, 0.0
  %v317 = vmax.f32 %v253, 0.0
  %v318 = vmax.f32 %v254, 0.0
  %v319 = vmax.f32 %v255, 0.0
  %v320 = vmax.f32 %v256, 0.0
  %v321 = vmax.f32 %v257, 0.0
  %v322 = vmax.f32 %v258, 0.0
  %v323 = vmax.f32 %v259, 0.0
  %v324 = vmax.f32 %v260, 0.0
  %v325 = vmax.f32 %v261, 0.0
  %v326 = vmax.f32 %v262, 0.0
  %v327 = vmax.f32 %v263, 0.0
  %v328 = vmax.f32 %v264, 0.0
  %v329 = vmax.f32 %v265, 0.0
  %v330 = vmax.f32 %v266, 0.0
  %v331 = vmax.f32 %v267, 0.0
  %v332 = vmax.f32 %v268, 0.0
  %v333 = vmax.f32 %v269, 0.0
  %v334 = vmax.f32 %v270, 0.0
  %v335 = vmax.f32 %v271, 0.0
  %v336 = vmax.f32 %v272, 0.0
  %v337 = vmax.f32 %v273, 0.0
  %v338 = vmax.f32 %v274, 0.0
  %v339 = vmax.f32 %v275, 0.0
  %v340 = vmax.f32 %v276, 0.0
  %v341 = vmax.f32 %v277, 0.0
  %v342 = vpack.c.bf16 %v278, %v278
  %v343 = vpack.c.bf16 %v279, %v279
  %v344 = vpack.c.bf16 %v280, %v280
  %v345 = vpack.c.bf16 %v281, %v281
  %v346 = vpack.c.bf16 %v282, %v282
  %v347 = vpack.c.bf16 %v283, %v283
  %v348 = vpack.c.bf16 %v284, %v284
  %v349 = vpack.c.bf16 %v285, %v285
  %v350 = vpack.c.bf16 %v286, %v286
  %v351 = vpack.c.bf16 %v287, %v287
  %v352 = vpack.c.bf16 %v288, %v288
  %v353 = vpack.c.bf16 %v289, %v289
  %v354 = vpack.c.bf16 %v290, %v290
  %v355 = vpack.c.bf16 %v291, %v291
  %v356 = vpack.c.bf16 %v292, %v292
  %v357 = vpack.c.bf16 %v293, %v293
  %v358 = vpack.c.bf16 %v294, %v294
  %v359 = vpack.c.bf16 %v295, %v295
  %v360 = vpack.c.bf16 %v296, %v296
  %v361 = vpack.c.bf16 %v297, %v297
  %v362 = vpack.c.bf16 %v298, %v298
  %v363 = vpack.c.bf16 %v299, %v299
  %v364 = vpack.c.bf16 %v300, %v300
  %v365 = vpack.c.bf16 %v301, %v301
  %v366 = vpack.c.bf16 %v302, %v302
  %v367 = vpack.c.bf16 %v303, %v303
  %v368 = vpack.c.bf16 %v304, %v304
  %v369 = vpack.c.bf16 %v305, %v305
  %v370 = vpack.c.bf16 %v306, %v306
  %v371 = vpack.c.bf16 %v307, %v307
  %v372 = vpack.c.bf16 %v308, %v308
  %v373 = vpack.c.bf16 %v309, %v309
  %v374 = vpack.c.bf16 %v310, %v310
  %v375 = vpack.c.bf16 %v311, %v311
  %v376 = vpack.c.bf16 %v312, %v312
  %v377 = vpack.c.bf16 %v313, %v313
  %v378 = vpack.c.bf16 %v314, %v314
  %v379 = vpack.c.bf16 %v315, %v315
  %v380 = vpack.c.bf16 %v316, %v316
  %v381 = vpack.c.bf16 %v317, %v317
  %v382 = vpack.c.bf16 %v318, %v318
  %v383 = vpack.c.bf16 %v319, %v319
  %v384 = vpack.c.bf16 %v320, %v320
  %v385 = vpack.c.bf16 %v321, %v321
  %v386 = vpack.c.bf16 %v322, %v322
  %v387 = vpack.c.bf16 %v323, %v323
  %v388 = vpack.c.bf16 %v324, %v324
  %v389 = vpack.c.bf16 %v325, %v325
  %v390 = vpack.c.bf16 %v326, %v326
  %v391 = vpack.c.bf16 %v327, %v327
  %v392 = vpack.c.bf16 %v328, %v328
  %v393 = vpack.c.bf16 %v329, %v329
  %v394 = vpack.c.bf16 %v330, %v330
  %v395 = vpack.c.bf16 %v331, %v331
  %v396 = vpack.c.bf16 %v332, %v332
  %v397 = vpack.c.bf16 %v333, %v333
  %v398 = vpack.c.bf16 %v334, %v334
  %v399 = vpack.c.bf16 %v335, %v335
  %v400 = vpack.c.bf16 %v336, %v336
  %v401 = vpack.c.bf16 %v337, %v337
  %v402 = vpack.c.bf16 %v338, %v338
  %v403 = vpack.c.bf16 %v339, %v339
  %v404 = vpack.c.bf16 %v340, %v340
  %v405 = vpack.c.bf16 %v341, %v341
  %406 = vst [vmem:[%s3] sm:$0xf] %v342
  %407 = vst [vmem:[%s3 + $0x4] sm:$0xf] %v343
  %408 = vst [vmem:[%s3 + $0x8] sm:$0xf] %v344
  %409 = vst [vmem:[%s3 + $0xc] sm:$0xf] %v345
  %410 = vst [vmem:[%s3 + $0x10] sm:$0xf] %v346
  %411 = vst [vmem:[%s3 + $0x14] sm:$0xf] %v347
  %412 = vst [vmem:[%s3 + $0x18] sm:$0xf] %v348
  %413 = vst [vmem:[%s3 + $0x1c] sm:$0xf] %v349
  %414 = vst [vmem:[%s3 + $0x20] sm:$0xf] %v350
  %415 = vst [vmem:[%s3 + $0x24] sm:$0xf] %v351
  %416 = vst [vmem:[%s3 + $0x28] sm:$0xf] %v352
  %417 = vst [vmem:[%s3 + $0x2c] sm:$0xf] %v353
  %418 = vst [vmem:[%s3 + $0x30] sm:$0xf] %v354
  %419 = vst [vmem:[%s3 + $0x34] sm:$0xf] %v355
  %420 = vst [vmem:[%s3 + $0x38] sm:$0xf] %v356
  %421 = vst [vmem:[%s3 + $0x3c] sm:$0xf] %v357
  %422 = vst [vmem:[%s3 + $0x40] sm:$0xf] %v358
  %423 = vst [vmem:[%s3 + $0x44] sm:$0xf] %v359
  %424 = vst [vmem:[%s3 + $0x48] sm:$0xf] %v360
  %425 = vst [vmem:[%s3 + $0x4c] sm:$0xf] %v361
  %426 = vst [vmem:[%s3 + $0x50] sm:$0xf] %v362
  %427 = vst [vmem:[%s3 + $0x54] sm:$0xf] %v363
  %428 = vst [vmem:[%s3 + $0x58] sm:$0xf] %v364
  %429 = vst [vmem:[%s3 + $0x5c] sm:$0xf] %v365
  %430 = vst [vmem:[%s3 + $0x60] sm:$0xf] %v366
  %431 = vst [vmem:[%s3 + $0x64] sm:$0xf] %v367
  %432 = vst [vmem:[%s3 + $0x68] sm:$0xf] %v368
  %433 = vst [vmem:[%s3 + $0x6c] sm:$0xf] %v369
  %434 = vst [vmem:[%s3 + $0x70] sm:$0xf] %v370
  %435 = vst [vmem:[%s3 + $0x74] sm:$0xf] %v371
  %436 = vst [vmem:[%s3 + $0x78] sm:$0xf] %v372
  %437 = vst [vmem:[%s3 + $0x7c] sm:$0xf] %v373
  %438 = vst [vmem:[%s3 + $0x80] sm:$0xf] %v374
  %439 = vst [vmem:[%s3 + $0x84] sm:$0xf] %v375
  %440 = vst [vmem:[%s3 + $0x88] sm:$0xf] %v376
  %441 = vst [vmem:[%s3 + $0x8c] sm:$0xf] %v377
  %442 = vst [vmem:[%s3 + $0x90] sm:$0xf] %v378
  %443 = vst [vmem:[%s3 + $0x94] sm:$0xf] %v379
  %444 = vst [vmem:[%s3 + $0x98] sm:$0xf] %v380
  %445 = vst [vmem:[%s3 + $0x9c] sm:$0xf] %v381
  %446 = vst [vmem:[%s3 + $0xa0] sm:$0xf] %v382
  %447 = vst [vmem:[%s3 + $0xa4] sm:$0xf] %v383
  %448 = vst [vmem:[%s3 + $0xa8] sm:$0xf] %v384
  %449 = vst [vmem:[%s3 + $0xac] sm:$0xf] %v385
  %450 = vst [vmem:[%s3 + $0xb0] sm:$0xf] %v386
  %451 = vst [vmem:[%s3 + $0xb4] sm:$0xf] %v387
  %452 = vst [vmem:[%s3 + $0xb8] sm:$0xf] %v388
  %453 = vst [vmem:[%s3 + $0xbc] sm:$0xf] %v389
  %454 = vst [vmem:[%s3 + $0xc0] sm:$0xf] %v390
  %455 = vst [vmem:[%s3 + $0xc4] sm:$0xf] %v391
  %456 = vst [vmem:[%s3 + $0xc8] sm:$0xf] %v392
  %457 = vst [vmem:[%s3 + $0xcc] sm:$0xf] %v393
  %458 = vst [vmem:[%s3 + $0xd0] sm:$0xf] %v394
  %459 = vst [vmem:[%s3 + $0xd4] sm:$0xf] %v395
  %460 = vst [vmem:[%s3 + $0xd8] sm:$0xf] %v396
  %461 = vst [vmem:[%s3 + $0xdc] sm:$0xf] %v397
  %462 = vst [vmem:[%s3 + $0xe0] sm:$0xf] %v398
  %463 = vst [vmem:[%s3 + $0xe4] sm:$0xf] %v399
  %464 = vst [vmem:[%s3 + $0xe8] sm:$0xf] %v400
  %465 = vst [vmem:[%s3 + $0xec] sm:$0xf] %v401
  %466 = vst [vmem:[%s3 + $0xf0] sm:$0xf] %v402
  %467 = vst [vmem:[%s3 + $0xf4] sm:$0xf] %v403
  %468 = vst [vmem:[%s3 + $0xf8] sm:$0xf] %v404
  %469 = vst [vmem:[%s3 + $0xfc] sm:$0xf] %v405
  // Predicated region
  $region14: #{densenet_forward.23} parent=0 // pred_check
    _
  $region15: #{densenet_forward.23} parent=0 // pred_check_branch
    %471 = sbr.rel (0) target = $region17
  $region16: #{densenet_forward.23} parent=0 // pred_region
    _
  $region17: #{densenet_forward.23} parent=0 // pred_fallthru
    _
  // Predicated region
  $region18: #{densenet_forward.23} parent=0 // pred_check
    _
  $region19: #{densenet_forward.23} parent=0 // pred_check_branch
    %473 = sbr.rel (0) target = $region21
  $region20: #{densenet_forward.23} parent=0 // pred_region
    _
  $region21: #{densenet_forward.23} parent=0 // pred_fallthru
    _

// kernel: densenet_forward.22
$region0: #{densenet_forward.22}
  #allocation0 [shape = 'u32[]', space=smem, size = 0x4, offset = 0x4, fixed_abs, tag = 'smem constant byte address 0x4 - core index']
  #allocation1 [shape = 'u32[72,128]{1,0:T(1,128)}', space=vmem, size = 0x9000, scoped, tag = 'internal scratch']
  #allocation2 [shape = 'f32[256,128]{1,0:T(8,128)}', space=vmem, size = 0x20000, scoped, tag = 'scratch operand']
  %s0 = inlined_call_operand.vmem [shape: bf16[512,128], index: 0, kind: input, shape index: {}]
  %s1 = inlined_call_operand.vmem [shape: bf16[128,128], index: 1, kind: input, shape index: {}]
  %s2 = inlined_call_operand.vmem [shape: bf16[512,128], index: 2, kind: output, shape index: {}]
  %s3 = sld [smem:[#allocation0]]
  $region49: #{densenet_forward.22} parent=0
    _
  %s5 = ssub.s32 1, %s3
  %s6 = scalar_select 0, %s5, %s3
  loop: start=0, step=1, limit=4
  $region2: #{densenet_forward.22} parent=0 // loop_pre_header
    _
  $region3: #{densenet_forward.22} parent=0 // loop_header
    %s8 = sphi 0, %s12
    %p9 = scmp.ge.s32.totalorder %s8, 4
    %s15 = sphi 0, %s34
    %s16 = sphi 0, %s30
    %s17 = sphi 0, %s26
    %s18 = sphi 0, %s15
    %s19 = sphi 0, %s16
    %s20 = sphi 0, %s17
    %s21 = sphi 0, %s18
    %s22 = sphi 0, %s19
    %s23 = sphi 0, %s20
    %s39 = sphi 0, %s41
    %s42 = sphi 0, %s39
    %s43 = sphi 0, %s42
    %s59 = sphi 0, %s43
    %s67 = sphi 0, %s69
    %s70 = sphi 0, %s67
    %s71 = sphi 0, %s70
    %s87 = sphi 0, %s71
    %s95 = sphi 0, %s97
    %s98 = sphi 0, %s95
    %s99 = sphi 0, %s98
    %s115 = sphi 0, %s99
  $region4: #{densenet_forward.22} parent=0 // loop_header_branch
    %11 = sbr.rel (%p9) target = $region8
  $region5: #{densenet_forward.22} parent=0 // loop_body
    %s13 = ssub.s32 %s8, 1
    %s14 = ssub.s32 %s8, 2
    %s24 = sadd.s32 1, %s17
    %p25 = scmp.ge.s32.totalorder %s24, 1
    %s26 = scalar_select %p25, 0, %s24
    %s27 = sadd.s32 1, %s16
    %s28 = scalar_select %p25, %s27, %s16
    %p29 = scmp.ge.s32.totalorder %s28, 1
    %s30 = scalar_select %p29, 0, %s28
    %s31 = sadd.s32 1, %s15
    %s32 = scalar_select %p29, %s31, %s15
    %p33 = scmp.ge.s32.totalorder %s32, 2
    %s34 = scalar_select %p33, 0, %s32
    %s35 = ssub.s32 %s15, %s34
    %s36 = ssub.s32 %s17, %s26
    %s37 = sor.u32 %s35, %s36
    %p38 = scmp.eq.s32.totalorder %s37, 0
    %s40 = sadd.s32 %s39, 1
    %s41 = scalar_select %p38, %s39, %s40
    %p44 = pneg %p38
    %p45 = scmp.eq.s32.totalorder %s8, 1
    %p46 = por %p44, %p45
    %p47 = scmp.ne.s32.totalorder %s39, %s42
    %p48 = scmp.eq.s32.totalorder %s8, 0
    %p49 = por %p47, %p48
    %p50 = scmp.ne.s32.totalorder %s39, %s42
    %p51 = scmp.eq.s32.totalorder %s13, 1
    %p52 = por %p50, %p51
    %p53 = scmp.ne.s32.totalorder %s42, %s43
    %p54 = scmp.eq.s32.totalorder %s13, 0
    %p55 = por %p53, %p54
    %p56 = scmp.ne.s32.totalorder %s42, %s43
    %p57 = scmp.eq.s32.totalorder %s14, 1
    %p58 = por %p56, %p57
    %p60 = scmp.ne.s32.totalorder %s43, %s59
    %p61 = scmp.eq.s32.totalorder %s14, 0
    %p62 = por %p60, %p61
    %s63 = ssub.s32 %s17, %s26
    %s64 = ssub.s32 %s16, %s30
    %s65 = sor.u32 %s63, %s64
    %p66 = scmp.eq.s32.totalorder %s65, 0
    %s68 = sadd.s32 %s67, 1
    %s69 = scalar_select %p66, %s67, %s68
    %p72 = pneg %p66
    %p73 = scmp.eq.s32.totalorder %s8, 1
    %p74 = por %p72, %p73
    %p75 = scmp.ne.s32.totalorder %s67, %s70
    %p76 = scmp.eq.s32.totalorder %s8, 0
    %p77 = por %p75, %p76
    %p78 = scmp.ne.s32.totalorder %s67, %s70
    %p79 = scmp.eq.s32.totalorder %s13, 1
    %p80 = por %p78, %p79
    %p81 = scmp.ne.s32.totalorder %s70, %s71
    %p82 = scmp.eq.s32.totalorder %s13, 0
    %p83 = por %p81, %p82
    %p84 = scmp.ne.s32.totalorder %s70, %s71
    %p85 = scmp.eq.s32.totalorder %s14, 1
    %p86 = por %p84, %p85
    %p88 = scmp.ne.s32.totalorder %s71, %s87
    %p89 = scmp.eq.s32.totalorder %s14, 0
    %p90 = por %p88, %p89
    %s91 = ssub.s32 %s15, %s34
    %s92 = ssub.s32 %s16, %s30
    %s93 = sor.u32 %s91, %s92
    %p94 = scmp.eq.s32.totalorder %s93, 0
    %s96 = sadd.s32 %s95, 1
    %s97 = scalar_select %p94, %s95, %s96
    %p100 = pneg %p94
    %p101 = scmp.eq.s32.totalorder %s8, 1
    %p102 = por %p100, %p101
    %p103 = scmp.ne.s32.totalorder %s95, %s98
    %p104 = scmp.eq.s32.totalorder %s8, 0
    %p105 = por %p103, %p104
    %p106 = scmp.ne.s32.totalorder %s95, %s98
    %p107 = scmp.eq.s32.totalorder %s13, 1
    %p108 = por %p106, %p107
    %p109 = scmp.ne.s32.totalorder %s98, %s99
    %p110 = scmp.eq.s32.totalorder %s13, 0
    %p111 = por %p109, %p110
    %p112 = scmp.ne.s32.totalorder %s98, %s99
    %p113 = scmp.eq.s32.totalorder %s14, 1
    %p114 = por %p112, %p113
    %p116 = scmp.ne.s32.totalorder %s99, %s115
    %p117 = scmp.eq.s32.totalorder %s14, 0
    %p118 = por %p116, %p117
    %p119 = scmp.le.s32.totalorder 1, %s8
    %p120 = scmp.lt.s32.totalorder %s8, 3
    %p121 = pnand %p119, %p120
    %p122 = pneg %p121
    // Predicated region
    $region9: #{densenet_forward.22} parent=5 // pred_check
      _
    $region10: #{densenet_forward.22} parent=5 // pred_check_branch
      %124 = sbr.rel (%p121) target = $region12
    $region11: #{densenet_forward.22} parent=5 // pred_region
      %s125 = ssub.s32 %s8, 1
      // Predicated region
      $region13: #{densenet_forward.22} parent=11 // pred_check
        %p126 = pneg %p83
      $region14: #{densenet_forward.22} parent=11 // pred_check_branch
        %128 = sbr.rel (%p126) target = $region16
      $region15: #{densenet_forward.22} parent=11 // pred_region
        %s129 = smul.u32 16, %s20
        %p130 = scmp.lt.s32.totalorder %s129, 15
        %s131 = scalar_select %p130, %s129, 15
        %p132 = scmp.lt.s32.totalorder %s19, 0
        %s133 = scalar_select %p132, %s19, 0
        %s134 = sadd.s32 %s133, %s131
        %s135 = smul.addr %s134, 4
        %s136 = scalar_lea.vmem %s1, %s135
        %s137 = smul.u32 16, %s20
      $region16: #{densenet_forward.22} parent=11 // pred_fallthru
        _
    $region12: #{densenet_forward.22} parent=5 // pred_fallthru
      _
    %p138 = scmp.lt.s32.totalorder %s8, 2
    // Predicated region
    $region17: #{densenet_forward.22} parent=5 // pred_check
      %p139 = pneg %p138
    $region18: #{densenet_forward.22} parent=5 // pred_check_branch
      %141 = sbr.rel (%p139) target = $region20
    $region19: #{densenet_forward.22} parent=5 // pred_region
      // Predicated region
      $region21: #{densenet_forward.22} parent=19 // pred_check
        %p142 = pneg %p49
      $region22: #{densenet_forward.22} parent=19 // pred_check_branch
        %144 = sbr.rel (%p142) target = $region24
      $region23: #{densenet_forward.22} parent=19 // pred_region
        %s145 = smul.u32 32, %s15
        %p146 = scmp.lt.s32.totalorder %s145, 63
        %s147 = scalar_select %p146, %s145, 63
        %p148 = scmp.lt.s32.totalorder %s17, 0
        %s149 = scalar_select %p148, %s17, 0
        %s150 = sadd.s32 %s149, %s147
        %s151 = smul.addr %s150, 4
        %s152 = scalar_lea.vmem %s0, %s151
        %s153 = smul.u32 32, %s15
      $region24: #{densenet_forward.22} parent=19 // pred_fallthru
        _
    $region20: #{densenet_forward.22} parent=5 // pred_fallthru
      _
    %p154 = scmp.le.s32.totalorder 1, %s8
    %p155 = scmp.lt.s32.totalorder %s8, 3
    %p156 = pnand %p154, %p155
    %p157 = pneg %p156
    // Predicated region
    $region25: #{densenet_forward.22} parent=5 // pred_check
      _
    $region26: #{densenet_forward.22} parent=5 // pred_check_branch
      %159 = sbr.rel (%p156) target = $region28
    $region27: #{densenet_forward.22} parent=5 // pred_region
      %s160 = ssub.s32 %s8, 1
      %s161 = smul.u32 32, %s18
      %p162 = scmp.lt.s32.totalorder %s161, 63
      %s163 = scalar_select %p162, %s161, 63
      %p164 = scmp.lt.s32.totalorder %s20, 0
      %s165 = scalar_select %p164, %s20, 0
      %s166 = sadd.s32 %s165, %s163
      %s167 = smul.addr %s166, 4
      %s168 = scalar_lea.vmem %s0, %s167
      %p169 = pneg %p55
      %p170 = pneg %p52
      %s171 = smul.u32 16, %s20
      %p172 = scmp.lt.s32.totalorder %s171, 15
      %s173 = scalar_select %p172, %s171, 15
      %p174 = scmp.lt.s32.totalorder %s19, 0
      %s175 = scalar_select %p174, %s19, 0
      %s176 = sadd.s32 %s175, %s173
      %s177 = smul.addr %s176, 4
      %s178 = scalar_lea.vmem %s1, %s177
      %p179 = pneg %p83
      %p180 = pneg %p80
      %p181 = pneg %p111
      %p182 = pneg %p108
      %s183 = smul.u32 32, %s18
      %p184 = scmp.lt.s32.totalorder %s183, 63
      %s185 = scalar_select %p184, %s183, 63
      %p186 = scmp.lt.s32.totalorder %s19, 0
      %s187 = scalar_select %p186, %s19, 0
      %s188 = sadd.s32 %s187, %s185
      %s189 = smul.addr %s188, 4
      %s190 = scalar_lea.vmem %s2, %s189
      %s191 = smul.u32 32, %s18
      %p192 = scmp.lt.s32.totalorder %s191, 63
      %s193 = scalar_select %p192, %s191, 63
      %p194 = scmp.lt.s32.totalorder %s20, 0
      %s195 = scalar_select %p194, %s20, 0
      %s196 = sadd.s32 %s195, %s193
      %s197 = smul.addr %s196, 4
      %s198 = scalar_lea.vmem %s0, %s197
      %s199 = smul.u32 32, %s18
      %s200 = smul.u32 16, %s20
      %p201 = scmp.lt.s32.totalorder %s200, 15
      %s202 = scalar_select %p201, %s200, 15
      %p203 = scmp.lt.s32.totalorder %s19, 0
      %s204 = scalar_select %p203, %s19, 0
      %s205 = sadd.s32 %s204, %s202
      %s206 = smul.addr %s205, 4
      %s207 = scalar_lea.vmem %s1, %s206
      %s208 = smul.u32 16, %s20
      %s209 = smul.u32 32, %s18
      %p210 = scmp.lt.s32.totalorder %s209, 63
      %s211 = scalar_select %p210, %s209, 63
      %p212 = scmp.lt.s32.totalorder %s19, 0
      %s213 = scalar_select %p212, %s19, 0
      %s214 = sadd.s32 %s213, %s211
      %s215 = smul.addr %s214, 4
      %s216 = scalar_lea.vmem %s2, %s215
      %s217 = smul.u32 32, %s18
      %p218 = scmp.eq.s32.totalorder %s20, 0
      // Predicated region
      $region29: #{densenet_forward.22} parent=27 // pred_check
        %p219 = pneg %p218
      $region30: #{densenet_forward.22} parent=27 // pred_check_branch
        %221 = sbr.rel (%p219) target = $region32
      $region31: #{densenet_forward.22} parent=27 // pred_region
        %222 = vst [vmem:[#allocation2] sm:$0xff] 0.0
        %223 = vst [vmem:[#allocation2 + $0x8] sm:$0xff] 0.0
        %224 = vst [vmem:[#allocation2 + $0x10] sm:$0xff] 0.0
        %225 = vst [vmem:[#allocation2 + $0x18] sm:$0xff] 0.0
        %226 = vst [vmem:[#allocation2 + $0x20] sm:$0xff] 0.0
        %227 = vst [vmem:[#allocation2 + $0x28] sm:$0xff] 0.0
        %228 = vst [vmem:[#allocation2 + $0x30] sm:$0xff] 0.0
        %229 = vst [vmem:[#allocation2 + $0x38] sm:$0xff] 0.0
        %230 = vst [vmem:[#allocation2 + $0x40] sm:$0xff] 0.0
        %231 = vst [vmem:[#allocation2 + $0x48] sm:$0xff] 0.0
        %232 = vst [vmem:[#allocation2 + $0x50] sm:$0xff] 0.0
        %233 = vst [vmem:[#allocation2 + $0x58] sm:$0xff] 0.0
        %234 = vst [vmem:[#allocation2 + $0x60] sm:$0xff] 0.0
        %235 = vst [vmem:[#allocation2 + $0x68] sm:$0xff] 0.0
        %236 = vst [vmem:[#allocation2 + $0x70] sm:$0xff] 0.0
        %237 = vst [vmem:[#allocation2 + $0x78] sm:$0xff] 0.0
        %238 = vst [vmem:[#allocation2 + $0x80] sm:$0xff] 0.0
        %239 = vst [vmem:[#allocation2 + $0x88] sm:$0xff] 0.0
        %240 = vst [vmem:[#allocation2 + $0x90] sm:$0xff] 0.0
        %241 = vst [vmem:[#allocation2 + $0x98] sm:$0xff] 0.0
        %242 = vst [vmem:[#allocation2 + $0xa0] sm:$0xff] 0.0
        %243 = vst [vmem:[#allocation2 + $0xa8] sm:$0xff] 0.0
        %244 = vst [vmem:[#allocation2 + $0xb0] sm:$0xff] 0.0
        %245 = vst [vmem:[#allocation2 + $0xb8] sm:$0xff] 0.0
        %246 = vst [vmem:[#allocation2 + $0xc0] sm:$0xff] 0.0
        %247 = vst [vmem:[#allocation2 + $0xc8] sm:$0xff] 0.0
        %248 = vst [vmem:[#allocation2 + $0xd0] sm:$0xff] 0.0
        %249 = vst [vmem:[#allocation2 + $0xd8] sm:$0xff] 0.0
        %250 = vst [vmem:[#allocation2 + $0xe0] sm:$0xff] 0.0
        %251 = vst [vmem:[#allocation2 + $0xe8] sm:$0xff] 0.0
        %252 = vst [vmem:[#allocation2 + $0xf0] sm:$0xff] 0.0
        %253 = vst [vmem:[#allocation2 + $0xf8] sm:$0xff] 0.0
      $region32: #{densenet_forward.22} parent=27 // pred_fallthru
        _
      %v254 = vld [vmem:[#allocation2] sm:$0xff]
      %v255 = vld [vmem:[#allocation2 + $0x8] sm:$0xff]
      %v256 = vld [vmem:[#allocation2 + $0x10] sm:$0xff]
      %v257 = vld [vmem:[#allocation2 + $0x18] sm:$0xff]
      %v258 = vld [vmem:[#allocation2 + $0x20] sm:$0xff]
      %v259 = vld [vmem:[#allocation2 + $0x28] sm:$0xff]
      %v260 = vld [vmem:[#allocation2 + $0x30] sm:$0xff]
      %v261 = vld [vmem:[#allocation2 + $0x38] sm:$0xff]
      %v262 = vld [vmem:[#allocation2 + $0x40] sm:$0xff]
      %v263 = vld [vmem:[#allocation2 + $0x48] sm:$0xff]
      %v264 = vld [vmem:[#allocation2 + $0x50] sm:$0xff]
      %v265 = vld [vmem:[#allocation2 + $0x58] sm:$0xff]
      %v266 = vld [vmem:[#allocation2 + $0x60] sm:$0xff]
      %v267 = vld [vmem:[#allocation2 + $0x68] sm:$0xff]
      %v268 = vld [vmem:[#allocation2 + $0x70] sm:$0xff]
      %v269 = vld [vmem:[#allocation2 + $0x78] sm:$0xff]
      %v270 = vld [vmem:[#allocation2 + $0x80] sm:$0xff]
      %v271 = vld [vmem:[#allocation2 + $0x88] sm:$0xff]
      %v272 = vld [vmem:[#allocation2 + $0x90] sm:$0xff]
      %v273 = vld [vmem:[#allocation2 + $0x98] sm:$0xff]
      %v274 = vld [vmem:[#allocation2 + $0xa0] sm:$0xff]
      %v275 = vld [vmem:[#allocation2 + $0xa8] sm:$0xff]
      %v276 = vld [vmem:[#allocation2 + $0xb0] sm:$0xff]
      %v277 = vld [vmem:[#allocation2 + $0xb8] sm:$0xff]
      %v278 = vld [vmem:[#allocation2 + $0xc0] sm:$0xff]
      %v279 = vld [vmem:[#allocation2 + $0xc8] sm:$0xff]
      %v280 = vld [vmem:[#allocation2 + $0xd0] sm:$0xff]
      %v281 = vld [vmem:[#allocation2 + $0xd8] sm:$0xff]
      %v282 = vld [vmem:[#allocation2 + $0xe0] sm:$0xff]
      %v283 = vld [vmem:[#allocation2 + $0xe8] sm:$0xff]
      %v284 = vld [vmem:[#allocation2 + $0xf0] sm:$0xff]
      %v285 = vld [vmem:[#allocation2 + $0xf8] sm:$0xff]
      %v286 = vld [vmem:[%s198] sm:$0xf]
      %v287 = vld [vmem:[%s198 + $0x4] sm:$0xf]
      %v288 = vld [vmem:[%s198 + $0x8] sm:$0xf]
      %v289 = vld [vmem:[%s198 + $0xc] sm:$0xf]
      %v290 = vld [vmem:[%s198 + $0x10] sm:$0xf]
      %v291 = vld [vmem:[%s198 + $0x14] sm:$0xf]
      %v292 = vld [vmem:[%s198 + $0x18] sm:$0xf]
      %v293 = vld [vmem:[%s198 + $0x1c] sm:$0xf]
      %v294 = vld [vmem:[%s198 + $0x20] sm:$0xf]
      %v295 = vld [vmem:[%s198 + $0x24] sm:$0xf]
      %v296 = vld [vmem:[%s198 + $0x28] sm:$0xf]
      %v297 = vld [vmem:[%s198 + $0x2c] sm:$0xf]
      %v298 = vld [vmem:[%s198 + $0x30] sm:$0xf]
      %v299 = vld [vmem:[%s198 + $0x34] sm:$0xf]
      %v300 = vld [vmem:[%s198 + $0x38] sm:$0xf]
      %v301 = vld [vmem:[%s198 + $0x3c] sm:$0xf]
      %v302 = vld [vmem:[%s198 + $0x40] sm:$0xf]
      %v303 = vld [vmem:[%s198 + $0x44] sm:$0xf]
      %v304 = vld [vmem:[%s198 + $0x48] sm:$0xf]
      %v305 = vld [vmem:[%s198 + $0x4c] sm:$0xf]
      %v306 = vld [vmem:[%s198 + $0x50] sm:$0xf]
      %v307 = vld [vmem:[%s198 + $0x54] sm:$0xf]
      %v308 = vld [vmem:[%s198 + $0x58] sm:$0xf]
      %v309 = vld [vmem:[%s198 + $0x5c] sm:$0xf]
      %v310 = vld [vmem:[%s198 + $0x60] sm:$0xf]
      %v311 = vld [vmem:[%s198 + $0x64] sm:$0xf]
      %v312 = vld [vmem:[%s198 + $0x68] sm:$0xf]
      %v313 = vld [vmem:[%s198 + $0x6c] sm:$0xf]
      %v314 = vld [vmem:[%s198 + $0x70] sm:$0xf]
      %v315 = vld [vmem:[%s198 + $0x74] sm:$0xf]
      %v316 = vld [vmem:[%s198 + $0x78] sm:$0xf]
      %v317 = vld [vmem:[%s198 + $0x7c] sm:$0xf]
      %v318 = vld [vmem:[%s207] sm:$0xf]
      %v319 = vld [vmem:[%s207 + $0x4] sm:$0xf]
      %v320 = vld [vmem:[%s207 + $0x8] sm:$0xf]
      %v321 = vld [vmem:[%s207 + $0xc] sm:$0xf]
      %v322 = vld [vmem:[%s207 + $0x10] sm:$0xf]
      %v323 = vld [vmem:[%s207 + $0x14] sm:$0xf]
      %v324 = vld [vmem:[%s207 + $0x18] sm:$0xf]
      %v325 = vld [vmem:[%s207 + $0x1c] sm:$0xf]
      %v326 = vld [vmem:[%s207 + $0x20] sm:$0xf]
      %v327 = vld [vmem:[%s207 + $0x24] sm:$0xf]
      %v328 = vld [vmem:[%s207 + $0x28] sm:$0xf]
      %v329 = vld [vmem:[%s207 + $0x2c] sm:$0xf]
      %v330 = vld [vmem:[%s207 + $0x30] sm:$0xf]
      %v331 = vld [vmem:[%s207 + $0x34] sm:$0xf]
      %v332 = vld [vmem:[%s207 + $0x38] sm:$0xf]
      %v333 = vld [vmem:[%s207 + $0x3c] sm:$0xf]
      %v366 = vunpack.c.l.b16 %v286
      %v367 = vunpack.c.l.b16 %v287
      %v368 = vunpack.c.l.b16 %v288
      %v369 = vunpack.c.l.b16 %v289
      %v370 = vunpack.c.l.b16 %v290
      %v371 = vunpack.c.l.b16 %v291
      %v372 = vunpack.c.l.b16 %v292
      %v373 = vunpack.c.l.b16 %v293
      %v374 = vunpack.c.l.b16 %v294
      %v375 = vunpack.c.l.b16 %v295
      %v376 = vunpack.c.l.b16 %v296
      %v377 = vunpack.c.l.b16 %v297
      %v378 = vunpack.c.l.b16 %v298
      %v379 = vunpack.c.l.b16 %v299
      %v380 = vunpack.c.l.b16 %v300
      %v381 = vunpack.c.l.b16 %v301
      %v382 = vunpack.c.l.b16 %v302
      %v383 = vunpack.c.l.b16 %v303
      %v384 = vunpack.c.l.b16 %v304
      %v385 = vunpack.c.l.b16 %v305
      %v386 = vunpack.c.l.b16 %v306
      %v387 = vunpack.c.l.b16 %v307
      %v388 = vunpack.c.l.b16 %v308
      %v389 = vunpack.c.l.b16 %v309
      %v390 = vunpack.c.l.b16 %v310
      %v391 = vunpack.c.l.b16 %v311
      %v392 = vunpack.c.l.b16 %v312
      %v393 = vunpack.c.l.b16 %v313
      %v394 = vunpack.c.l.b16 %v314
      %v395 = vunpack.c.l.b16 %v315
      %v396 = vunpack.c.l.b16 %v316
      %v397 = vunpack.c.l.b16 %v317
      %v398 = vpack.c.b16 %v367, %v366
      %v399 = vpack.c.b16 %v369, %v368
      %v400 = vpack.c.b16 %v371, %v370
      %v401 = vpack.c.b16 %v373, %v372
      %v402 = vpack.c.b16 %v375, %v374
      %v403 = vpack.c.b16 %v377, %v376
      %v404 = vpack.c.b16 %v379, %v378
      %v405 = vpack.c.b16 %v381, %v380
      %v406 = vpack.c.b16 %v383, %v382
      %v407 = vpack.c.b16 %v385, %v384
      %v408 = vpack.c.b16 %v387, %v386
      %v409 = vpack.c.b16 %v389, %v388
      %v410 = vpack.c.b16 %v391, %v390
      %v411 = vpack.c.b16 %v393, %v392
      %v412 = vpack.c.b16 %v395, %v394
      %v413 = vpack.c.b16 %v397, %v396
      %v446 = vunpack.c.l.b16 %v318
      %v447 = vunpack.c.l.b16 %v319
      %v448 = vunpack.c.l.b16 %v320
      %v449 = vunpack.c.l.b16 %v321
      %v450 = vunpack.c.l.b16 %v322
      %v451 = vunpack.c.l.b16 %v323
      %v452 = vunpack.c.l.b16 %v324
      %v453 = vunpack.c.l.b16 %v325
      %v454 = vunpack.c.l.b16 %v326
      %v455 = vunpack.c.l.b16 %v327
      %v456 = vunpack.c.l.b16 %v328
      %v457 = vunpack.c.l.b16 %v329
      %v458 = vunpack.c.l.b16 %v330
      %v459 = vunpack.c.l.b16 %v331
      %v460 = vunpack.c.l.b16 %v332
      %v461 = vunpack.c.l.b16 %v333
      %v462 = vpack.c.b16 %v447, %v446
      %v463 = vpack.c.b16 %v449, %v448
      %v464 = vpack.c.b16 %v451, %v450
      %v465 = vpack.c.b16 %v453, %v452
      %v466 = vpack.c.b16 %v455, %v454
      %v467 = vpack.c.b16 %v457, %v456
      %v468 = vpack.c.b16 %v459, %v458
      %v469 = vpack.c.b16 %v461, %v460
      %478 = vmatpush.bf16.msra.mxu0 %v469
      %479 = vmatpush.bf16.msra.mxu0 %v468
      %480 = vmatpush.bf16.msra.mxu0 %v467
      %481 = vmatpush.bf16.msra.mxu0 %v466
      %482 = vmatpush.bf16.msra.mxu0 %v465
      %483 = vmatpush.bf16.msra.mxu0 %v464
      %484 = vmatpush.bf16.msra.mxu0 %v463
      %485 = vmatpush.bf16.msra.mxu0 %v462
      %486 = vmatmul.bf16.gmra.mxu0 %v398
      %v487 = vpop.f32.mrf.mxu0
      %v488 = vadd.f32 0.0, %v487
      %v489 = vpop.f32.mrf.mxu0
      %v490 = vadd.f32 0.0, %v489
      %491 = vmatmul.bf16.gmra.mxu0 %v399
      %v492 = vpop.f32.mrf.mxu0
      %v493 = vadd.f32 0.0, %v492
      %v494 = vpop.f32.mrf.mxu0
      %v495 = vadd.f32 0.0, %v494
      %496 = vmatmul.bf16.gmra.mxu0 %v400
      %v497 = vpop.f32.mrf.mxu0
      %v498 = vadd.f32 0.0, %v497
      %v499 = vpop.f32.mrf.mxu0
      %v500 = vadd.f32 0.0, %v499
      %501 = vmatmul.bf16.gmra.mxu0 %v401
      %v502 = vpop.f32.mrf.mxu0
      %v503 = vadd.f32 0.0, %v502
      %v504 = vpop.f32.mrf.mxu0
      %v505 = vadd.f32 0.0, %v504
      %506 = vmatmul.bf16.gmra.mxu0 %v402
      %v507 = vpop.f32.mrf.mxu0
      %v508 = vadd.f32 0.0, %v507
      %v509 = vpop.f32.mrf.mxu0
      %v510 = vadd.f32 0.0, %v509
      %511 = vmatmul.bf16.gmra.mxu0 %v403
      %v512 = vpop.f32.mrf.mxu0
      %v513 = vadd.f32 0.0, %v512
      %v514 = vpop.f32.mrf.mxu0
      %v515 = vadd.f32 0.0, %v514
      %516 = vmatmul.bf16.gmra.mxu0 %v404
      %v517 = vpop.f32.mrf.mxu0
      %v518 = vadd.f32 0.0, %v517
      %v519 = vpop.f32.mrf.mxu0
      %v520 = vadd.f32 0.0, %v519
      %521 = vmatmul.bf16.gmra.mxu0 %v405
      %v522 = vpop.f32.mrf.mxu0
      %v523 = vadd.f32 0.0, %v522
      %v524 = vpop.f32.mrf.mxu0
      %v525 = vadd.f32 0.0, %v524
      %526 = vmatmul.bf16.gmra.mxu0 %v406
      %v527 = vpop.f32.mrf.mxu0
      %v528 = vadd.f32 0.0, %v527
      %v529 = vpop.f32.mrf.mxu0
      %v530 = vadd.f32 0.0, %v529
      %531 = vmatmul.bf16.gmra.mxu0 %v407
      %v532 = vpop.f32.mrf.mxu0
      %v533 = vadd.f32 0.0, %v532
      %v534 = vpop.f32.mrf.mxu0
      %v535 = vadd.f32 0.0, %v534
      %536 = vmatmul.bf16.gmra.mxu0 %v408
      %v537 = vpop.f32.mrf.mxu0
      %v538 = vadd.f32 0.0, %v537
      %v539 = vpop.f32.mrf.mxu0
      %v540 = vadd.f32 0.0, %v539
      %541 = vmatmul.bf16.gmra.mxu0 %v409
      %v542 = vpop.f32.mrf.mxu0
      %v543 = vadd.f32 0.0, %v542
      %v544 = vpop.f32.mrf.mxu0
      %v545 = vadd.f32 0.0, %v544
      %546 = vmatmul.bf16.gmra.mxu0 %v410
      %v547 = vpop.f32.mrf.mxu0
      %v548 = vadd.f32 0.0, %v547
      %v549 = vpop.f32.mrf.mxu0
      %v550 = vadd.f32 0.0, %v549
      %551 = vmatmul.bf16.gmra.mxu0 %v411
      %v552 = vpop.f32.mrf.mxu0
      %v553 = vadd.f32 0.0, %v552
      %v554 = vpop.f32.mrf.mxu0
      %v555 = vadd.f32 0.0, %v554
      %556 = vmatmul.bf16.gmra.mxu0 %v412
      %v557 = vpop.f32.mrf.mxu0
      %v558 = vadd.f32 0.0, %v557
      %v559 = vpop.f32.mrf.mxu0
      %v560 = vadd.f32 0.0, %v559
      %561 = vmatmul.bf16.gmra.mxu0 %v413
      %v562 = vpop.f32.mrf.mxu0
      %v563 = vadd.f32 0.0, %v562
      %v564 = vpop.f32.mrf.mxu0
      %v565 = vadd.f32 0.0, %v564
      %566 = vdwg.mxu0
      %v567 = vadd.f32 %v254, %v488
      %v568 = vadd.f32 %v255, %v490
      %v569 = vadd.f32 %v256, %v493
      %v570 = vadd.f32 %v257, %v495
      %v571 = vadd.f32 %v258, %v498
      %v572 = vadd.f32 %v259, %v500
      %v573 = vadd.f32 %v260, %v503
      %v574 = vadd.f32 %v261, %v505
      %v575 = vadd.f32 %v262, %v508
      %v576 = vadd.f32 %v263, %v510
      %v577 = vadd.f32 %v264, %v513
      %v578 = vadd.f32 %v265, %v515
      %v579 = vadd.f32 %v266, %v518
      %v580 = vadd.f32 %v267, %v520
      %v581 = vadd.f32 %v268, %v523
      %v582 = vadd.f32 %v269, %v525
      %v583 = vadd.f32 %v270, %v528
      %v584 = vadd.f32 %v271, %v530
      %v585 = vadd.f32 %v272, %v533
      %v586 = vadd.f32 %v273, %v535
      %v587 = vadd.f32 %v274, %v538
      %v588 = vadd.f32 %v275, %v540
      %v589 = vadd.f32 %v276, %v543
      %v590 = vadd.f32 %v277, %v545
      %v591 = vadd.f32 %v278, %v548
      %v592 = vadd.f32 %v279, %v550
      %v593 = vadd.f32 %v280, %v553
      %v594 = vadd.f32 %v281, %v555
      %v595 = vadd.f32 %v282, %v558
      %v596 = vadd.f32 %v283, %v560
      %v597 = vadd.f32 %v284, %v563
      %v598 = vadd.f32 %v285, %v565
      %599 = vst [vmem:[#allocation2] sm:$0xff] %v567
      %600 = vst [vmem:[#allocation2 + $0x8] sm:$0xff] %v568
      %601 = vst [vmem:[#allocation2 + $0x10] sm:$0xff] %v569
      %602 = vst [vmem:[#allocation2 + $0x18] sm:$0xff] %v570
      %603 = vst [vmem:[#allocation2 + $0x20] sm:$0xff] %v571
      %604 = vst [vmem:[#allocation2 + $0x28] sm:$0xff] %v572
      %605 = vst [vmem:[#allocation2 + $0x30] sm:$0xff] %v573
      %606 = vst [vmem:[#allocation2 + $0x38] sm:$0xff] %v574
      %607 = vst [vmem:[#allocation2 + $0x40] sm:$0xff] %v575
      %608 = vst [vmem:[#allocation2 + $0x48] sm:$0xff] %v576
      %609 = vst [vmem:[#allocation2 + $0x50] sm:$0xff] %v577
      %610 = vst [vmem:[#allocation2 + $0x58] sm:$0xff] %v578
      %611 = vst [vmem:[#allocation2 + $0x60] sm:$0xff] %v579
      %612 = vst [vmem:[#allocation2 + $0x68] sm:$0xff] %v580
      %613 = vst [vmem:[#allocation2 + $0x70] sm:$0xff] %v581
      %614 = vst [vmem:[#allocation2 + $0x78] sm:$0xff] %v582
      %615 = vst [vmem:[#allocation2 + $0x80] sm:$0xff] %v583
      %616 = vst [vmem:[#allocation2 + $0x88] sm:$0xff] %v584
      %617 = vst [vmem:[#allocation2 + $0x90] sm:$0xff] %v585
      %618 = vst [vmem:[#allocation2 + $0x98] sm:$0xff] %v586
      %619 = vst [vmem:[#allocation2 + $0xa0] sm:$0xff] %v587
      %620 = vst [vmem:[#allocation2 + $0xa8] sm:$0xff] %v588
      %621 = vst [vmem:[#allocation2 + $0xb0] sm:$0xff] %v589
      %622 = vst [vmem:[#allocation2 + $0xb8] sm:$0xff] %v590
      %623 = vst [vmem:[#allocation2 + $0xc0] sm:$0xff] %v591
      %624 = vst [vmem:[#allocation2 + $0xc8] sm:$0xff] %v592
      %625 = vst [vmem:[#allocation2 + $0xd0] sm:$0xff] %v593
      %626 = vst [vmem:[#allocation2 + $0xd8] sm:$0xff] %v594
      %627 = vst [vmem:[#allocation2 + $0xe0] sm:$0xff] %v595
      %628 = vst [vmem:[#allocation2 + $0xe8] sm:$0xff] %v596
      %629 = vst [vmem:[#allocation2 + $0xf0] sm:$0xff] %v597
      %630 = vst [vmem:[#allocation2 + $0xf8] sm:$0xff] %v598
      // Predicated region
      $region33: #{densenet_forward.22} parent=27 // pred_check
        %p631 = pneg %p218
      $region34: #{densenet_forward.22} parent=27 // pred_check_branch
        %633 = sbr.rel (%p631) target = $region36
      $region35: #{densenet_forward.22} parent=27 // pred_region
        %v634 = vld [vmem:[#allocation2] sm:$0xff]
        %v635 = vld [vmem:[#allocation2 + $0x8] sm:$0xff]
        %v636 = vld [vmem:[#allocation2 + $0x10] sm:$0xff]
        %v637 = vld [vmem:[#allocation2 + $0x18] sm:$0xff]
        %v638 = vld [vmem:[#allocation2 + $0x20] sm:$0xff]
        %v639 = vld [vmem:[#allocation2 + $0x28] sm:$0xff]
        %v640 = vld [vmem:[#allocation2 + $0x30] sm:$0xff]
        %v641 = vld [vmem:[#allocation2 + $0x38] sm:$0xff]
        %v642 = vld [vmem:[#allocation2 + $0x40] sm:$0xff]
        %v643 = vld [vmem:[#allocation2 + $0x48] sm:$0xff]
        %v644 = vld [vmem:[#allocation2 + $0x50] sm:$0xff]
        %v645 = vld [vmem:[#allocation2 + $0x58] sm:$0xff]
        %v646 = vld [vmem:[#allocation2 + $0x60] sm:$0xff]
        %v647 = vld [vmem:[#allocation2 + $0x68] sm:$0xff]
        %v648 = vld [vmem:[#allocation2 + $0x70] sm:$0xff]
        %v649 = vld [vmem:[#allocation2 + $0x78] sm:$0xff]
        %v650 = vld [vmem:[#allocation2 + $0x80] sm:$0xff]
        %v651 = vld [vmem:[#allocation2 + $0x88] sm:$0xff]
        %v652 = vld [vmem:[#allocation2 + $0x90] sm:$0xff]
        %v653 = vld [vmem:[#allocation2 + $0x98] sm:$0xff]
        %v654 = vld [vmem:[#allocation2 + $0xa0] sm:$0xff]
        %v655 = vld [vmem:[#allocation2 + $0xa8] sm:$0xff]
        %v656 = vld [vmem:[#allocation2 + $0xb0] sm:$0xff]
        %v657 = vld [vmem:[#allocation2 + $0xb8] sm:$0xff]
        %v658 = vld [vmem:[#allocation2 + $0xc0] sm:$0xff]
        %v659 = vld [vmem:[#allocation2 + $0xc8] sm:$0xff]
        %v660 = vld [vmem:[#allocation2 + $0xd0] sm:$0xff]
        %v661 = vld [vmem:[#allocation2 + $0xd8] sm:$0xff]
        %v662 = vld [vmem:[#allocation2 + $0xe0] sm:$0xff]
        %v663 = vld [vmem:[#allocation2 + $0xe8] sm:$0xff]
        %v664 = vld [vmem:[#allocation2 + $0xf0] sm:$0xff]
        %v665 = vld [vmem:[#allocation2 + $0xf8] sm:$0xff]
        %v666 = vpack.c.bf16 %v634, %v634
        %v667 = vpack.c.bf16 %v635, %v635
        %v668 = vpack.c.bf16 %v636, %v636
        %v669 = vpack.c.bf16 %v637, %v637
        %v670 = vpack.c.bf16 %v638, %v638
        %v671 = vpack.c.bf16 %v639, %v639
        %v672 = vpack.c.bf16 %v640, %v640
        %v673 = vpack.c.bf16 %v641, %v641
        %v674 = vpack.c.bf16 %v642, %v642
        %v675 = vpack.c.bf16 %v643, %v643
        %v676 = vpack.c.bf16 %v644, %v644
        %v677 = vpack.c.bf16 %v645, %v645
        %v678 = vpack.c.bf16 %v646, %v646
        %v679 = vpack.c.bf16 %v647, %v647
        %v680 = vpack.c.bf16 %v648, %v648
        %v681 = vpack.c.bf16 %v649, %v649
        %v682 = vpack.c.bf16 %v650, %v650
        %v683 = vpack.c.bf16 %v651, %v651
        %v684 = vpack.c.bf16 %v652, %v652
        %v685 = vpack.c.bf16 %v653, %v653
        %v686 = vpack.c.bf16 %v654, %v654
        %v687 = vpack.c.bf16 %v655, %v655
        %v688 = vpack.c.bf16 %v656, %v656
        %v689 = vpack.c.bf16 %v657, %v657
        %v690 = vpack.c.bf16 %v658, %v658
        %v691 = vpack.c.bf16 %v659, %v659
        %v692 = vpack.c.bf16 %v660, %v660
        %v693 = vpack.c.bf16 %v661, %v661
        %v694 = vpack.c.bf16 %v662, %v662
        %v695 = vpack.c.bf16 %v663, %v663
        %v696 = vpack.c.bf16 %v664, %v664
        %v697 = vpack.c.bf16 %v665, %v665
        %698 = vst [vmem:[%s216] sm:$0xf] %v666
        %699 = vst [vmem:[%s216 + $0x4] sm:$0xf] %v667
        %700 = vst [vmem:[%s216 + $0x8] sm:$0xf] %v668
        %701 = vst [vmem:[%s216 + $0xc] sm:$0xf] %v669
        %702 = vst [vmem:[%s216 + $0x10] sm:$0xf] %v670
        %703 = vst [vmem:[%s216 + $0x14] sm:$0xf] %v671
        %704 = vst [vmem:[%s216 + $0x18] sm:$0xf] %v672
        %705 = vst [vmem:[%s216 + $0x1c] sm:$0xf] %v673
        %706 = vst [vmem:[%s216 + $0x20] sm:$0xf] %v674
        %707 = vst [vmem:[%s216 + $0x24] sm:$0xf] %v675
        %708 = vst [vmem:[%s216 + $0x28] sm:$0xf] %v676
        %709 = vst [vmem:[%s216 + $0x2c] sm:$0xf] %v677
        %710 = vst [vmem:[%s216 + $0x30] sm:$0xf] %v678
        %711 = vst [vmem:[%s216 + $0x34] sm:$0xf] %v679
        %712 = vst [vmem:[%s216 + $0x38] sm:$0xf] %v680
        %713 = vst [vmem:[%s216 + $0x3c] sm:$0xf] %v681
        %714 = vst [vmem:[%s216 + $0x40] sm:$0xf] %v682
        %715 = vst [vmem:[%s216 + $0x44] sm:$0xf] %v683
        %716 = vst [vmem:[%s216 + $0x48] sm:$0xf] %v684
        %717 = vst [vmem:[%s216 + $0x4c] sm:$0xf] %v685
        %718 = vst [vmem:[%s216 + $0x50] sm:$0xf] %v686
        %719 = vst [vmem:[%s216 + $0x54] sm:$0xf] %v687
        %720 = vst [vmem:[%s216 + $0x58] sm:$0xf] %v688
        %721 = vst [vmem:[%s216 + $0x5c] sm:$0xf] %v689
        %722 = vst [vmem:[%s216 + $0x60] sm:$0xf] %v690
        %723 = vst [vmem:[%s216 + $0x64] sm:$0xf] %v691
        %724 = vst [vmem:[%s216 + $0x68] sm:$0xf] %v692
        %725 = vst [vmem:[%s216 + $0x6c] sm:$0xf] %v693
        %726 = vst [vmem:[%s216 + $0x70] sm:$0xf] %v694
        %727 = vst [vmem:[%s216 + $0x74] sm:$0xf] %v695
        %728 = vst [vmem:[%s216 + $0x78] sm:$0xf] %v696
        %729 = vst [vmem:[%s216 + $0x7c] sm:$0xf] %v697
      $region36: #{densenet_forward.22} parent=27 // pred_fallthru
        _
      %s730 = smul.u32 32, %s18
      %p731 = scmp.lt.s32.totalorder %s730, 63
      %s732 = scalar_select %p731, %s730, 63
      %p733 = scmp.lt.s32.totalorder %s19, 0
      %s734 = scalar_select %p733, %s19, 0
      %s735 = sadd.s32 %s734, %s732
      %s736 = smul.addr %s735, 4
      %s737 = scalar_lea.vmem %s2, %s736
      // Predicated region
      $region37: #{densenet_forward.22} parent=27 // pred_check
        %p738 = pneg %p108
      $region38: #{densenet_forward.22} parent=27 // pred_check_branch
        %740 = sbr.rel (%p738) target = $region40
      $region39: #{densenet_forward.22} parent=27 // pred_region
        %s741 = smul.u32 32, %s18
      $region40: #{densenet_forward.22} parent=27 // pred_fallthru
        _
    $region28: #{densenet_forward.22} parent=5 // pred_fallthru
      _
    %p742 = scmp.le.s32.totalorder 2, %s8
    // Predicated region
    $region41: #{densenet_forward.22} parent=5 // pred_check
      %p743 = pneg %p742
    $region42: #{densenet_forward.22} parent=5 // pred_check_branch
      %745 = sbr.rel (%p743) target = $region44
    $region43: #{densenet_forward.22} parent=5 // pred_region
      %s746 = ssub.s32 %s8, 2
      // Predicated region
      $region45: #{densenet_forward.22} parent=43 // pred_check
        %p747 = pneg %p114
      $region46: #{densenet_forward.22} parent=43 // pred_check_branch
        %749 = sbr.rel (%p747) target = $region48
      $region47: #{densenet_forward.22} parent=43 // pred_region
        %s750 = smul.u32 32, %s21
        %p751 = scmp.lt.s32.totalorder %s750, 63
        %s752 = scalar_select %p751, %s750, 63
        %p753 = scmp.lt.s32.totalorder %s22, 0
        %s754 = scalar_select %p753, %s22, 0
        %s755 = sadd.s32 %s754, %s752
        %s756 = smul.addr %s755, 4
        %s757 = scalar_lea.vmem %s2, %s756
      $region48: #{densenet_forward.22} parent=43 // pred_fallthru
        _
    $region44: #{densenet_forward.22} parent=5 // pred_fallthru
      _
  $region6: #{densenet_forward.22} parent=0 // loop_footer
    %s12 = sadd.s32 1, %s8
  $region7: #{densenet_forward.22} parent=0 // loop_footer_branch
    %7 = sbr.rel target = $region3
  $region8: #{densenet_forward.22} parent=0 // loop_exit
    _

// kernel: densenet_forward.24
$region0: #{densenet_forward.24}
  #allocation0 [shape = 'u32[]', space=smem, size = 0x4, offset = 0x4, fixed_abs, tag = 'smem constant byte address 0x4 - core index']
  #allocation1 [shape = 'u32[72,128]{1,0:T(1,128)}', space=vmem, size = 0x9000, scoped, tag = 'internal scratch']
  #allocation2 [shape = 'f32[128,128]{1,0:T(8,128)}', space=vmem, size = 0x10000, scoped, tag = 'scratch operand']
  %s0 = inlined_call_operand.vmem [shape: bf16[128,128], index: 0, kind: input, shape index: {}]
  %s1 = inlined_call_operand.vmem [shape: f32[1,128], index: 1, kind: input, shape index: {}]
  %s2 = inlined_call_operand.vmem [shape: f32[1,128], index: 2, kind: input, shape index: {}]
  %s3 = inlined_call_operand.vmem [shape: bf16[128,128], index: 3, kind: input, shape index: {}]
  %s4 = inlined_call_operand.vmem [shape: bf16[128,128], index: 4, kind: output, shape index: {}]
  %s5 = sld [smem:[#allocation0]]
  $region34: #{densenet_forward.24} parent=0
    _
  %s7 = ssub.s32 1, %s5
  %s8 = scalar_select 0, %s7, %s5
  // Predicated region
  $region2: #{densenet_forward.24} parent=0 // pred_check
    _
  $region3: #{densenet_forward.24} parent=0 // pred_check_branch
    %10 = sbr.rel (0) target = $region5
  $region4: #{densenet_forward.24} parent=0 // pred_region
    _
  $region5: #{densenet_forward.24} parent=0 // pred_fallthru
    _
  // Predicated region
  $region6: #{densenet_forward.24} parent=0 // pred_check
    _
  $region7: #{densenet_forward.24} parent=0 // pred_check_branch
    %12 = sbr.rel (0) target = $region9
  $region8: #{densenet_forward.24} parent=0 // pred_region
    _
  $region9: #{densenet_forward.24} parent=0 // pred_fallthru
    _
  // Predicated region
  $region10: #{densenet_forward.24} parent=0 // pred_check
    _
  $region11: #{densenet_forward.24} parent=0 // pred_check_branch
    %14 = sbr.rel (0) target = $region13
  $region12: #{densenet_forward.24} parent=0 // pred_region
    _
  $region13: #{densenet_forward.24} parent=0 // pred_fallthru
    _
  // Predicated region
  $region14: #{densenet_forward.24} parent=0 // pred_check
    _
  $region15: #{densenet_forward.24} parent=0 // pred_check_branch
    %16 = sbr.rel (0) target = $region17
  $region16: #{densenet_forward.24} parent=0 // pred_region
    _
  $region17: #{densenet_forward.24} parent=0 // pred_fallthru
    _
  %p17 = scmp.eq.s32.totalorder 0, 0
  // Predicated region
  $region18: #{densenet_forward.24} parent=0 // pred_check
    %p18 = pneg %p17
  $region19: #{densenet_forward.24} parent=0 // pred_check_branch
    %20 = sbr.rel (%p18) target = $region21
  $region20: #{densenet_forward.24} parent=0 // pred_region
    %21 = vst [vmem:[#allocation2] sm:$0xff] 0.0
    %22 = vst [vmem:[#allocation2 + $0x8] sm:$0xff] 0.0
    %23 = vst [vmem:[#allocation2 + $0x10] sm:$0xff] 0.0
    %24 = vst [vmem:[#allocation2 + $0x18] sm:$0xff] 0.0
    %25 = vst [vmem:[#allocation2 + $0x20] sm:$0xff] 0.0
    %26 = vst [vmem:[#allocation2 + $0x28] sm:$0xff] 0.0
    %27 = vst [vmem:[#allocation2 + $0x30] sm:$0xff] 0.0
    %28 = vst [vmem:[#allocation2 + $0x38] sm:$0xff] 0.0
    %29 = vst [vmem:[#allocation2 + $0x40] sm:$0xff] 0.0
    %30 = vst [vmem:[#allocation2 + $0x48] sm:$0xff] 0.0
    %31 = vst [vmem:[#allocation2 + $0x50] sm:$0xff] 0.0
    %32 = vst [vmem:[#allocation2 + $0x58] sm:$0xff] 0.0
    %33 = vst [vmem:[#allocation2 + $0x60] sm:$0xff] 0.0
    %34 = vst [vmem:[#allocation2 + $0x68] sm:$0xff] 0.0
    %35 = vst [vmem:[#allocation2 + $0x70] sm:$0xff] 0.0
    %36 = vst [vmem:[#allocation2 + $0x78] sm:$0xff] 0.0
  $region21: #{densenet_forward.24} parent=0 // pred_fallthru
    _
  %v37 = vld [vmem:[%s0] sm:$0xf]
  %v38 = vld [vmem:[%s0 + $0x4] sm:$0xf]
  %v39 = vld [vmem:[%s0 + $0x8] sm:$0xf]
  %v40 = vld [vmem:[%s0 + $0xc] sm:$0xf]
  %v41 = vld [vmem:[%s0 + $0x10] sm:$0xf]
  %v42 = vld [vmem:[%s0 + $0x14] sm:$0xf]
  %v43 = vld [vmem:[%s0 + $0x18] sm:$0xf]
  %v44 = vld [vmem:[%s0 + $0x1c] sm:$0xf]
  %v45 = vld [vmem:[%s0 + $0x20] sm:$0xf]
  %v46 = vld [vmem:[%s0 + $0x24] sm:$0xf]
  %v47 = vld [vmem:[%s0 + $0x28] sm:$0xf]
  %v48 = vld [vmem:[%s0 + $0x2c] sm:$0xf]
  %v49 = vld [vmem:[%s0 + $0x30] sm:$0xf]
  %v50 = vld [vmem:[%s0 + $0x34] sm:$0xf]
  %v51 = vld [vmem:[%s0 + $0x38] sm:$0xf]
  %v52 = vld [vmem:[%s0 + $0x3c] sm:$0xf]
  %v53 = vunpack.c.l.bf16 %v37
  %v54 = vunpack.c.l.bf16 %v38
  %v55 = vunpack.c.l.bf16 %v39
  %v56 = vunpack.c.l.bf16 %v40
  %v57 = vunpack.c.l.bf16 %v41
  %v58 = vunpack.c.l.bf16 %v42
  %v59 = vunpack.c.l.bf16 %v43
  %v60 = vunpack.c.l.bf16 %v44
  %v61 = vunpack.c.l.bf16 %v45
  %v62 = vunpack.c.l.bf16 %v46
  %v63 = vunpack.c.l.bf16 %v47
  %v64 = vunpack.c.l.bf16 %v48
  %v65 = vunpack.c.l.bf16 %v49
  %v66 = vunpack.c.l.bf16 %v50
  %v67 = vunpack.c.l.bf16 %v51
  %v68 = vunpack.c.l.bf16 %v52
  %v69 = vld [vmem:[%s1] sm:$0x1]
  %v71 = vperm.slane %v69, 0
  %v73 = vmul.f32 %v53, %v71
  %v74 = vmul.f32 %v54, %v71
  %v75 = vmul.f32 %v55, %v71
  %v76 = vmul.f32 %v56, %v71
  %v77 = vmul.f32 %v57, %v71
  %v78 = vmul.f32 %v58, %v71
  %v79 = vmul.f32 %v59, %v71
  %v80 = vmul.f32 %v60, %v71
  %v81 = vmul.f32 %v61, %v71
  %v82 = vmul.f32 %v62, %v71
  %v83 = vmul.f32 %v63, %v71
  %v84 = vmul.f32 %v64, %v71
  %v85 = vmul.f32 %v65, %v71
  %v86 = vmul.f32 %v66, %v71
  %v87 = vmul.f32 %v67, %v71
  %v88 = vmul.f32 %v68, %v71
  %v89 = vld [vmem:[%s2] sm:$0x1]
  %v91 = vperm.slane %v89, 0
  %v93 = vadd.f32 %v73, %v91
  %v94 = vadd.f32 %v74, %v91
  %v95 = vadd.f32 %v75, %v91
  %v96 = vadd.f32 %v76, %v91
  %v97 = vadd.f32 %v77, %v91
  %v98 = vadd.f32 %v78, %v91
  %v99 = vadd.f32 %v79, %v91
  %v100 = vadd.f32 %v80, %v91
  %v101 = vadd.f32 %v81, %v91
  %v102 = vadd.f32 %v82, %v91
  %v103 = vadd.f32 %v83, %v91
  %v104 = vadd.f32 %v84, %v91
  %v105 = vadd.f32 %v85, %v91
  %v106 = vadd.f32 %v86, %v91
  %v107 = vadd.f32 %v87, %v91
  %v108 = vadd.f32 %v88, %v91
  %v109 = vmax.f32 %v93, 0.0
  %v110 = vmax.f32 %v94, 0.0
  %v111 = vmax.f32 %v95, 0.0
  %v112 = vmax.f32 %v96, 0.0
  %v113 = vmax.f32 %v97, 0.0
  %v114 = vmax.f32 %v98, 0.0
  %v115 = vmax.f32 %v99, 0.0
  %v116 = vmax.f32 %v100, 0.0
  %v117 = vmax.f32 %v101, 0.0
  %v118 = vmax.f32 %v102, 0.0
  %v119 = vmax.f32 %v103, 0.0
  %v120 = vmax.f32 %v104, 0.0
  %v121 = vmax.f32 %v105, 0.0
  %v122 = vmax.f32 %v106, 0.0
  %v123 = vmax.f32 %v107, 0.0
  %v124 = vmax.f32 %v108, 0.0
  %v125 = vpack.c.bf16 %v110, %v109
  %v126 = vpack.c.bf16 %v112, %v111
  %v127 = vpack.c.bf16 %v114, %v113
  %v128 = vpack.c.bf16 %v116, %v115
  %v129 = vpack.c.bf16 %v118, %v117
  %v130 = vpack.c.bf16 %v120, %v119
  %v131 = vpack.c.bf16 %v122, %v121
  %v132 = vpack.c.bf16 %v124, %v123
  %v133 = vld [vmem:[#allocation2] sm:$0xff]
  %v134 = vld [vmem:[#allocation2 + $0x8] sm:$0xff]
  %v135 = vld [vmem:[#allocation2 + $0x10] sm:$0xff]
  %v136 = vld [vmem:[#allocation2 + $0x18] sm:$0xff]
  %v137 = vld [vmem:[#allocation2 + $0x20] sm:$0xff]
  %v138 = vld [vmem:[#allocation2 + $0x28] sm:$0xff]
  %v139 = vld [vmem:[#allocation2 + $0x30] sm:$0xff]
  %v140 = vld [vmem:[#allocation2 + $0x38] sm:$0xff]
  %v141 = vld [vmem:[#allocation2 + $0x40] sm:$0xff]
  %v142 = vld [vmem:[#allocation2 + $0x48] sm:$0xff]
  %v143 = vld [vmem:[#allocation2 + $0x50] sm:$0xff]
  %v144 = vld [vmem:[#allocation2 + $0x58] sm:$0xff]
  %v145 = vld [vmem:[#allocation2 + $0x60] sm:$0xff]
  %v146 = vld [vmem:[#allocation2 + $0x68] sm:$0xff]
  %v147 = vld [vmem:[#allocation2 + $0x70] sm:$0xff]
  %v148 = vld [vmem:[#allocation2 + $0x78] sm:$0xff]
  %v149 = vld [vmem:[%s3] sm:$0xf]
  %v150 = vld [vmem:[%s3 + $0x4] sm:$0xf]
  %v151 = vld [vmem:[%s3 + $0x8] sm:$0xf]
  %v152 = vld [vmem:[%s3 + $0xc] sm:$0xf]
  %v153 = vld [vmem:[%s3 + $0x10] sm:$0xf]
  %v154 = vld [vmem:[%s3 + $0x14] sm:$0xf]
  %v155 = vld [vmem:[%s3 + $0x18] sm:$0xf]
  %v156 = vld [vmem:[%s3 + $0x1c] sm:$0xf]
  %v157 = vld [vmem:[%s3 + $0x20] sm:$0xf]
  %v158 = vld [vmem:[%s3 + $0x24] sm:$0xf]
  %v159 = vld [vmem:[%s3 + $0x28] sm:$0xf]
  %v160 = vld [vmem:[%s3 + $0x2c] sm:$0xf]
  %v161 = vld [vmem:[%s3 + $0x30] sm:$0xf]
  %v162 = vld [vmem:[%s3 + $0x34] sm:$0xf]
  %v163 = vld [vmem:[%s3 + $0x38] sm:$0xf]
  %v164 = vld [vmem:[%s3 + $0x3c] sm:$0xf]
  %v181 = vunpack.c.l.b16 %v149
  %v182 = vunpack.c.l.b16 %v150
  %v183 = vunpack.c.l.b16 %v151
  %v184 = vunpack.c.l.b16 %v152
  %v185 = vunpack.c.l.b16 %v153
  %v186 = vunpack.c.l.b16 %v154
  %v187 = vunpack.c.l.b16 %v155
  %v188 = vunpack.c.l.b16 %v156
  %v189 = vunpack.c.l.b16 %v157
  %v190 = vunpack.c.l.b16 %v158
  %v191 = vunpack.c.l.b16 %v159
  %v192 = vunpack.c.l.b16 %v160
  %v193 = vunpack.c.l.b16 %v161
  %v194 = vunpack.c.l.b16 %v162
  %v195 = vunpack.c.l.b16 %v163
  %v196 = vunpack.c.l.b16 %v164
  %v197 = vpack.c.b16 %v182, %v181
  %v198 = vpack.c.b16 %v184, %v183
  %v199 = vpack.c.b16 %v186, %v185
  %v200 = vpack.c.b16 %v188, %v187
  %v201 = vpack.c.b16 %v190, %v189
  %v202 = vpack.c.b16 %v192, %v191
  %v203 = vpack.c.b16 %v194, %v193
  %v204 = vpack.c.b16 %v196, %v195
  %213 = vmatpush.bf16.msra.mxu0 %v204
  %214 = vmatpush.bf16.msra.mxu0 %v203
  %215 = vmatpush.bf16.msra.mxu0 %v202
  %216 = vmatpush.bf16.msra.mxu0 %v201
  %217 = vmatpush.bf16.msra.mxu0 %v200
  %218 = vmatpush.bf16.msra.mxu0 %v199
  %219 = vmatpush.bf16.msra.mxu0 %v198
  %220 = vmatpush.bf16.msra.mxu0 %v197
  %221 = vmatmul.bf16.gmra.mxu0 %v125
  %v222 = vpop.f32.mrf.mxu0
  %v223 = vadd.f32 0.0, %v222
  %v224 = vpop.f32.mrf.mxu0
  %v225 = vadd.f32 0.0, %v224
  %226 = vmatmul.bf16.gmra.mxu0 %v126
  %v227 = vpop.f32.mrf.mxu0
  %v228 = vadd.f32 0.0, %v227
  %v229 = vpop.f32.mrf.mxu0
  %v230 = vadd.f32 0.0, %v229
  %231 = vmatmul.bf16.gmra.mxu0 %v127
  %v232 = vpop.f32.mrf.mxu0
  %v233 = vadd.f32 0.0, %v232
  %v234 = vpop.f32.mrf.mxu0
  %v235 = vadd.f32 0.0, %v234
  %236 = vmatmul.bf16.gmra.mxu0 %v128
  %v237 = vpop.f32.mrf.mxu0
  %v238 = vadd.f32 0.0, %v237
  %v239 = vpop.f32.mrf.mxu0
  %v240 = vadd.f32 0.0, %v239
  %241 = vmatmul.bf16.gmra.mxu0 %v129
  %v242 = vpop.f32.mrf.mxu0
  %v243 = vadd.f32 0.0, %v242
  %v244 = vpop.f32.mrf.mxu0
  %v245 = vadd.f32 0.0, %v244
  %246 = vmatmul.bf16.gmra.mxu0 %v130
  %v247 = vpop.f32.mrf.mxu0
  %v248 = vadd.f32 0.0, %v247
  %v249 = vpop.f32.mrf.mxu0
  %v250 = vadd.f32 0.0, %v249
  %251 = vmatmul.bf16.gmra.mxu0 %v131
  %v252 = vpop.f32.mrf.mxu0
  %v253 = vadd.f32 0.0, %v252
  %v254 = vpop.f32.mrf.mxu0
  %v255 = vadd.f32 0.0, %v254
  %256 = vmatmul.bf16.gmra.mxu0 %v132
  %v257 = vpop.f32.mrf.mxu0
  %v258 = vadd.f32 0.0, %v257
  %v259 = vpop.f32.mrf.mxu0
  %v260 = vadd.f32 0.0, %v259
  %261 = vdwg.mxu0
  %v262 = vadd.f32 %v133, %v223
  %v263 = vadd.f32 %v134, %v225
  %v264 = vadd.f32 %v135, %v228
  %v265 = vadd.f32 %v136, %v230
  %v266 = vadd.f32 %v137, %v233
  %v267 = vadd.f32 %v138, %v235
  %v268 = vadd.f32 %v139, %v238
  %v269 = vadd.f32 %v140, %v240
  %v270 = vadd.f32 %v141, %v243
  %v271 = vadd.f32 %v142, %v245
  %v272 = vadd.f32 %v143, %v248
  %v273 = vadd.f32 %v144, %v250
  %v274 = vadd.f32 %v145, %v253
  %v275 = vadd.f32 %v146, %v255
  %v276 = vadd.f32 %v147, %v258
  %v277 = vadd.f32 %v148, %v260
  %278 = vst [vmem:[#allocation2] sm:$0xff] %v262
  %279 = vst [vmem:[#allocation2 + $0x8] sm:$0xff] %v263
  %280 = vst [vmem:[#allocation2 + $0x10] sm:$0xff] %v264
  %281 = vst [vmem:[#allocation2 + $0x18] sm:$0xff] %v265
  %282 = vst [vmem:[#allocation2 + $0x20] sm:$0xff] %v266
  %283 = vst [vmem:[#allocation2 + $0x28] sm:$0xff] %v267
  %284 = vst [vmem:[#allocation2 + $0x30] sm:$0xff] %v268
  %285 = vst [vmem:[#allocation2 + $0x38] sm:$0xff] %v269
  %286 = vst [vmem:[#allocation2 + $0x40] sm:$0xff] %v270
  %287 = vst [vmem:[#allocation2 + $0x48] sm:$0xff] %v271
  %288 = vst [vmem:[#allocation2 + $0x50] sm:$0xff] %v272
  %289 = vst [vmem:[#allocation2 + $0x58] sm:$0xff] %v273
  %290 = vst [vmem:[#allocation2 + $0x60] sm:$0xff] %v274
  %291 = vst [vmem:[#allocation2 + $0x68] sm:$0xff] %v275
  %292 = vst [vmem:[#allocation2 + $0x70] sm:$0xff] %v276
  %293 = vst [vmem:[#allocation2 + $0x78] sm:$0xff] %v277
  // Predicated region
  $region22: #{densenet_forward.24} parent=0 // pred_check
    %p294 = pneg %p17
  $region23: #{densenet_forward.24} parent=0 // pred_check_branch
    %296 = sbr.rel (%p294) target = $region25
  $region24: #{densenet_forward.24} parent=0 // pred_region
    %v297 = vld [vmem:[#allocation2] sm:$0xff]
    %v298 = vld [vmem:[#allocation2 + $0x8] sm:$0xff]
    %v299 = vld [vmem:[#allocation2 + $0x10] sm:$0xff]
    %v300 = vld [vmem:[#allocation2 + $0x18] sm:$0xff]
    %v301 = vld [vmem:[#allocation2 + $0x20] sm:$0xff]
    %v302 = vld [vmem:[#allocation2 + $0x28] sm:$0xff]
    %v303 = vld [vmem:[#allocation2 + $0x30] sm:$0xff]
    %v304 = vld [vmem:[#allocation2 + $0x38] sm:$0xff]
    %v305 = vld [vmem:[#allocation2 + $0x40] sm:$0xff]
    %v306 = vld [vmem:[#allocation2 + $0x48] sm:$0xff]
    %v307 = vld [vmem:[#allocation2 + $0x50] sm:$0xff]
    %v308 = vld [vmem:[#allocation2 + $0x58] sm:$0xff]
    %v309 = vld [vmem:[#allocation2 + $0x60] sm:$0xff]
    %v310 = vld [vmem:[#allocation2 + $0x68] sm:$0xff]
    %v311 = vld [vmem:[#allocation2 + $0x70] sm:$0xff]
    %v312 = vld [vmem:[#allocation2 + $0x78] sm:$0xff]
    %v313 = vpack.c.bf16 %v297, %v297
    %v314 = vpack.c.bf16 %v298, %v298
    %v315 = vpack.c.bf16 %v299, %v299
    %v316 = vpack.c.bf16 %v300, %v300
    %v317 = vpack.c.bf16 %v301, %v301
    %v318 = vpack.c.bf16 %v302, %v302
    %v319 = vpack.c.bf16 %v303, %v303
    %v320 = vpack.c.bf16 %v304, %v304
    %v321 = vpack.c.bf16 %v305, %v305
    %v322 = vpack.c.bf16 %v306, %v306
    %v323 = vpack.c.bf16 %v307, %v307
    %v324 = vpack.c.bf16 %v308, %v308
    %v325 = vpack.c.bf16 %v309, %v309
    %v326 = vpack.c.bf16 %v310, %v310
    %v327 = vpack.c.bf16 %v311, %v311
    %v328 = vpack.c.bf16 %v312, %v312
    %329 = vst [vmem:[%s4] sm:$0xf] %v313
    %330 = vst [vmem:[%s4 + $0x4] sm:$0xf] %v314
    %331 = vst [vmem:[%s4 + $0x8] sm:$0xf] %v315
    %332 = vst [vmem:[%s4 + $0xc] sm:$0xf] %v316
    %333 = vst [vmem:[%s4 + $0x10] sm:$0xf] %v317
    %334 = vst [vmem:[%s4 + $0x14] sm:$0xf] %v318
    %335 = vst [vmem:[%s4 + $0x18] sm:$0xf] %v319
    %336 = vst [vmem:[%s4 + $0x1c] sm:$0xf] %v320
    %337 = vst [vmem:[%s4 + $0x20] sm:$0xf] %v321
    %338 = vst [vmem:[%s4 + $0x24] sm:$0xf] %v322
    %339 = vst [vmem:[%s4 + $0x28] sm:$0xf] %v323
    %340 = vst [vmem:[%s4 + $0x2c] sm:$0xf] %v324
    %341 = vst [vmem:[%s4 + $0x30] sm:$0xf] %v325
    %342 = vst [vmem:[%s4 + $0x34] sm:$0xf] %v326
    %343 = vst [vmem:[%s4 + $0x38] sm:$0xf] %v327
    %344 = vst [vmem:[%s4 + $0x3c] sm:$0xf] %v328
  $region25: #{densenet_forward.24} parent=0 // pred_fallthru
    _
  // Predicated region
  $region26: #{densenet_forward.24} parent=0 // pred_check
    _
  $region27: #{densenet_forward.24} parent=0 // pred_check_branch
    %346 = sbr.rel (0) target = $region29
  $region28: #{densenet_forward.24} parent=0 // pred_region
    _
  $region29: #{densenet_forward.24} parent=0 // pred_fallthru
    _
  // Predicated region
  $region30: #{densenet_forward.24} parent=0 // pred_check
    _
  $region31: #{densenet_forward.24} parent=0 // pred_check_branch
    %348 = sbr.rel (0) target = $region33
  $region32: #{densenet_forward.24} parent=0 // pred_region
    _
  $region33: #{densenet_forward.24} parent=0 // pred_fallthru
    _

// kernel: tile.83
$region0: #{tile.83}
  #allocation0 [shape = 's32[1]{0}', space=sflag, size = 0x4, scoped, tag = 'scoped memory for tile.83']
  %s0 = inlined_call_operand.vmem [shape: f32[32], index: 0, kind: input, shape index: {}]
  %s1 = inlined_call_operand.vmem [shape: f32[9,32], index: 1, kind: output, shape index: {}]
  // Predicated region
  $region2: #{tile.83} parent=0 // pred_check
    _
  $region3: #{tile.83} parent=0 // pred_check_branch
    %3 = sbr.rel (0) target = $region5
  $region4: #{tile.83} parent=0 // pred_region
    _
  $region5: #{tile.83} parent=0 // pred_fallthru
    _
  %v4 = vld [vmem:[%s0] ss:$0 sm:$0xff]
  %5 = vst [vmem:[%s1] sm:$0xff] %v4
  %s6 = scalar_lea.vmem %s1, 8
  %7 = vst [vmem:[%s6] sm:$0xff] %v4

// kernel: tile.88
$region0: #{tile.88}
  %s0 = inlined_call_operand.vmem [shape: f32[9,32], index: 0, kind: input, shape index: {}]
  %s1 = inlined_call_operand.vmem [shape: f32[1,288], index: 1, kind: output, shape index: {}]
  $region1: #{tile.88} parent=0
    #allocation0 [shape = 'u8[12288]{0}', space=vmem, size = 0x3000, scoped, tag = 'scoped mem for output reshape']
    %v2 = vld [vmem:[%s0] ss:$4 sm:$0x7]
    %vm3 = vcmask 261120
    %4 = vst.msk [vmem:[#allocation0] ss:$8 sm:$0x7] %vm3, %v2
    %s5 = scalar_lea.vmem %s0, 3
    %s6 = smov 3
    %v7 = vld [vmem:[%s5] ss:$4 sm:%s6]
    %8 = vrot.lane.b32.xlu0 %v7, 96
    %v9 = vpop.permute.xlu0 %8
    %vm10 = vcmask 1048320
    %11 = vst.msk [vmem:[#allocation0] ss:$8 sm:$0x3] %vm10, %v9
    %s12 = scalar_lea.vmem %s0, 2
    %s13 = smov 3
    %v14 = vld [vmem:[%s12] ss:$4 sm:%s13]
    %15 = vrot.lane.b32.xlu0 %v14, 64
    %v16 = vpop.permute.xlu0 %15
    %vm17 = vcmask 785920
    %18 = vst.msk [vmem:[#allocation0] ss:$8 sm:$0x3] %vm17, %v16
    %s19 = scalar_lea.vmem %s0, 1
    %s20 = smov 3
    %v21 = vld [vmem:[%s19] ss:$4 sm:%s20]
    %22 = vrot.lane.b32.xlu0 %v21, 32
    %v23 = vpop.permute.xlu0 %22
    %vm24 = vcmask 523520
    %25 = vst.msk [vmem:[#allocation0] ss:$8 sm:$0x3] %vm24, %v23
    %s27 = ssub.s32 2, 1
    %v28 = vld [vmem:[#allocation0] sm:%s27]
    %s30 = ssub.s32 2, 1
    %31 = vst [vmem:[%s1] sm:%s30] %v28
    %s32 = scalar_lea.vmem [#allocation0], 8
    %v33 = vld [vmem:[%s32] sm:%s27]
    %s35 = ssub.s32 2, 1
    %s36 = scalar_lea.vmem %s1, 1
    %37 = vst [vmem:[%s36] sm:%s35] %v33
    %s38 = scalar_lea.vmem [#allocation0], 16
    %v39 = vld [vmem:[%s38] sm:%s27]
    %s41 = ssub.s32 2, 1
    %s42 = scalar_lea.vmem %s1, 2
    %43 = vst [vmem:[%s42] sm:%s41] %v39

// kernel: densenet_forward.25
$region0: #{densenet_forward.25}
  #allocation0 [shape = 'u32[]', space=smem, size = 0x4, offset = 0x4, fixed_abs, tag = 'smem constant byte address 0x4 - core index']
  #allocation1 [shape = 'u32[72,128]{1,0:T(1,128)}', space=vmem, size = 0x9000, scoped, tag = 'internal scratch']
  #allocation2 [shape = 'f32[128,128]{1,0:T(8,128)}', space=vmem, size = 0x10000, scoped, tag = 'scratch operand']
  %s0 = inlined_call_operand.vmem [shape: bf16[128,384], index: 0, kind: input, shape index: {}]
  %s1 = inlined_call_operand.vmem [shape: f32[1,384], index: 1, kind: input, shape index: {}]
  %s2 = inlined_call_operand.vmem [shape: f32[1,384], index: 2, kind: input, shape index: {}]
  %s3 = inlined_call_operand.vmem [shape: bf16[384,128], index: 3, kind: input, shape index: {}]
  %s4 = inlined_call_operand.vmem [shape: bf16[128,128], index: 4, kind: output, shape index: {}]
  %s5 = sld [smem:[#allocation0]]
  $region34: #{densenet_forward.25} parent=0
    _
  %s7 = ssub.s32 1, %s5
  %s8 = scalar_select 0, %s7, %s5
  // Predicated region
  $region2: #{densenet_forward.25} parent=0 // pred_check
    _
  $region3: #{densenet_forward.25} parent=0 // pred_check_branch
    %10 = sbr.rel (0) target = $region5
  $region4: #{densenet_forward.25} parent=0 // pred_region
    _
  $region5: #{densenet_forward.25} parent=0 // pred_fallthru
    _
  // Predicated region
  $region6: #{densenet_forward.25} parent=0 // pred_check
    _
  $region7: #{densenet_forward.25} parent=0 // pred_check_branch
    %12 = sbr.rel (0) target = $region9
  $region8: #{densenet_forward.25} parent=0 // pred_region
    _
  $region9: #{densenet_forward.25} parent=0 // pred_fallthru
    _
  // Predicated region
  $region10: #{densenet_forward.25} parent=0 // pred_check
    _
  $region11: #{densenet_forward.25} parent=0 // pred_check_branch
    %14 = sbr.rel (0) target = $region13
  $region12: #{densenet_forward.25} parent=0 // pred_region
    _
  $region13: #{densenet_forward.25} parent=0 // pred_fallthru
    _
  // Predicated region
  $region14: #{densenet_forward.25} parent=0 // pred_check
    _
  $region15: #{densenet_forward.25} parent=0 // pred_check_branch
    %16 = sbr.rel (0) target = $region17
  $region16: #{densenet_forward.25} parent=0 // pred_region
    _
  $region17: #{densenet_forward.25} parent=0 // pred_fallthru
    _
  %p17 = scmp.eq.s32.totalorder 0, 0
  // Predicated region
  $region18: #{densenet_forward.25} parent=0 // pred_check
    %p18 = pneg %p17
  $region19: #{densenet_forward.25} parent=0 // pred_check_branch
    %20 = sbr.rel (%p18) target = $region21
  $region20: #{densenet_forward.25} parent=0 // pred_region
    %21 = vst [vmem:[#allocation2] sm:$0xff] 0.0
    %22 = vst [vmem:[#allocation2 + $0x8] sm:$0xff] 0.0
    %23 = vst [vmem:[#allocation2 + $0x10] sm:$0xff] 0.0
    %24 = vst [vmem:[#allocation2 + $0x18] sm:$0xff] 0.0
    %25 = vst [vmem:[#allocation2 + $0x20] sm:$0xff] 0.0
    %26 = vst [vmem:[#allocation2 + $0x28] sm:$0xff] 0.0
    %27 = vst [vmem:[#allocation2 + $0x30] sm:$0xff] 0.0
    %28 = vst [vmem:[#allocation2 + $0x38] sm:$0xff] 0.0
    %29 = vst [vmem:[#allocation2 + $0x40] sm:$0xff] 0.0
    %30 = vst [vmem:[#allocation2 + $0x48] sm:$0xff] 0.0
    %31 = vst [vmem:[#allocation2 + $0x50] sm:$0xff] 0.0
    %32 = vst [vmem:[#allocation2 + $0x58] sm:$0xff] 0.0
    %33 = vst [vmem:[#allocation2 + $0x60] sm:$0xff] 0.0
    %34 = vst [vmem:[#allocation2 + $0x68] sm:$0xff] 0.0
    %35 = vst [vmem:[#allocation2 + $0x70] sm:$0xff] 0.0
    %36 = vst [vmem:[#allocation2 + $0x78] sm:$0xff] 0.0
  $region21: #{densenet_forward.25} parent=0 // pred_fallthru
    _
  %v37 = vld [vmem:[%s0] sm:$0xff]
  %v38 = vld [vmem:[%s0 + $0x8] sm:$0xf]
  %v39 = vld [vmem:[%s0 + $0xc] sm:$0xff]
  %v40 = vld [vmem:[%s0 + $0x14] sm:$0xf]
  %v41 = vld [vmem:[%s0 + $0x18] sm:$0xff]
  %v42 = vld [vmem:[%s0 + $0x20] sm:$0xf]
  %v43 = vld [vmem:[%s0 + $0x24] sm:$0xff]
  %v44 = vld [vmem:[%s0 + $0x2c] sm:$0xf]
  %v45 = vld [vmem:[%s0 + $0x30] sm:$0xff]
  %v46 = vld [vmem:[%s0 + $0x38] sm:$0xf]
  %v47 = vld [vmem:[%s0 + $0x3c] sm:$0xff]
  %v48 = vld [vmem:[%s0 + $0x44] sm:$0xf]
  %v49 = vld [vmem:[%s0 + $0x48] sm:$0xff]
  %v50 = vld [vmem:[%s0 + $0x50] sm:$0xf]
  %v51 = vld [vmem:[%s0 + $0x54] sm:$0xff]
  %v52 = vld [vmem:[%s0 + $0x5c] sm:$0xf]
  %v53 = vld [vmem:[%s0 + $0x60] sm:$0xff]
  %v54 = vld [vmem:[%s0 + $0x68] sm:$0xf]
  %v55 = vld [vmem:[%s0 + $0x6c] sm:$0xff]
  %v56 = vld [vmem:[%s0 + $0x74] sm:$0xf]
  %v57 = vld [vmem:[%s0 + $0x78] sm:$0xff]
  %v58 = vld [vmem:[%s0 + $0x80] sm:$0xf]
  %v59 = vld [vmem:[%s0 + $0x84] sm:$0xff]
  %v60 = vld [vmem:[%s0 + $0x8c] sm:$0xf]
  %v61 = vld [vmem:[%s0 + $0x90] sm:$0xff]
  %v62 = vld [vmem:[%s0 + $0x98] sm:$0xf]
  %v63 = vld [vmem:[%s0 + $0x9c] sm:$0xff]
  %v64 = vld [vmem:[%s0 + $0xa4] sm:$0xf]
  %v65 = vld [vmem:[%s0 + $0xa8] sm:$0xff]
  %v66 = vld [vmem:[%s0 + $0xb0] sm:$0xf]
  %v67 = vld [vmem:[%s0 + $0xb4] sm:$0xff]
  %v68 = vld [vmem:[%s0 + $0xbc] sm:$0xf]
  %v69 = vunpack.c.l.bf16 %v37
  %v70 = vunpack.c.h.bf16 %v37
  %v71 = vunpack.c.l.bf16 %v38
  %v72 = vunpack.c.l.bf16 %v39
  %v73 = vunpack.c.h.bf16 %v39
  %v74 = vunpack.c.l.bf16 %v40
  %v75 = vunpack.c.l.bf16 %v41
  %v76 = vunpack.c.h.bf16 %v41
  %v77 = vunpack.c.l.bf16 %v42
  %v78 = vunpack.c.l.bf16 %v43
  %v79 = vunpack.c.h.bf16 %v43
  %v80 = vunpack.c.l.bf16 %v44
  %v81 = vunpack.c.l.bf16 %v45
  %v82 = vunpack.c.h.bf16 %v45
  %v83 = vunpack.c.l.bf16 %v46
  %v84 = vunpack.c.l.bf16 %v47
  %v85 = vunpack.c.h.bf16 %v47
  %v86 = vunpack.c.l.bf16 %v48
  %v87 = vunpack.c.l.bf16 %v49
  %v88 = vunpack.c.h.bf16 %v49
  %v89 = vunpack.c.l.bf16 %v50
  %v90 = vunpack.c.l.bf16 %v51
  %v91 = vunpack.c.h.bf16 %v51
  %v92 = vunpack.c.l.bf16 %v52
  %v93 = vunpack.c.l.bf16 %v53
  %v94 = vunpack.c.h.bf16 %v53
  %v95 = vunpack.c.l.bf16 %v54
  %v96 = vunpack.c.l.bf16 %v55
  %v97 = vunpack.c.h.bf16 %v55
  %v98 = vunpack.c.l.bf16 %v56
  %v99 = vunpack.c.l.bf16 %v57
  %v100 = vunpack.c.h.bf16 %v57
  %v101 = vunpack.c.l.bf16 %v58
  %v102 = vunpack.c.l.bf16 %v59
  %v103 = vunpack.c.h.bf16 %v59
  %v104 = vunpack.c.l.bf16 %v60
  %v105 = vunpack.c.l.bf16 %v61
  %v106 = vunpack.c.h.bf16 %v61
  %v107 = vunpack.c.l.bf16 %v62
  %v108 = vunpack.c.l.bf16 %v63
  %v109 = vunpack.c.h.bf16 %v63
  %v110 = vunpack.c.l.bf16 %v64
  %v111 = vunpack.c.l.bf16 %v65
  %v112 = vunpack.c.h.bf16 %v65
  %v113 = vunpack.c.l.bf16 %v66
  %v114 = vunpack.c.l.bf16 %v67
  %v115 = vunpack.c.h.bf16 %v67
  %v116 = vunpack.c.l.bf16 %v68
  %v117 = vld [vmem:[%s1] sm:$0x7]
  %v119 = vperm.slane %v117, 0
  %v120 = vperm.slane %v117, 1
  %v121 = vperm.slane %v117, 2
  %v125 = vmul.f32 %v69, %v119
  %v126 = vmul.f32 %v70, %v120
  %v127 = vmul.f32 %v71, %v121
  %v128 = vmul.f32 %v72, %v119
  %v129 = vmul.f32 %v73, %v120
  %v130 = vmul.f32 %v74, %v121
  %v131 = vmul.f32 %v75, %v119
  %v132 = vmul.f32 %v76, %v120
  %v133 = vmul.f32 %v77, %v121
  %v134 = vmul.f32 %v78, %v119
  %v135 = vmul.f32 %v79, %v120
  %v136 = vmul.f32 %v80, %v121
  %v137 = vmul.f32 %v81, %v119
  %v138 = vmul.f32 %v82, %v120
  %v139 = vmul.f32 %v83, %v121
  %v140 = vmul.f32 %v84, %v119
  %v141 = vmul.f32 %v85, %v120
  %v142 = vmul.f32 %v86, %v121
  %v143 = vmul.f32 %v87, %v119
  %v144 = vmul.f32 %v88, %v120
  %v145 = vmul.f32 %v89, %v121
  %v146 = vmul.f32 %v90, %v119
  %v147 = vmul.f32 %v91, %v120
  %v148 = vmul.f32 %v92, %v121
  %v149 = vmul.f32 %v93, %v119
  %v150 = vmul.f32 %v94, %v120
  %v151 = vmul.f32 %v95, %v121
  %v152 = vmul.f32 %v96, %v119
  %v153 = vmul.f32 %v97, %v120
  %v154 = vmul.f32 %v98, %v121
  %v155 = vmul.f32 %v99, %v119
  %v156 = vmul.f32 %v100, %v120
  %v157 = vmul.f32 %v101, %v121
  %v158 = vmul.f32 %v102, %v119
  %v159 = vmul.f32 %v103, %v120
  %v160 = vmul.f32 %v104, %v121
  %v161 = vmul.f32 %v105, %v119
  %v162 = vmul.f32 %v106, %v120
  %v163 = vmul.f32 %v107, %v121
  %v164 = vmul.f32 %v108, %v119
  %v165 = vmul.f32 %v109, %v120
  %v166 = vmul.f32 %v110, %v121
  %v167 = vmul.f32 %v111, %v119
  %v168 = vmul.f32 %v112, %v120
  %v169 = vmul.f32 %v113, %v121
  %v170 = vmul.f32 %v114, %v119
  %v171 = vmul.f32 %v115, %v120
  %v172 = vmul.f32 %v116, %v121
  %v173 = vld [vmem:[%s2] sm:$0x7]
  %v175 = vperm.slane %v173, 0
  %v176 = vperm.slane %v173, 1
  %v177 = vperm.slane %v173, 2
  %v181 = vadd.f32 %v125, %v175
  %v182 = vadd.f32 %v126, %v176
  %v183 = vadd.f32 %v127, %v177
  %v184 = vadd.f32 %v128, %v175
  %v185 = vadd.f32 %v129, %v176
  %v186 = vadd.f32 %v130, %v177
  %v187 = vadd.f32 %v131, %v175
  %v188 = vadd.f32 %v132, %v176
  %v189 = vadd.f32 %v133, %v177
  %v190 = vadd.f32 %v134, %v175
  %v191 = vadd.f32 %v135, %v176
  %v192 = vadd.f32 %v136, %v177
  %v193 = vadd.f32 %v137, %v175
  %v194 = vadd.f32 %v138, %v176
  %v195 = vadd.f32 %v139, %v177
  %v196 = vadd.f32 %v140, %v175
  %v197 = vadd.f32 %v141, %v176
  %v198 = vadd.f32 %v142, %v177
  %v199 = vadd.f32 %v143, %v175
  %v200 = vadd.f32 %v144, %v176
  %v201 = vadd.f32 %v145, %v177
  %v202 = vadd.f32 %v146, %v175
  %v203 = vadd.f32 %v147, %v176
  %v204 = vadd.f32 %v148, %v177
  %v205 = vadd.f32 %v149, %v175
  %v206 = vadd.f32 %v150, %v176
  %v207 = vadd.f32 %v151, %v177
  %v208 = vadd.f32 %v152, %v175
  %v209 = vadd.f32 %v153, %v176
  %v210 = vadd.f32 %v154, %v177
  %v211 = vadd.f32 %v155, %v175
  %v212 = vadd.f32 %v156, %v176
  %v213 = vadd.f32 %v157, %v177
  %v214 = vadd.f32 %v158, %v175
  %v215 = vadd.f32 %v159, %v176
  %v216 = vadd.f32 %v160, %v177
  %v217 = vadd.f32 %v161, %v175
  %v218 = vadd.f32 %v162, %v176
  %v219 = vadd.f32 %v163, %v177
  %v220 = vadd.f32 %v164, %v175
  %v221 = vadd.f32 %v165, %v176
  %v222 = vadd.f32 %v166, %v177
  %v223 = vadd.f32 %v167, %v175
  %v224 = vadd.f32 %v168, %v176
  %v225 = vadd.f32 %v169, %v177
  %v226 = vadd.f32 %v170, %v175
  %v227 = vadd.f32 %v171, %v176
  %v228 = vadd.f32 %v172, %v177
  %v229 = vmax.f32 %v181, 0.0
  %v230 = vmax.f32 %v182, 0.0
  %v231 = vmax.f32 %v183, 0.0
  %v232 = vmax.f32 %v184, 0.0
  %v233 = vmax.f32 %v185, 0.0
  %v234 = vmax.f32 %v186, 0.0
  %v235 = vmax.f32 %v187, 0.0
  %v236 = vmax.f32 %v188, 0.0
  %v237 = vmax.f32 %v189, 0.0
  %v238 = vmax.f32 %v190, 0.0
  %v239 = vmax.f32 %v191, 0.0
  %v240 = vmax.f32 %v192, 0.0
  %v241 = vmax.f32 %v193, 0.0
  %v242 = vmax.f32 %v194, 0.0
  %v243 = vmax.f32 %v195, 0.0
  %v244 = vmax.f32 %v196, 0.0
  %v245 = vmax.f32 %v197, 0.0
  %v246 = vmax.f32 %v198, 0.0
  %v247 = vmax.f32 %v199, 0.0
  %v248 = vmax.f32 %v200, 0.0
  %v249 = vmax.f32 %v201, 0.0
  %v250 = vmax.f32 %v202, 0.0
  %v251 = vmax.f32 %v203, 0.0
  %v252 = vmax.f32 %v204, 0.0
  %v253 = vmax.f32 %v205, 0.0
  %v254 = vmax.f32 %v206, 0.0
  %v255 = vmax.f32 %v207, 0.0
  %v256 = vmax.f32 %v208, 0.0
  %v257 = vmax.f32 %v209, 0.0
  %v258 = vmax.f32 %v210, 0.0
  %v259 = vmax.f32 %v211, 0.0
  %v260 = vmax.f32 %v212, 0.0
  %v261 = vmax.f32 %v213, 0.0
  %v262 = vmax.f32 %v214, 0.0
  %v263 = vmax.f32 %v215, 0.0
  %v264 = vmax.f32 %v216, 0.0
  %v265 = vmax.f32 %v217, 0.0
  %v266 = vmax.f32 %v218, 0.0
  %v267 = vmax.f32 %v219, 0.0
  %v268 = vmax.f32 %v220, 0.0
  %v269 = vmax.f32 %v221, 0.0
  %v270 = vmax.f32 %v222, 0.0
  %v271 = vmax.f32 %v223, 0.0
  %v272 = vmax.f32 %v224, 0.0
  %v273 = vmax.f32 %v225, 0.0
  %v274 = vmax.f32 %v226, 0.0
  %v275 = vmax.f32 %v227, 0.0
  %v276 = vmax.f32 %v228, 0.0
  %v277 = vpack.c.bf16 %v232, %v229
  %v278 = vpack.c.bf16 %v233, %v230
  %v279 = vpack.c.bf16 %v234, %v231
  %v280 = vpack.c.bf16 %v238, %v235
  %v281 = vpack.c.bf16 %v239, %v236
  %v282 = vpack.c.bf16 %v240, %v237
  %v283 = vpack.c.bf16 %v244, %v241
  %v284 = vpack.c.bf16 %v245, %v242
  %v285 = vpack.c.bf16 %v246, %v243
  %v286 = vpack.c.bf16 %v250, %v247
  %v287 = vpack.c.bf16 %v251, %v248
  %v288 = vpack.c.bf16 %v252, %v249
  %v289 = vpack.c.bf16 %v256, %v253
  %v290 = vpack.c.bf16 %v257, %v254
  %v291 = vpack.c.bf16 %v258, %v255
  %v292 = vpack.c.bf16 %v262, %v259
  %v293 = vpack.c.bf16 %v263, %v260
  %v294 = vpack.c.bf16 %v264, %v261
  %v295 = vpack.c.bf16 %v268, %v265
  %v296 = vpack.c.bf16 %v269, %v266
  %v297 = vpack.c.bf16 %v270, %v267
  %v298 = vpack.c.bf16 %v274, %v271
  %v299 = vpack.c.bf16 %v275, %v272
  %v300 = vpack.c.bf16 %v276, %v273
  %v301 = vld [vmem:[#allocation2] sm:$0xff]
  %v302 = vld [vmem:[#allocation2 + $0x8] sm:$0xff]
  %v303 = vld [vmem:[#allocation2 + $0x10] sm:$0xff]
  %v304 = vld [vmem:[#allocation2 + $0x18] sm:$0xff]
  %v305 = vld [vmem:[#allocation2 + $0x20] sm:$0xff]
  %v306 = vld [vmem:[#allocation2 + $0x28] sm:$0xff]
  %v307 = vld [vmem:[#allocation2 + $0x30] sm:$0xff]
  %v308 = vld [vmem:[#allocation2 + $0x38] sm:$0xff]
  %v309 = vld [vmem:[#allocation2 + $0x40] sm:$0xff]
  %v310 = vld [vmem:[#allocation2 + $0x48] sm:$0xff]
  %v311 = vld [vmem:[#allocation2 + $0x50] sm:$0xff]
  %v312 = vld [vmem:[#allocation2 + $0x58] sm:$0xff]
  %v313 = vld [vmem:[#allocation2 + $0x60] sm:$0xff]
  %v314 = vld [vmem:[#allocation2 + $0x68] sm:$0xff]
  %v315 = vld [vmem:[#allocation2 + $0x70] sm:$0xff]
  %v316 = vld [vmem:[#allocation2 + $0x78] sm:$0xff]
  %v317 = vld [vmem:[%s3] sm:$0xf]
  %v318 = vld [vmem:[%s3 + $0x4] sm:$0xf]
  %v319 = vld [vmem:[%s3 + $0x8] sm:$0xf]
  %v320 = vld [vmem:[%s3 + $0xc] sm:$0xf]
  %v321 = vld [vmem:[%s3 + $0x10] sm:$0xf]
  %v322 = vld [vmem:[%s3 + $0x14] sm:$0xf]
  %v323 = vld [vmem:[%s3 + $0x18] sm:$0xf]
  %v324 = vld [vmem:[%s3 + $0x1c] sm:$0xf]
  %v325 = vld [vmem:[%s3 + $0x20] sm:$0xf]
  %v326 = vld [vmem:[%s3 + $0x24] sm:$0xf]
  %v327 = vld [vmem:[%s3 + $0x28] sm:$0xf]
  %v328 = vld [vmem:[%s3 + $0x2c] sm:$0xf]
  %v329 = vld [vmem:[%s3 + $0x30] sm:$0xf]
  %v330 = vld [vmem:[%s3 + $0x34] sm:$0xf]
  %v331 = vld [vmem:[%s3 + $0x38] sm:$0xf]
  %v332 = vld [vmem:[%s3 + $0x3c] sm:$0xf]
  %v333 = vld [vmem:[%s3 + $0x40] sm:$0xf]
  %v334 = vld [vmem:[%s3 + $0x44] sm:$0xf]
  %v335 = vld [vmem:[%s3 + $0x48] sm:$0xf]
  %v336 = vld [vmem:[%s3 + $0x4c] sm:$0xf]
  %v337 = vld [vmem:[%s3 + $0x50] sm:$0xf]
  %v338 = vld [vmem:[%s3 + $0x54] sm:$0xf]
  %v339 = vld [vmem:[%s3 + $0x58] sm:$0xf]
  %v340 = vld [vmem:[%s3 + $0x5c] sm:$0xf]
  %v341 = vld [vmem:[%s3 + $0x60] sm:$0xf]
  %v342 = vld [vmem:[%s3 + $0x64] sm:$0xf]
  %v343 = vld [vmem:[%s3 + $0x68] sm:$0xf]
  %v344 = vld [vmem:[%s3 + $0x6c] sm:$0xf]
  %v345 = vld [vmem:[%s3 + $0x70] sm:$0xf]
  %v346 = vld [vmem:[%s3 + $0x74] sm:$0xf]
  %v347 = vld [vmem:[%s3 + $0x78] sm:$0xf]
  %v348 = vld [vmem:[%s3 + $0x7c] sm:$0xf]
  %v349 = vld [vmem:[%s3 + $0x80] sm:$0xf]
  %v350 = vld [vmem:[%s3 + $0x84] sm:$0xf]
  %v351 = vld [vmem:[%s3 + $0x88] sm:$0xf]
  %v352 = vld [vmem:[%s3 + $0x8c] sm:$0xf]
  %v353 = vld [vmem:[%s3 + $0x90] sm:$0xf]
  %v354 = vld [vmem:[%s3 + $0x94] sm:$0xf]
  %v355 = vld [vmem:[%s3 + $0x98] sm:$0xf]
  %v356 = vld [vmem:[%s3 + $0x9c] sm:$0xf]
  %v357 = vld [vmem:[%s3 + $0xa0] sm:$0xf]
  %v358 = vld [vmem:[%s3 + $0xa4] sm:$0xf]
  %v359 = vld [vmem:[%s3 + $0xa8] sm:$0xf]
  %v360 = vld [vmem:[%s3 + $0xac] sm:$0xf]
  %v361 = vld [vmem:[%s3 + $0xb0] sm:$0xf]
  %v362 = vld [vmem:[%s3 + $0xb4] sm:$0xf]
  %v363 = vld [vmem:[%s3 + $0xb8] sm:$0xf]
  %v364 = vld [vmem:[%s3 + $0xbc] sm:$0xf]
  %v413 = vunpack.c.l.b16 %v317
  %v414 = vunpack.c.l.b16 %v318
  %v415 = vunpack.c.l.b16 %v319
  %v416 = vunpack.c.l.b16 %v320
  %v417 = vunpack.c.l.b16 %v321
  %v418 = vunpack.c.l.b16 %v322
  %v419 = vunpack.c.l.b16 %v323
  %v420 = vunpack.c.l.b16 %v324
  %v421 = vunpack.c.l.b16 %v325
  %v422 = vunpack.c.l.b16 %v326
  %v423 = vunpack.c.l.b16 %v327
  %v424 = vunpack.c.l.b16 %v328
  %v425 = vunpack.c.l.b16 %v329
  %v426 = vunpack.c.l.b16 %v330
  %v427 = vunpack.c.l.b16 %v331
  %v428 = vunpack.c.l.b16 %v332
  %v429 = vunpack.c.l.b16 %v333
  %v430 = vunpack.c.l.b16 %v334
  %v431 = vunpack.c.l.b16 %v335
  %v432 = vunpack.c.l.b16 %v336
  %v433 = vunpack.c.l.b16 %v337
  %v434 = vunpack.c.l.b16 %v338
  %v435 = vunpack.c.l.b16 %v339
  %v436 = vunpack.c.l.b16 %v340
  %v437 = vunpack.c.l.b16 %v341
  %v438 = vunpack.c.l.b16 %v342
  %v439 = vunpack.c.l.b16 %v343
  %v440 = vunpack.c.l.b16 %v344
  %v441 = vunpack.c.l.b16 %v345
  %v442 = vunpack.c.l.b16 %v346
  %v443 = vunpack.c.l.b16 %v347
  %v444 = vunpack.c.l.b16 %v348
  %v445 = vunpack.c.l.b16 %v349
  %v446 = vunpack.c.l.b16 %v350
  %v447 = vunpack.c.l.b16 %v351
  %v448 = vunpack.c.l.b16 %v352
  %v449 = vunpack.c.l.b16 %v353
  %v450 = vunpack.c.l.b16 %v354
  %v451 = vunpack.c.l.b16 %v355
  %v452 = vunpack.c.l.b16 %v356
  %v453 = vunpack.c.l.b16 %v357
  %v454 = vunpack.c.l.b16 %v358
  %v455 = vunpack.c.l.b16 %v359
  %v456 = vunpack.c.l.b16 %v360
  %v457 = vunpack.c.l.b16 %v361
  %v458 = vunpack.c.l.b16 %v362
  %v459 = vunpack.c.l.b16 %v363
  %v460 = vunpack.c.l.b16 %v364
  %v461 = vpack.c.b16 %v414, %v413
  %v462 = vpack.c.b16 %v416, %v415
  %v463 = vpack.c.b16 %v418, %v417
  %v464 = vpack.c.b16 %v420, %v419
  %v465 = vpack.c.b16 %v422, %v421
  %v466 = vpack.c.b16 %v424, %v423
  %v467 = vpack.c.b16 %v426, %v425
  %v468 = vpack.c.b16 %v428, %v427
  %v469 = vpack.c.b16 %v430, %v429
  %v470 = vpack.c.b16 %v432, %v431
  %v471 = vpack.c.b16 %v434, %v433
  %v472 = vpack.c.b16 %v436, %v435
  %v473 = vpack.c.b16 %v438, %v437
  %v474 = vpack.c.b16 %v440, %v439
  %v475 = vpack.c.b16 %v442, %v441
  %v476 = vpack.c.b16 %v444, %v443
  %v477 = vpack.c.b16 %v446, %v445
  %v478 = vpack.c.b16 %v448, %v447
  %v479 = vpack.c.b16 %v450, %v449
  %v480 = vpack.c.b16 %v452, %v451
  %v481 = vpack.c.b16 %v454, %v453
  %v482 = vpack.c.b16 %v456, %v455
  %v483 = vpack.c.b16 %v458, %v457
  %v484 = vpack.c.b16 %v460, %v459
  %509 = vmatpush.bf16.msra.mxu0 %v468
  %510 = vmatpush.bf16.msra.mxu0 %v467
  %511 = vmatpush.bf16.msra.mxu0 %v466
  %512 = vmatpush.bf16.msra.mxu0 %v465
  %513 = vmatpush.bf16.msra.mxu0 %v464
  %514 = vmatpush.bf16.msra.mxu0 %v463
  %515 = vmatpush.bf16.msra.mxu0 %v462
  %516 = vmatpush.bf16.msra.mxu0 %v461
  %517 = vmatmul.bf16.gmra.mxu0 %v277
  %v518 = vpop.f32.mrf.mxu0
  %v519 = vadd.f32 0.0, %v518
  %v520 = vpop.f32.mrf.mxu0
  %v521 = vadd.f32 0.0, %v520
  %522 = vmatmul.bf16.gmra.mxu0 %v280
  %v523 = vpop.f32.mrf.mxu0
  %v524 = vadd.f32 0.0, %v523
  %v525 = vpop.f32.mrf.mxu0
  %v526 = vadd.f32 0.0, %v525
  %527 = vmatmul.bf16.gmra.mxu0 %v283
  %v528 = vpop.f32.mrf.mxu0
  %v529 = vadd.f32 0.0, %v528
  %v530 = vpop.f32.mrf.mxu0
  %v531 = vadd.f32 0.0, %v530
  %532 = vmatmul.bf16.gmra.mxu0 %v286
  %v533 = vpop.f32.mrf.mxu0
  %v534 = vadd.f32 0.0, %v533
  %v535 = vpop.f32.mrf.mxu0
  %v536 = vadd.f32 0.0, %v535
  %537 = vmatmul.bf16.gmra.mxu0 %v289
  %v538 = vpop.f32.mrf.mxu0
  %v539 = vadd.f32 0.0, %v538
  %v540 = vpop.f32.mrf.mxu0
  %v541 = vadd.f32 0.0, %v540
  %542 = vmatmul.bf16.gmra.mxu0 %v292
  %v543 = vpop.f32.mrf.mxu0
  %v544 = vadd.f32 0.0, %v543
  %v545 = vpop.f32.mrf.mxu0
  %v546 = vadd.f32 0.0, %v545
  %547 = vmatmul.bf16.gmra.mxu0 %v295
  %v548 = vpop.f32.mrf.mxu0
  %v549 = vadd.f32 0.0, %v548
  %v550 = vpop.f32.mrf.mxu0
  %v551 = vadd.f32 0.0, %v550
  %552 = vmatmul.bf16.gmra.mxu0 %v298
  %v553 = vpop.f32.mrf.mxu0
  %v554 = vadd.f32 0.0, %v553
  %v555 = vpop.f32.mrf.mxu0
  %v556 = vadd.f32 0.0, %v555
  %557 = vdwg.mxu0
  %558 = vmatpush.bf16.msra.mxu0 %v476
  %559 = vmatpush.bf16.msra.mxu0 %v475
  %560 = vmatpush.bf16.msra.mxu0 %v474
  %561 = vmatpush.bf16.msra.mxu0 %v473
  %562 = vmatpush.bf16.msra.mxu0 %v472
  %563 = vmatpush.bf16.msra.mxu0 %v471
  %564 = vmatpush.bf16.msra.mxu0 %v470
  %565 = vmatpush.bf16.msra.mxu0 %v469
  %566 = vmatmul.bf16.gmra.mxu0 %v278
  %v567 = vpop.f32.mrf.mxu0
  %v568 = vadd.f32 %v519, %v567
  %v569 = vpop.f32.mrf.mxu0
  %v570 = vadd.f32 %v521, %v569
  %571 = vmatmul.bf16.gmra.mxu0 %v281
  %v572 = vpop.f32.mrf.mxu0
  %v573 = vadd.f32 %v524, %v572
  %v574 = vpop.f32.mrf.mxu0
  %v575 = vadd.f32 %v526, %v574
  %576 = vmatmul.bf16.gmra.mxu0 %v284
  %v577 = vpop.f32.mrf.mxu0
  %v578 = vadd.f32 %v529, %v577
  %v579 = vpop.f32.mrf.mxu0
  %v580 = vadd.f32 %v531, %v579
  %581 = vmatmul.bf16.gmra.mxu0 %v287
  %v582 = vpop.f32.mrf.mxu0
  %v583 = vadd.f32 %v534, %v582
  %v584 = vpop.f32.mrf.mxu0
  %v585 = vadd.f32 %v536, %v584
  %586 = vmatmul.bf16.gmra.mxu0 %v290
  %v587 = vpop.f32.mrf.mxu0
  %v588 = vadd.f32 %v539, %v587
  %v589 = vpop.f32.mrf.mxu0
  %v590 = vadd.f32 %v541, %v589
  %591 = vmatmul.bf16.gmra.mxu0 %v293
  %v592 = vpop.f32.mrf.mxu0
  %v593 = vadd.f32 %v544, %v592
  %v594 = vpop.f32.mrf.mxu0
  %v595 = vadd.f32 %v546, %v594
  %596 = vmatmul.bf16.gmra.mxu0 %v296
  %v597 = vpop.f32.mrf.mxu0
  %v598 = vadd.f32 %v549, %v597
  %v599 = vpop.f32.mrf.mxu0
  %v600 = vadd.f32 %v551, %v599
  %601 = vmatmul.bf16.gmra.mxu0 %v299
  %v602 = vpop.f32.mrf.mxu0
  %v603 = vadd.f32 %v554, %v602
  %v604 = vpop.f32.mrf.mxu0
  %v605 = vadd.f32 %v556, %v604
  %606 = vdwg.mxu0
  %607 = vmatpush.bf16.msra.mxu0 %v484
  %608 = vmatpush.bf16.msra.mxu0 %v483
  %609 = vmatpush.bf16.msra.mxu0 %v482
  %610 = vmatpush.bf16.msra.mxu0 %v481
  %611 = vmatpush.bf16.msra.mxu0 %v480
  %612 = vmatpush.bf16.msra.mxu0 %v479
  %613 = vmatpush.bf16.msra.mxu0 %v478
  %614 = vmatpush.bf16.msra.mxu0 %v477
  %615 = vmatmul.bf16.gmra.mxu0 %v279
  %v616 = vpop.f32.mrf.mxu0
  %v617 = vadd.f32 %v568, %v616
  %v618 = vpop.f32.mrf.mxu0
  %v619 = vadd.f32 %v570, %v618
  %620 = vmatmul.bf16.gmra.mxu0 %v282
  %v621 = vpop.f32.mrf.mxu0
  %v622 = vadd.f32 %v573, %v621
  %v623 = vpop.f32.mrf.mxu0
  %v624 = vadd.f32 %v575, %v623
  %625 = vmatmul.bf16.gmra.mxu0 %v285
  %v626 = vpop.f32.mrf.mxu0
  %v627 = vadd.f32 %v578, %v626
  %v628 = vpop.f32.mrf.mxu0
  %v629 = vadd.f32 %v580, %v628
  %630 = vmatmul.bf16.gmra.mxu0 %v288
  %v631 = vpop.f32.mrf.mxu0
  %v632 = vadd.f32 %v583, %v631
  %v633 = vpop.f32.mrf.mxu0
  %v634 = vadd.f32 %v585, %v633
  %635 = vmatmul.bf16.gmra.mxu0 %v291
  %v636 = vpop.f32.mrf.mxu0
  %v637 = vadd.f32 %v588, %v636
  %v638 = vpop.f32.mrf.mxu0
  %v639 = vadd.f32 %v590, %v638
  %640 = vmatmul.bf16.gmra.mxu0 %v294
  %v641 = vpop.f32.mrf.mxu0
  %v642 = vadd.f32 %v593, %v641
  %v643 = vpop.f32.mrf.mxu0
  %v644 = vadd.f32 %v595, %v643
  %645 = vmatmul.bf16.gmra.mxu0 %v297
  %v646 = vpop.f32.mrf.mxu0
  %v647 = vadd.f32 %v598, %v646
  %v648 = vpop.f32.mrf.mxu0
  %v649 = vadd.f32 %v600, %v648
  %650 = vmatmul.bf16.gmra.mxu0 %v300
  %v651 = vpop.f32.mrf.mxu0
  %v652 = vadd.f32 %v603, %v651
  %v653 = vpop.f32.mrf.mxu0
  %v654 = vadd.f32 %v605, %v653
  %655 = vdwg.mxu0
  %v656 = vadd.f32 %v301, %v617
  %v657 = vadd.f32 %v302, %v619
  %v658 = vadd.f32 %v303, %v622
  %v659 = vadd.f32 %v304, %v624
  %v660 = vadd.f32 %v305, %v627
  %v661 = vadd.f32 %v306, %v629
  %v662 = vadd.f32 %v307, %v632
  %v663 = vadd.f32 %v308, %v634
  %v664 = vadd.f32 %v309, %v637
  %v665 = vadd.f32 %v310, %v639
  %v666 = vadd.f32 %v311, %v642
  %v667 = vadd.f32 %v312, %v644
  %v668 = vadd.f32 %v313, %v647
  %v669 = vadd.f32 %v314, %v649
  %v670 = vadd.f32 %v315, %v652
  %v671 = vadd.f32 %v316, %v654
  %672 = vst [vmem:[#allocation2] sm:$0xff] %v656
  %673 = vst [vmem:[#allocation2 + $0x8] sm:$0xff] %v657
  %674 = vst [vmem:[#allocation2 + $0x10] sm:$0xff] %v658
  %675 = vst [vmem:[#allocation2 + $0x18] sm:$0xff] %v659
  %676 = vst [vmem:[#allocation2 + $0x20] sm:$0xff] %v660
  %677 = vst [vmem:[#allocation2 + $0x28] sm:$0xff] %v661
  %678 = vst [vmem:[#allocation2 + $0x30] sm:$0xff] %v662
  %679 = vst [vmem:[#allocation2 + $0x38] sm:$0xff] %v663
  %680 = vst [vmem:[#allocation2 + $0x40] sm:$0xff] %v664
  %681 = vst [vmem:[#allocation2 + $0x48] sm:$0xff] %v665
  %682 = vst [vmem:[#allocation2 + $0x50] sm:$0xff] %v666
  %683 = vst [vmem:[#allocation2 + $0x58] sm:$0xff] %v667
  %684 = vst [vmem:[#allocation2 + $0x60] sm:$0xff] %v668
  %685 = vst [vmem:[#allocation2 + $0x68] sm:$0xff] %v669
  %686 = vst [vmem:[#allocation2 + $0x70] sm:$0xff] %v670
  %687 = vst [vmem:[#allocation2 + $0x78] sm:$0xff] %v671
  // Predicated region
  $region22: #{densenet_forward.25} parent=0 // pred_check
    %p688 = pneg %p17
  $region23: #{densenet_forward.25} parent=0 // pred_check_branch
    %690 = sbr.rel (%p688) target = $region25
  $region24: #{densenet_forward.25} parent=0 // pred_region
    %v691 = vld [vmem:[#allocation2] sm:$0xff]
    %v692 = vld [vmem:[#allocation2 + $0x8] sm:$0xff]
    %v693 = vld [vmem:[#allocation2 + $0x10] sm:$0xff]
    %v694 = vld [vmem:[#allocation2 + $0x18] sm:$0xff]
    %v695 = vld [vmem:[#allocation2 + $0x20] sm:$0xff]
    %v696 = vld [vmem:[#allocation2 + $0x28] sm:$0xff]
    %v697 = vld [vmem:[#allocation2 + $0x30] sm:$0xff]
    %v698 = vld [vmem:[#allocation2 + $0x38] sm:$0xff]
    %v699 = vld [vmem:[#allocation2 + $0x40] sm:$0xff]
    %v700 = vld [vmem:[#allocation2 + $0x48] sm:$0xff]
    %v701 = vld [vmem:[#allocation2 + $0x50] sm:$0xff]
    %v702 = vld [vmem:[#allocation2 + $0x58] sm:$0xff]
    %v703 = vld [vmem:[#allocation2 + $0x60] sm:$0xff]
    %v704 = vld [vmem:[#allocation2 + $0x68] sm:$0xff]
    %v705 = vld [vmem:[#allocation2 + $0x70] sm:$0xff]
    %v706 = vld [vmem:[#allocation2 + $0x78] sm:$0xff]
    %v707 = vpack.c.bf16 %v691, %v691
    %v708 = vpack.c.bf16 %v692, %v692
    %v709 = vpack.c.bf16 %v693, %v693
    %v710 = vpack.c.bf16 %v694, %v694
    %v711 = vpack.c.bf16 %v695, %v695
    %v712 = vpack.c.bf16 %v696, %v696
    %v713 = vpack.c.bf16 %v697, %v697
    %v714 = vpack.c.bf16 %v698, %v698
    %v715 = vpack.c.bf16 %v699, %v699
    %v716 = vpack.c.bf16 %v700, %v700
    %v717 = vpack.c.bf16 %v701, %v701
    %v718 = vpack.c.bf16 %v702, %v702
    %v719 = vpack.c.bf16 %v703, %v703
    %v720 = vpack.c.bf16 %v704, %v704
    %v721 = vpack.c.bf16 %v705, %v705
    %v722 = vpack.c.bf16 %v706, %v706
    %723 = vst [vmem:[%s4] sm:$0xf] %v707
    %724 = vst [vmem:[%s4 + $0x4] sm:$0xf] %v708
    %725 = vst [vmem:[%s4 + $0x8] sm:$0xf] %v709
    %726 = vst [vmem:[%s4 + $0xc] sm:$0xf] %v710
    %727 = vst [vmem:[%s4 + $0x10] sm:$0xf] %v711
    %728 = vst [vmem:[%s4 + $0x14] sm:$0xf] %v712
    %729 = vst [vmem:[%s4 + $0x18] sm:$0xf] %v713
    %730 = vst [vmem:[%s4 + $0x1c] sm:$0xf] %v714
    %731 = vst [vmem:[%s4 + $0x20] sm:$0xf] %v715
    %732 = vst [vmem:[%s4 + $0x24] sm:$0xf] %v716
    %733 = vst [vmem:[%s4 + $0x28] sm:$0xf] %v717
    %734 = vst [vmem:[%s4 + $0x2c] sm:$0xf] %v718
    %735 = vst [vmem:[%s4 + $0x30] sm:$0xf] %v719
    %736 = vst [vmem:[%s4 + $0x34] sm:$0xf] %v720
    %737 = vst [vmem:[%s4 + $0x38] sm:$0xf] %v721
    %738 = vst [vmem:[%s4 + $0x3c] sm:$0xf] %v722
  $region25: #{densenet_forward.25} parent=0 // pred_fallthru
    _
  // Predicated region
  $region26: #{densenet_forward.25} parent=0 // pred_check
    _
  $region27: #{densenet_forward.25} parent=0 // pred_check_branch
    %740 = sbr.rel (0) target = $region29
  $region28: #{densenet_forward.25} parent=0 // pred_region
    _
  $region29: #{densenet_forward.25} parent=0 // pred_fallthru
    _
  // Predicated region
  $region30: #{densenet_forward.25} parent=0 // pred_check
    _
  $region31: #{densenet_forward.25} parent=0 // pred_check_branch
    %742 = sbr.rel (0) target = $region33
  $region32: #{densenet_forward.25} parent=0 // pred_region
    _
  $region33: #{densenet_forward.25} parent=0 // pred_fallthru
    _

// kernel: densenet_forward.29
$region0: #{densenet_forward.29}
  #allocation0 [shape = 'u32[]', space=smem, size = 0x4, offset = 0x4, fixed_abs, tag = 'smem constant byte address 0x4 - core index']
  #allocation1 [shape = 'u32[72,128]{1,0:T(1,128)}', space=vmem, size = 0x9000, scoped, tag = 'internal scratch']
  #allocation2 [shape = 'f32[32,128]{1,0:T(8,128)}', space=vmem, size = 0x4000, scoped, tag = 'scratch operand']
  %s0 = inlined_call_operand.vmem [shape: bf16[32,128], index: 0, kind: input, shape index: {}]
  %s1 = inlined_call_operand.vmem [shape: f32[1,128], index: 1, kind: input, shape index: {}]
  %s2 = inlined_call_operand.vmem [shape: f32[1,128], index: 2, kind: input, shape index: {}]
  %s3 = inlined_call_operand.vmem [shape: bf16[128,128], index: 3, kind: input, shape index: {}]
  %s4 = inlined_call_operand.vmem [shape: bf16[32,128], index: 4, kind: output, shape index: {}]
  %s5 = sld [smem:[#allocation0]]
  $region34: #{densenet_forward.29} parent=0
    _
  %s7 = ssub.s32 1, %s5
  %s8 = scalar_select 0, %s7, %s5
  // Predicated region
  $region2: #{densenet_forward.29} parent=0 // pred_check
    _
  $region3: #{densenet_forward.29} parent=0 // pred_check_branch
    %10 = sbr.rel (0) target = $region5
  $region4: #{densenet_forward.29} parent=0 // pred_region
    _
  $region5: #{densenet_forward.29} parent=0 // pred_fallthru
    _
  // Predicated region
  $region6: #{densenet_forward.29} parent=0 // pred_check
    _
  $region7: #{densenet_forward.29} parent=0 // pred_check_branch
    %12 = sbr.rel (0) target = $region9
  $region8: #{densenet_forward.29} parent=0 // pred_region
    _
  $region9: #{densenet_forward.29} parent=0 // pred_fallthru
    _
  // Predicated region
  $region10: #{densenet_forward.29} parent=0 // pred_check
    _
  $region11: #{densenet_forward.29} parent=0 // pred_check_branch
    %14 = sbr.rel (0) target = $region13
  $region12: #{densenet_forward.29} parent=0 // pred_region
    _
  $region13: #{densenet_forward.29} parent=0 // pred_fallthru
    _
  // Predicated region
  $region14: #{densenet_forward.29} parent=0 // pred_check
    _
  $region15: #{densenet_forward.29} parent=0 // pred_check_branch
    %16 = sbr.rel (0) target = $region17
  $region16: #{densenet_forward.29} parent=0 // pred_region
    _
  $region17: #{densenet_forward.29} parent=0 // pred_fallthru
    _
  %p17 = scmp.eq.s32.totalorder 0, 0
  // Predicated region
  $region18: #{densenet_forward.29} parent=0 // pred_check
    %p18 = pneg %p17
  $region19: #{densenet_forward.29} parent=0 // pred_check_branch
    %20 = sbr.rel (%p18) target = $region21
  $region20: #{densenet_forward.29} parent=0 // pred_region
    %21 = vst [vmem:[#allocation2] sm:$0xff] 0.0
    %22 = vst [vmem:[#allocation2 + $0x8] sm:$0xff] 0.0
    %23 = vst [vmem:[#allocation2 + $0x10] sm:$0xff] 0.0
    %24 = vst [vmem:[#allocation2 + $0x18] sm:$0xff] 0.0
  $region21: #{densenet_forward.29} parent=0 // pred_fallthru
    _
  %v25 = vld [vmem:[%s0] sm:$0xf]
  %v26 = vld [vmem:[%s0 + $0x4] sm:$0xf]
  %v27 = vld [vmem:[%s0 + $0x8] sm:$0xf]
  %v28 = vld [vmem:[%s0 + $0xc] sm:$0xf]
  %v29 = vunpack.c.l.bf16 %v25
  %v30 = vunpack.c.l.bf16 %v26
  %v31 = vunpack.c.l.bf16 %v27
  %v32 = vunpack.c.l.bf16 %v28
  %v33 = vld [vmem:[%s1] sm:$0x1]
  %v35 = vperm.slane %v33, 0
  %v37 = vmul.f32 %v29, %v35
  %v38 = vmul.f32 %v30, %v35
  %v39 = vmul.f32 %v31, %v35
  %v40 = vmul.f32 %v32, %v35
  %v41 = vld [vmem:[%s2] sm:$0x1]
  %v43 = vperm.slane %v41, 0
  %v45 = vadd.f32 %v37, %v43
  %v46 = vadd.f32 %v38, %v43
  %v47 = vadd.f32 %v39, %v43
  %v48 = vadd.f32 %v40, %v43
  %v49 = vmax.f32 %v45, 0.0
  %v50 = vmax.f32 %v46, 0.0
  %v51 = vmax.f32 %v47, 0.0
  %v52 = vmax.f32 %v48, 0.0
  %v53 = vpack.c.bf16 %v50, %v49
  %v54 = vpack.c.bf16 %v52, %v51
  %v55 = vld [vmem:[#allocation2] sm:$0xff]
  %v56 = vld [vmem:[#allocation2 + $0x8] sm:$0xff]
  %v57 = vld [vmem:[#allocation2 + $0x10] sm:$0xff]
  %v58 = vld [vmem:[#allocation2 + $0x18] sm:$0xff]
  %v59 = vld [vmem:[%s3] sm:$0xf]
  %v60 = vld [vmem:[%s3 + $0x4] sm:$0xf]
  %v61 = vld [vmem:[%s3 + $0x8] sm:$0xf]
  %v62 = vld [vmem:[%s3 + $0xc] sm:$0xf]
  %v63 = vld [vmem:[%s3 + $0x10] sm:$0xf]
  %v64 = vld [vmem:[%s3 + $0x14] sm:$0xf]
  %v65 = vld [vmem:[%s3 + $0x18] sm:$0xf]
  %v66 = vld [vmem:[%s3 + $0x1c] sm:$0xf]
  %v67 = vld [vmem:[%s3 + $0x20] sm:$0xf]
  %v68 = vld [vmem:[%s3 + $0x24] sm:$0xf]
  %v69 = vld [vmem:[%s3 + $0x28] sm:$0xf]
  %v70 = vld [vmem:[%s3 + $0x2c] sm:$0xf]
  %v71 = vld [vmem:[%s3 + $0x30] sm:$0xf]
  %v72 = vld [vmem:[%s3 + $0x34] sm:$0xf]
  %v73 = vld [vmem:[%s3 + $0x38] sm:$0xf]
  %v74 = vld [vmem:[%s3 + $0x3c] sm:$0xf]
  %v91 = vunpack.c.l.b16 %v59
  %v92 = vunpack.c.l.b16 %v60
  %v93 = vunpack.c.l.b16 %v61
  %v94 = vunpack.c.l.b16 %v62
  %v95 = vunpack.c.l.b16 %v63
  %v96 = vunpack.c.l.b16 %v64
  %v97 = vunpack.c.l.b16 %v65
  %v98 = vunpack.c.l.b16 %v66
  %v99 = vunpack.c.l.b16 %v67
  %v100 = vunpack.c.l.b16 %v68
  %v101 = vunpack.c.l.b16 %v69
  %v102 = vunpack.c.l.b16 %v70
  %v103 = vunpack.c.l.b16 %v71
  %v104 = vunpack.c.l.b16 %v72
  %v105 = vunpack.c.l.b16 %v73
  %v106 = vunpack.c.l.b16 %v74
  %v107 = vpack.c.b16 %v92, %v91
  %v108 = vpack.c.b16 %v94, %v93
  %v109 = vpack.c.b16 %v96, %v95
  %v110 = vpack.c.b16 %v98, %v97
  %v111 = vpack.c.b16 %v100, %v99
  %v112 = vpack.c.b16 %v102, %v101
  %v113 = vpack.c.b16 %v104, %v103
  %v114 = vpack.c.b16 %v106, %v105
  %123 = vmatpush.bf16.msra.mxu0 %v114
  %124 = vmatpush.bf16.msra.mxu0 %v113
  %125 = vmatpush.bf16.msra.mxu0 %v112
  %126 = vmatpush.bf16.msra.mxu0 %v111
  %127 = vmatpush.bf16.msra.mxu0 %v110
  %128 = vmatpush.bf16.msra.mxu0 %v109
  %129 = vmatpush.bf16.msra.mxu0 %v108
  %130 = vmatpush.bf16.msra.mxu0 %v107
  %131 = vmatmul.bf16.gmra.mxu0 %v53
  %v132 = vpop.f32.mrf.mxu0
  %v133 = vadd.f32 0.0, %v132
  %v134 = vpop.f32.mrf.mxu0
  %v135 = vadd.f32 0.0, %v134
  %136 = vmatmul.bf16.gmra.mxu0 %v54
  %v137 = vpop.f32.mrf.mxu0
  %v138 = vadd.f32 0.0, %v137
  %v139 = vpop.f32.mrf.mxu0
  %v140 = vadd.f32 0.0, %v139
  %141 = vdwg.mxu0
  %v142 = vadd.f32 %v55, %v133
  %v143 = vadd.f32 %v56, %v135
  %v144 = vadd.f32 %v57, %v138
  %v145 = vadd.f32 %v58, %v140
  %146 = vst [vmem:[#allocation2] sm:$0xff] %v142
  %147 = vst [vmem:[#allocation2 + $0x8] sm:$0xff] %v143
  %148 = vst [vmem:[#allocation2 + $0x10] sm:$0xff] %v144
  %149 = vst [vmem:[#allocation2 + $0x18] sm:$0xff] %v145
  // Predicated region
  $region22: #{densenet_forward.29} parent=0 // pred_check
    %p150 = pneg %p17
  $region23: #{densenet_forward.29} parent=0 // pred_check_branch
    %152 = sbr.rel (%p150) target = $region25
  $region24: #{densenet_forward.29} parent=0 // pred_region
    %v153 = vld [vmem:[#allocation2] sm:$0xff]
    %v154 = vld [vmem:[#allocation2 + $0x8] sm:$0xff]
    %v155 = vld [vmem:[#allocation2 + $0x10] sm:$0xff]
    %v156 = vld [vmem:[#allocation2 + $0x18] sm:$0xff]
    %v157 = vpack.c.bf16 %v153, %v153
    %v158 = vpack.c.bf16 %v154, %v154
    %v159 = vpack.c.bf16 %v155, %v155
    %v160 = vpack.c.bf16 %v156, %v156
    %161 = vst [vmem:[%s4] sm:$0xf] %v157
    %162 = vst [vmem:[%s4 + $0x4] sm:$0xf] %v158
    %163 = vst [vmem:[%s4 + $0x8] sm:$0xf] %v159
    %164 = vst [vmem:[%s4 + $0xc] sm:$0xf] %v160
  $region25: #{densenet_forward.29} parent=0 // pred_fallthru
    _
  // Predicated region
  $region26: #{densenet_forward.29} parent=0 // pred_check
    _
  $region27: #{densenet_forward.29} parent=0 // pred_check_branch
    %166 = sbr.rel (0) target = $region29
  $region28: #{densenet_forward.29} parent=0 // pred_region
    _
  $region29: #{densenet_forward.29} parent=0 // pred_fallthru
    _
  // Predicated region
  $region30: #{densenet_forward.29} parent=0 // pred_check
    _
  $region31: #{densenet_forward.29} parent=0 // pred_check_branch
    %168 = sbr.rel (0) target = $region33
  $region32: #{densenet_forward.29} parent=0 // pred_region
    _
  $region33: #{densenet_forward.29} parent=0 // pred_fallthru
    _

// kernel: densenet_forward.30
$region0: #{densenet_forward.30}
  #allocation0 [shape = 'u32[]', space=smem, size = 0x4, offset = 0x4, fixed_abs, tag = 'smem constant byte address 0x4 - core index']
  #allocation1 [shape = 'u32[72,128]{1,0:T(1,128)}', space=vmem, size = 0x9000, scoped, tag = 'internal scratch']
  #allocation2 [shape = 'f32[32,128]{1,0:T(8,128)}', space=vmem, size = 0x4000, scoped, tag = 'scratch operand']
  %s0 = inlined_call_operand.vmem [shape: bf16[32,384], index: 0, kind: input, shape index: {}]
  %s1 = inlined_call_operand.vmem [shape: f32[1,384], index: 1, kind: input, shape index: {}]
  %s2 = inlined_call_operand.vmem [shape: f32[1,384], index: 2, kind: input, shape index: {}]
  %s3 = inlined_call_operand.vmem [shape: bf16[384,128], index: 3, kind: input, shape index: {}]
  %s4 = inlined_call_operand.vmem [shape: bf16[32,128], index: 4, kind: output, shape index: {}]
  %s5 = sld [smem:[#allocation0]]
  $region34: #{densenet_forward.30} parent=0
    _
  %s7 = ssub.s32 1, %s5
  %s8 = scalar_select 0, %s7, %s5
  // Predicated region
  $region2: #{densenet_forward.30} parent=0 // pred_check
    _
  $region3: #{densenet_forward.30} parent=0 // pred_check_branch
    %10 = sbr.rel (0) target = $region5
  $region4: #{densenet_forward.30} parent=0 // pred_region
    _
  $region5: #{densenet_forward.30} parent=0 // pred_fallthru
    _
  // Predicated region
  $region6: #{densenet_forward.30} parent=0 // pred_check
    _
  $region7: #{densenet_forward.30} parent=0 // pred_check_branch
    %12 = sbr.rel (0) target = $region9
  $region8: #{densenet_forward.30} parent=0 // pred_region
    _
  $region9: #{densenet_forward.30} parent=0 // pred_fallthru
    _
  // Predicated region
  $region10: #{densenet_forward.30} parent=0 // pred_check
    _
  $region11: #{densenet_forward.30} parent=0 // pred_check_branch
    %14 = sbr.rel (0) target = $region13
  $region12: #{densenet_forward.30} parent=0 // pred_region
    _
  $region13: #{densenet_forward.30} parent=0 // pred_fallthru
    _
  // Predicated region
  $region14: #{densenet_forward.30} parent=0 // pred_check
    _
  $region15: #{densenet_forward.30} parent=0 // pred_check_branch
    %16 = sbr.rel (0) target = $region17
  $region16: #{densenet_forward.30} parent=0 // pred_region
    _
  $region17: #{densenet_forward.30} parent=0 // pred_fallthru
    _
  %p17 = scmp.eq.s32.totalorder 0, 0
  // Predicated region
  $region18: #{densenet_forward.30} parent=0 // pred_check
    %p18 = pneg %p17
  $region19: #{densenet_forward.30} parent=0 // pred_check_branch
    %20 = sbr.rel (%p18) target = $region21
  $region20: #{densenet_forward.30} parent=0 // pred_region
    %21 = vst [vmem:[#allocation2] sm:$0xff] 0.0
    %22 = vst [vmem:[#allocation2 + $0x8] sm:$0xff] 0.0
    %23 = vst [vmem:[#allocation2 + $0x10] sm:$0xff] 0.0
    %24 = vst [vmem:[#allocation2 + $0x18] sm:$0xff] 0.0
  $region21: #{densenet_forward.30} parent=0 // pred_fallthru
    _
  %v25 = vld [vmem:[%s0] sm:$0xff]
  %v26 = vld [vmem:[%s0 + $0x8] sm:$0xf]
  %v27 = vld [vmem:[%s0 + $0xc] sm:$0xff]
  %v28 = vld [vmem:[%s0 + $0x14] sm:$0xf]
  %v29 = vld [vmem:[%s0 + $0x18] sm:$0xff]
  %v30 = vld [vmem:[%s0 + $0x20] sm:$0xf]
  %v31 = vld [vmem:[%s0 + $0x24] sm:$0xff]
  %v32 = vld [vmem:[%s0 + $0x2c] sm:$0xf]
  %v33 = vunpack.c.l.bf16 %v25
  %v34 = vunpack.c.h.bf16 %v25
  %v35 = vunpack.c.l.bf16 %v26
  %v36 = vunpack.c.l.bf16 %v27
  %v37 = vunpack.c.h.bf16 %v27
  %v38 = vunpack.c.l.bf16 %v28
  %v39 = vunpack.c.l.bf16 %v29
  %v40 = vunpack.c.h.bf16 %v29
  %v41 = vunpack.c.l.bf16 %v30
  %v42 = vunpack.c.l.bf16 %v31
  %v43 = vunpack.c.h.bf16 %v31
  %v44 = vunpack.c.l.bf16 %v32
  %v45 = vld [vmem:[%s1] sm:$0x7]
  %v47 = vperm.slane %v45, 0
  %v48 = vperm.slane %v45, 1
  %v49 = vperm.slane %v45, 2
  %v53 = vmul.f32 %v33, %v47
  %v54 = vmul.f32 %v34, %v48
  %v55 = vmul.f32 %v35, %v49
  %v56 = vmul.f32 %v36, %v47
  %v57 = vmul.f32 %v37, %v48
  %v58 = vmul.f32 %v38, %v49
  %v59 = vmul.f32 %v39, %v47
  %v60 = vmul.f32 %v40, %v48
  %v61 = vmul.f32 %v41, %v49
  %v62 = vmul.f32 %v42, %v47
  %v63 = vmul.f32 %v43, %v48
  %v64 = vmul.f32 %v44, %v49
  %v65 = vld [vmem:[%s2] sm:$0x7]
  %v67 = vperm.slane %v65, 0
  %v68 = vperm.slane %v65, 1
  %v69 = vperm.slane %v65, 2
  %v73 = vadd.f32 %v53, %v67
  %v74 = vadd.f32 %v54, %v68
  %v75 = vadd.f32 %v55, %v69
  %v76 = vadd.f32 %v56, %v67
  %v77 = vadd.f32 %v57, %v68
  %v78 = vadd.f32 %v58, %v69
  %v79 = vadd.f32 %v59, %v67
  %v80 = vadd.f32 %v60, %v68
  %v81 = vadd.f32 %v61, %v69
  %v82 = vadd.f32 %v62, %v67
  %v83 = vadd.f32 %v63, %v68
  %v84 = vadd.f32 %v64, %v69
  %v85 = vmax.f32 %v73, 0.0
  %v86 = vmax.f32 %v74, 0.0
  %v87 = vmax.f32 %v75, 0.0
  %v88 = vmax.f32 %v76, 0.0
  %v89 = vmax.f32 %v77, 0.0
  %v90 = vmax.f32 %v78, 0.0
  %v91 = vmax.f32 %v79, 0.0
  %v92 = vmax.f32 %v80, 0.0
  %v93 = vmax.f32 %v81, 0.0
  %v94 = vmax.f32 %v82, 0.0
  %v95 = vmax.f32 %v83, 0.0
  %v96 = vmax.f32 %v84, 0.0
  %v97 = vpack.c.bf16 %v88, %v85
  %v98 = vpack.c.bf16 %v89, %v86
  %v99 = vpack.c.bf16 %v90, %v87
  %v100 = vpack.c.bf16 %v94, %v91
  %v101 = vpack.c.bf16 %v95, %v92
  %v102 = vpack.c.bf16 %v96, %v93
  %v103 = vld [vmem:[#allocation2] sm:$0xff]
  %v104 = vld [vmem:[#allocation2 + $0x8] sm:$0xff]
  %v105 = vld [vmem:[#allocation2 + $0x10] sm:$0xff]
  %v106 = vld [vmem:[#allocation2 + $0x18] sm:$0xff]
  %v107 = vld [vmem:[%s3] sm:$0xf]
  %v108 = vld [vmem:[%s3 + $0x4] sm:$0xf]
  %v109 = vld [vmem:[%s3 + $0x8] sm:$0xf]
  %v110 = vld [vmem:[%s3 + $0xc] sm:$0xf]
  %v111 = vld [vmem:[%s3 + $0x10] sm:$0xf]
  %v112 = vld [vmem:[%s3 + $0x14] sm:$0xf]
  %v113 = vld [vmem:[%s3 + $0x18] sm:$0xf]
  %v114 = vld [vmem:[%s3 + $0x1c] sm:$0xf]
  %v115 = vld [vmem:[%s3 + $0x20] sm:$0xf]
  %v116 = vld [vmem:[%s3 + $0x24] sm:$0xf]
  %v117 = vld [vmem:[%s3 + $0x28] sm:$0xf]
  %v118 = vld [vmem:[%s3 + $0x2c] sm:$0xf]
  %v119 = vld [vmem:[%s3 + $0x30] sm:$0xf]
  %v120 = vld [vmem:[%s3 + $0x34] sm:$0xf]
  %v121 = vld [vmem:[%s3 + $0x38] sm:$0xf]
  %v122 = vld [vmem:[%s3 + $0x3c] sm:$0xf]
  %v123 = vld [vmem:[%s3 + $0x40] sm:$0xf]
  %v124 = vld [vmem:[%s3 + $0x44] sm:$0xf]
  %v125 = vld [vmem:[%s3 + $0x48] sm:$0xf]
  %v126 = vld [vmem:[%s3 + $0x4c] sm:$0xf]
  %v127 = vld [vmem:[%s3 + $0x50] sm:$0xf]
  %v128 = vld [vmem:[%s3 + $0x54] sm:$0xf]
  %v129 = vld [vmem:[%s3 + $0x58] sm:$0xf]
  %v130 = vld [vmem:[%s3 + $0x5c] sm:$0xf]
  %v131 = vld [vmem:[%s3 + $0x60] sm:$0xf]
  %v132 = vld [vmem:[%s3 + $0x64] sm:$0xf]
  %v133 = vld [vmem:[%s3 + $0x68] sm:$0xf]
  %v134 = vld [vmem:[%s3 + $0x6c] sm:$0xf]
  %v135 = vld [vmem:[%s3 + $0x70] sm:$0xf]
  %v136 = vld [vmem:[%s3 + $0x74] sm:$0xf]
  %v137 = vld [vmem:[%s3 + $0x78] sm:$0xf]
  %v138 = vld [vmem:[%s3 + $0x7c] sm:$0xf]
  %v139 = vld [vmem:[%s3 + $0x80] sm:$0xf]
  %v140 = vld [vmem:[%s3 + $0x84] sm:$0xf]
  %v141 = vld [vmem:[%s3 + $0x88] sm:$0xf]
  %v142 = vld [vmem:[%s3 + $0x8c] sm:$0xf]
  %v143 = vld [vmem:[%s3 + $0x90] sm:$0xf]
  %v144 = vld [vmem:[%s3 + $0x94] sm:$0xf]
  %v145 = vld [vmem:[%s3 + $0x98] sm:$0xf]
  %v146 = vld [vmem:[%s3 + $0x9c] sm:$0xf]
  %v147 = vld [vmem:[%s3 + $0xa0] sm:$0xf]
  %v148 = vld [vmem:[%s3 + $0xa4] sm:$0xf]
  %v149 = vld [vmem:[%s3 + $0xa8] sm:$0xf]
  %v150 = vld [vmem:[%s3 + $0xac] sm:$0xf]
  %v151 = vld [vmem:[%s3 + $0xb0] sm:$0xf]
  %v152 = vld [vmem:[%s3 + $0xb4] sm:$0xf]
  %v153 = vld [vmem:[%s3 + $0xb8] sm:$0xf]
  %v154 = vld [vmem:[%s3 + $0xbc] sm:$0xf]
  %v203 = vunpack.c.l.b16 %v107
  %v204 = vunpack.c.l.b16 %v108
  %v205 = vunpack.c.l.b16 %v109
  %v206 = vunpack.c.l.b16 %v110
  %v207 = vunpack.c.l.b16 %v111
  %v208 = vunpack.c.l.b16 %v112
  %v209 = vunpack.c.l.b16 %v113
  %v210 = vunpack.c.l.b16 %v114
  %v211 = vunpack.c.l.b16 %v115
  %v212 = vunpack.c.l.b16 %v116
  %v213 = vunpack.c.l.b16 %v117
  %v214 = vunpack.c.l.b16 %v118
  %v215 = vunpack.c.l.b16 %v119
  %v216 = vunpack.c.l.b16 %v120
  %v217 = vunpack.c.l.b16 %v121
  %v218 = vunpack.c.l.b16 %v122
  %v219 = vunpack.c.l.b16 %v123
  %v220 = vunpack.c.l.b16 %v124
  %v221 = vunpack.c.l.b16 %v125
  %v222 = vunpack.c.l.b16 %v126
  %v223 = vunpack.c.l.b16 %v127
  %v224 = vunpack.c.l.b16 %v128
  %v225 = vunpack.c.l.b16 %v129
  %v226 = vunpack.c.l.b16 %v130
  %v227 = vunpack.c.l.b16 %v131
  %v228 = vunpack.c.l.b16 %v132
  %v229 = vunpack.c.l.b16 %v133
  %v230 = vunpack.c.l.b16 %v134
  %v231 = vunpack.c.l.b16 %v135
  %v232 = vunpack.c.l.b16 %v136
  %v233 = vunpack.c.l.b16 %v137
  %v234 = vunpack.c.l.b16 %v138
  %v235 = vunpack.c.l.b16 %v139
  %v236 = vunpack.c.l.b16 %v140
  %v237 = vunpack.c.l.b16 %v141
  %v238 = vunpack.c.l.b16 %v142
  %v239 = vunpack.c.l.b16 %v143
  %v240 = vunpack.c.l.b16 %v144
  %v241 = vunpack.c.l.b16 %v145
  %v242 = vunpack.c.l.b16 %v146
  %v243 = vunpack.c.l.b16 %v147
  %v244 = vunpack.c.l.b16 %v148
  %v245 = vunpack.c.l.b16 %v149
  %v246 = vunpack.c.l.b16 %v150
  %v247 = vunpack.c.l.b16 %v151
  %v248 = vunpack.c.l.b16 %v152
  %v249 = vunpack.c.l.b16 %v153
  %v250 = vunpack.c.l.b16 %v154
  %v251 = vpack.c.b16 %v204, %v203
  %v252 = vpack.c.b16 %v206, %v205
  %v253 = vpack.c.b16 %v208, %v207
  %v254 = vpack.c.b16 %v210, %v209
  %v255 = vpack.c.b16 %v212, %v211
  %v256 = vpack.c.b16 %v214, %v213
  %v257 = vpack.c.b16 %v216, %v215
  %v258 = vpack.c.b16 %v218, %v217
  %v259 = vpack.c.b16 %v220, %v219
  %v260 = vpack.c.b16 %v222, %v221
  %v261 = vpack.c.b16 %v224, %v223
  %v262 = vpack.c.b16 %v226, %v225
  %v263 = vpack.c.b16 %v228, %v227
  %v264 = vpack.c.b16 %v230, %v229
  %v265 = vpack.c.b16 %v232, %v231
  %v266 = vpack.c.b16 %v234, %v233
  %v267 = vpack.c.b16 %v236, %v235
  %v268 = vpack.c.b16 %v238, %v237
  %v269 = vpack.c.b16 %v240, %v239
  %v270 = vpack.c.b16 %v242, %v241
  %v271 = vpack.c.b16 %v244, %v243
  %v272 = vpack.c.b16 %v246, %v245
  %v273 = vpack.c.b16 %v248, %v247
  %v274 = vpack.c.b16 %v250, %v249
  %299 = vmatpush.bf16.msra.mxu0 %v258
  %300 = vmatpush.bf16.msra.mxu0 %v257
  %301 = vmatpush.bf16.msra.mxu0 %v256
  %302 = vmatpush.bf16.msra.mxu0 %v255
  %303 = vmatpush.bf16.msra.mxu0 %v254
  %304 = vmatpush.bf16.msra.mxu0 %v253
  %305 = vmatpush.bf16.msra.mxu0 %v252
  %306 = vmatpush.bf16.msra.mxu0 %v251
  %307 = vmatmul.bf16.gmra.mxu0 %v97
  %v308 = vpop.f32.mrf.mxu0
  %v309 = vadd.f32 0.0, %v308
  %v310 = vpop.f32.mrf.mxu0
  %v311 = vadd.f32 0.0, %v310
  %312 = vmatmul.bf16.gmra.mxu0 %v100
  %v313 = vpop.f32.mrf.mxu0
  %v314 = vadd.f32 0.0, %v313
  %v315 = vpop.f32.mrf.mxu0
  %v316 = vadd.f32 0.0, %v315
  %317 = vdwg.mxu0
  %318 = vmatpush.bf16.msra.mxu0 %v266
  %319 = vmatpush.bf16.msra.mxu0 %v265
  %320 = vmatpush.bf16.msra.mxu0 %v264
  %321 = vmatpush.bf16.msra.mxu0 %v263
  %322 = vmatpush.bf16.msra.mxu0 %v262
  %323 = vmatpush.bf16.msra.mxu0 %v261
  %324 = vmatpush.bf16.msra.mxu0 %v260
  %325 = vmatpush.bf16.msra.mxu0 %v259
  %326 = vmatmul.bf16.gmra.mxu0 %v98
  %v327 = vpop.f32.mrf.mxu0
  %v328 = vadd.f32 %v309, %v327
  %v329 = vpop.f32.mrf.mxu0
  %v330 = vadd.f32 %v311, %v329
  %331 = vmatmul.bf16.gmra.mxu0 %v101
  %v332 = vpop.f32.mrf.mxu0
  %v333 = vadd.f32 %v314, %v332
  %v334 = vpop.f32.mrf.mxu0
  %v335 = vadd.f32 %v316, %v334
  %336 = vdwg.mxu0
  %337 = vmatpush.bf16.msra.mxu0 %v274
  %338 = vmatpush.bf16.msra.mxu0 %v273
  %339 = vmatpush.bf16.msra.mxu0 %v272
  %340 = vmatpush.bf16.msra.mxu0 %v271
  %341 = vmatpush.bf16.msra.mxu0 %v270
  %342 = vmatpush.bf16.msra.mxu0 %v269
  %343 = vmatpush.bf16.msra.mxu0 %v268
  %344 = vmatpush.bf16.msra.mxu0 %v267
  %345 = vmatmul.bf16.gmra.mxu0 %v99
  %v346 = vpop.f32.mrf.mxu0
  %v347 = vadd.f32 %v328, %v346
  %v348 = vpop.f32.mrf.mxu0
  %v349 = vadd.f32 %v330, %v348
  %350 = vmatmul.bf16.gmra.mxu0 %v102
  %v351 = vpop.f32.mrf.mxu0
  %v352 = vadd.f32 %v333, %v351
  %v353 = vpop.f32.mrf.mxu0
  %v354 = vadd.f32 %v335, %v353
  %355 = vdwg.mxu0
  %v356 = vadd.f32 %v103, %v347
  %v357 = vadd.f32 %v104, %v349
  %v358 = vadd.f32 %v105, %v352
  %v359 = vadd.f32 %v106, %v354
  %360 = vst [vmem:[#allocation2] sm:$0xff] %v356
  %361 = vst [vmem:[#allocation2 + $0x8] sm:$0xff] %v357
  %362 = vst [vmem:[#allocation2 + $0x10] sm:$0xff] %v358
  %363 = vst [vmem:[#allocation2 + $0x18] sm:$0xff] %v359
  // Predicated region
  $region22: #{densenet_forward.30} parent=0 // pred_check
    %p364 = pneg %p17
  $region23: #{densenet_forward.30} parent=0 // pred_check_branch
    %366 = sbr.rel (%p364) target = $region25
  $region24: #{densenet_forward.30} parent=0 // pred_region
    %v367 = vld [vmem:[#allocation2] sm:$0xff]
    %v368 = vld [vmem:[#allocation2 + $0x8] sm:$0xff]
    %v369 = vld [vmem:[#allocation2 + $0x10] sm:$0xff]
    %v370 = vld [vmem:[#allocation2 + $0x18] sm:$0xff]
    %v371 = vpack.c.bf16 %v367, %v367
    %v372 = vpack.c.bf16 %v368, %v368
    %v373 = vpack.c.bf16 %v369, %v369
    %v374 = vpack.c.bf16 %v370, %v370
    %375 = vst [vmem:[%s4] sm:$0xf] %v371
    %376 = vst [vmem:[%s4 + $0x4] sm:$0xf] %v372
    %377 = vst [vmem:[%s4 + $0x8] sm:$0xf] %v373
    %378 = vst [vmem:[%s4 + $0xc] sm:$0xf] %v374
  $region25: #{densenet_forward.30} parent=0 // pred_fallthru
    _
  // Predicated region
  $region26: #{densenet_forward.30} parent=0 // pred_check
    _
  $region27: #{densenet_forward.30} parent=0 // pred_check_branch
    %380 = sbr.rel (0) target = $region29
  $region28: #{densenet_forward.30} parent=0 // pred_region
    _
  $region29: #{densenet_forward.30} parent=0 // pred_fallthru
    _
  // Predicated region
  $region30: #{densenet_forward.30} parent=0 // pred_check
    _
  $region31: #{densenet_forward.30} parent=0 // pred_check_branch
    %382 = sbr.rel (0) target = $region33
  $region32: #{densenet_forward.30} parent=0 // pred_region
    _
  $region33: #{densenet_forward.30} parent=0 // pred_fallthru
    _

// kernel: densenet_forward.34
$region0: #{densenet_forward.34}
  #allocation0 [shape = 'u32[]', space=smem, size = 0x4, offset = 0x4, fixed_abs, tag = 'smem constant byte address 0x4 - core index']
  #allocation1 [shape = 'u32[72,128]{1,0:T(1,128)}', space=vmem, size = 0x9000, scoped, tag = 'internal scratch']
  #allocation2 [shape = 'f32[8,128]{1,0:T(8,128)}', space=vmem, size = 0x1000, scoped, tag = 'scratch operand']
  %s0 = inlined_call_operand.vmem [shape: bf16[8,128], index: 0, kind: input, shape index: {}]
  %s1 = inlined_call_operand.vmem [shape: f32[1,128], index: 1, kind: input, shape index: {}]
  %s2 = inlined_call_operand.vmem [shape: f32[1,128], index: 2, kind: input, shape index: {}]
  %s3 = inlined_call_operand.vmem [shape: bf16[128,128], index: 3, kind: input, shape index: {}]
  %s4 = inlined_call_operand.vmem [shape: bf16[8,128], index: 4, kind: output, shape index: {}]
  %s5 = sld [smem:[#allocation0]]
  $region34: #{densenet_forward.34} parent=0
    _
  %s7 = ssub.s32 1, %s5
  %s8 = scalar_select 0, %s7, %s5
  // Predicated region
  $region2: #{densenet_forward.34} parent=0 // pred_check
    _
  $region3: #{densenet_forward.34} parent=0 // pred_check_branch
    %10 = sbr.rel (0) target = $region5
  $region4: #{densenet_forward.34} parent=0 // pred_region
    _
  $region5: #{densenet_forward.34} parent=0 // pred_fallthru
    _
  // Predicated region
  $region6: #{densenet_forward.34} parent=0 // pred_check
    _
  $region7: #{densenet_forward.34} parent=0 // pred_check_branch
    %12 = sbr.rel (0) target = $region9
  $region8: #{densenet_forward.34} parent=0 // pred_region
    _
  $region9: #{densenet_forward.34} parent=0 // pred_fallthru
    _
  // Predicated region
  $region10: #{densenet_forward.34} parent=0 // pred_check
    _
  $region11: #{densenet_forward.34} parent=0 // pred_check_branch
    %14 = sbr.rel (0) target = $region13
  $region12: #{densenet_forward.34} parent=0 // pred_region
    _
  $region13: #{densenet_forward.34} parent=0 // pred_fallthru
    _
  // Predicated region
  $region14: #{densenet_forward.34} parent=0 // pred_check
    _
  $region15: #{densenet_forward.34} parent=0 // pred_check_branch
    %16 = sbr.rel (0) target = $region17
  $region16: #{densenet_forward.34} parent=0 // pred_region
    _
  $region17: #{densenet_forward.34} parent=0 // pred_fallthru
    _
  %p17 = scmp.eq.s32.totalorder 0, 0
  // Predicated region
  $region18: #{densenet_forward.34} parent=0 // pred_check
    %p18 = pneg %p17
  $region19: #{densenet_forward.34} parent=0 // pred_check_branch
    %20 = sbr.rel (%p18) target = $region21
  $region20: #{densenet_forward.34} parent=0 // pred_region
    %21 = vst [vmem:[#allocation2] sm:$0xff] 0.0
  $region21: #{densenet_forward.34} parent=0 // pred_fallthru
    _
  %v22 = vld [vmem:[%s0] sm:$0xf]
  %v23 = vunpack.c.l.bf16 %v22
  %v24 = vld [vmem:[%s1] sm:$0x1]
  %v26 = vperm.slane %v24, 0
  %v28 = vmul.f32 %v23, %v26
  %v29 = vld [vmem:[%s2] sm:$0x1]
  %v31 = vperm.slane %v29, 0
  %v33 = vadd.f32 %v28, %v31
  %v34 = vmax.f32 %v33, 0.0
  %v35 = vpack.c.bf16 %v34, %v34
  %v36 = vld [vmem:[#allocation2] sm:$0xff]
  %v37 = vld [vmem:[%s3] sm:$0xf]
  %v38 = vld [vmem:[%s3 + $0x4] sm:$0xf]
  %v39 = vld [vmem:[%s3 + $0x8] sm:$0xf]
  %v40 = vld [vmem:[%s3 + $0xc] sm:$0xf]
  %v41 = vld [vmem:[%s3 + $0x10] sm:$0xf]
  %v42 = vld [vmem:[%s3 + $0x14] sm:$0xf]
  %v43 = vld [vmem:[%s3 + $0x18] sm:$0xf]
  %v44 = vld [vmem:[%s3 + $0x1c] sm:$0xf]
  %v45 = vld [vmem:[%s3 + $0x20] sm:$0xf]
  %v46 = vld [vmem:[%s3 + $0x24] sm:$0xf]
  %v47 = vld [vmem:[%s3 + $0x28] sm:$0xf]
  %v48 = vld [vmem:[%s3 + $0x2c] sm:$0xf]
  %v49 = vld [vmem:[%s3 + $0x30] sm:$0xf]
  %v50 = vld [vmem:[%s3 + $0x34] sm:$0xf]
  %v51 = vld [vmem:[%s3 + $0x38] sm:$0xf]
  %v52 = vld [vmem:[%s3 + $0x3c] sm:$0xf]
  %v69 = vunpack.c.l.b16 %v37
  %v70 = vunpack.c.l.b16 %v38
  %v71 = vunpack.c.l.b16 %v39
  %v72 = vunpack.c.l.b16 %v40
  %v73 = vunpack.c.l.b16 %v41
  %v74 = vunpack.c.l.b16 %v42
  %v75 = vunpack.c.l.b16 %v43
  %v76 = vunpack.c.l.b16 %v44
  %v77 = vunpack.c.l.b16 %v45
  %v78 = vunpack.c.l.b16 %v46
  %v79 = vunpack.c.l.b16 %v47
  %v80 = vunpack.c.l.b16 %v48
  %v81 = vunpack.c.l.b16 %v49
  %v82 = vunpack.c.l.b16 %v50
  %v83 = vunpack.c.l.b16 %v51
  %v84 = vunpack.c.l.b16 %v52
  %v85 = vpack.c.b16 %v70, %v69
  %v86 = vpack.c.b16 %v72, %v71
  %v87 = vpack.c.b16 %v74, %v73
  %v88 = vpack.c.b16 %v76, %v75
  %v89 = vpack.c.b16 %v78, %v77
  %v90 = vpack.c.b16 %v80, %v79
  %v91 = vpack.c.b16 %v82, %v81
  %v92 = vpack.c.b16 %v84, %v83
  %101 = vmatpush.bf16.msra.mxu0 %v92
  %102 = vmatpush.bf16.msra.mxu0 %v91
  %103 = vmatpush.bf16.msra.mxu0 %v90
  %104 = vmatpush.bf16.msra.mxu0 %v89
  %105 = vmatpush.bf16.msra.mxu0 %v88
  %106 = vmatpush.bf16.msra.mxu0 %v87
  %107 = vmatpush.bf16.msra.mxu0 %v86
  %108 = vmatpush.bf16.msra.mxu0 %v85
  %109 = vmatmul.bf16.gmra.mxu0 %v35
  %v110 = vpop.f32.mrf.mxu0
  %v111 = vadd.f32 0.0, %v110
  %v112 = vpop.f32.mrf.mxu0
  %113 = vdwg.mxu0
  %v114 = vadd.f32 %v36, %v111
  %115 = vst [vmem:[#allocation2] sm:$0xff] %v114
  // Predicated region
  $region22: #{densenet_forward.34} parent=0 // pred_check
    %p116 = pneg %p17
  $region23: #{densenet_forward.34} parent=0 // pred_check_branch
    %118 = sbr.rel (%p116) target = $region25
  $region24: #{densenet_forward.34} parent=0 // pred_region
    %v119 = vld [vmem:[#allocation2] sm:$0xff]
    %v120 = vpack.c.bf16 %v119, %v119
    %121 = vst [vmem:[%s4] sm:$0xf] %v120
  $region25: #{densenet_forward.34} parent=0 // pred_fallthru
    _
  // Predicated region
  $region26: #{densenet_forward.34} parent=0 // pred_check
    _
  $region27: #{densenet_forward.34} parent=0 // pred_check_branch
    %123 = sbr.rel (0) target = $region29
  $region28: #{densenet_forward.34} parent=0 // pred_region
    _
  $region29: #{densenet_forward.34} parent=0 // pred_fallthru
    _
  // Predicated region
  $region30: #{densenet_forward.34} parent=0 // pred_check
    _
  $region31: #{densenet_forward.34} parent=0 // pred_check_branch
    %125 = sbr.rel (0) target = $region33
  $region32: #{densenet_forward.34} parent=0 // pred_region
    _
  $region33: #{densenet_forward.34} parent=0 // pred_fallthru
    _

// kernel: densenet_forward.35
$region0: #{densenet_forward.35}
  #allocation0 [shape = 'u32[]', space=smem, size = 0x4, offset = 0x4, fixed_abs, tag = 'smem constant byte address 0x4 - core index']
  #allocation1 [shape = 'u32[72,128]{1,0:T(1,128)}', space=vmem, size = 0x9000, scoped, tag = 'internal scratch']
  #allocation2 [shape = 'f32[8,128]{1,0:T(8,128)}', space=vmem, size = 0x1000, scoped, tag = 'scratch operand']
  %s0 = inlined_call_operand.vmem [shape: bf16[8,384], index: 0, kind: input, shape index: {}]
  %s1 = inlined_call_operand.vmem [shape: f32[1,384], index: 1, kind: input, shape index: {}]
  %s2 = inlined_call_operand.vmem [shape: f32[1,384], index: 2, kind: input, shape index: {}]
  %s3 = inlined_call_operand.vmem [shape: bf16[384,128], index: 3, kind: input, shape index: {}]
  %s4 = inlined_call_operand.vmem [shape: bf16[8,128], index: 4, kind: output, shape index: {}]
  %s5 = sld [smem:[#allocation0]]
  $region34: #{densenet_forward.35} parent=0
    _
  %s7 = ssub.s32 1, %s5
  %s8 = scalar_select 0, %s7, %s5
  // Predicated region
  $region2: #{densenet_forward.35} parent=0 // pred_check
    _
  $region3: #{densenet_forward.35} parent=0 // pred_check_branch
    %10 = sbr.rel (0) target = $region5
  $region4: #{densenet_forward.35} parent=0 // pred_region
    _
  $region5: #{densenet_forward.35} parent=0 // pred_fallthru
    _
  // Predicated region
  $region6: #{densenet_forward.35} parent=0 // pred_check
    _
  $region7: #{densenet_forward.35} parent=0 // pred_check_branch
    %12 = sbr.rel (0) target = $region9
  $region8: #{densenet_forward.35} parent=0 // pred_region
    _
  $region9: #{densenet_forward.35} parent=0 // pred_fallthru
    _
  // Predicated region
  $region10: #{densenet_forward.35} parent=0 // pred_check
    _
  $region11: #{densenet_forward.35} parent=0 // pred_check_branch
    %14 = sbr.rel (0) target = $region13
  $region12: #{densenet_forward.35} parent=0 // pred_region
    _
  $region13: #{densenet_forward.35} parent=0 // pred_fallthru
    _
  // Predicated region
  $region14: #{densenet_forward.35} parent=0 // pred_check
    _
  $region15: #{densenet_forward.35} parent=0 // pred_check_branch
    %16 = sbr.rel (0) target = $region17
  $region16: #{densenet_forward.35} parent=0 // pred_region
    _
  $region17: #{densenet_forward.35} parent=0 // pred_fallthru
    _
  %p17 = scmp.eq.s32.totalorder 0, 0
  // Predicated region
  $region18: #{densenet_forward.35} parent=0 // pred_check
    %p18 = pneg %p17
  $region19: #{densenet_forward.35} parent=0 // pred_check_branch
    %20 = sbr.rel (%p18) target = $region21
  $region20: #{densenet_forward.35} parent=0 // pred_region
    %21 = vst [vmem:[#allocation2] sm:$0xff] 0.0
  $region21: #{densenet_forward.35} parent=0 // pred_fallthru
    _
  %v22 = vld [vmem:[%s0] sm:$0xff]
  %v23 = vld [vmem:[%s0 + $0x8] sm:$0xf]
  %v24 = vunpack.c.l.bf16 %v22
  %v25 = vunpack.c.h.bf16 %v22
  %v26 = vunpack.c.l.bf16 %v23
  %v27 = vld [vmem:[%s1] sm:$0x7]
  %v29 = vperm.slane %v27, 0
  %v30 = vperm.slane %v27, 1
  %v31 = vperm.slane %v27, 2
  %v35 = vmul.f32 %v24, %v29
  %v36 = vmul.f32 %v25, %v30
  %v37 = vmul.f32 %v26, %v31
  %v38 = vld [vmem:[%s2] sm:$0x7]
  %v40 = vperm.slane %v38, 0
  %v41 = vperm.slane %v38, 1
  %v42 = vperm.slane %v38, 2
  %v46 = vadd.f32 %v35, %v40
  %v47 = vadd.f32 %v36, %v41
  %v48 = vadd.f32 %v37, %v42
  %v49 = vmax.f32 %v46, 0.0
  %v50 = vmax.f32 %v47, 0.0
  %v51 = vmax.f32 %v48, 0.0
  %v52 = vpack.c.bf16 %v49, %v49
  %v53 = vpack.c.bf16 %v50, %v50
  %v54 = vpack.c.bf16 %v51, %v51
  %v55 = vld [vmem:[#allocation2] sm:$0xff]
  %v56 = vld [vmem:[%s3] sm:$0xf]
  %v57 = vld [vmem:[%s3 + $0x4] sm:$0xf]
  %v58 = vld [vmem:[%s3 + $0x8] sm:$0xf]
  %v59 = vld [vmem:[%s3 + $0xc] sm:$0xf]
  %v60 = vld [vmem:[%s3 + $0x10] sm:$0xf]
  %v61 = vld [vmem:[%s3 + $0x14] sm:$0xf]
  %v62 = vld [vmem:[%s3 + $0x18] sm:$0xf]
  %v63 = vld [vmem:[%s3 + $0x1c] sm:$0xf]
  %v64 = vld [vmem:[%s3 + $0x20] sm:$0xf]
  %v65 = vld [vmem:[%s3 + $0x24] sm:$0xf]
  %v66 = vld [vmem:[%s3 + $0x28] sm:$0xf]
  %v67 = vld [vmem:[%s3 + $0x2c] sm:$0xf]
  %v68 = vld [vmem:[%s3 + $0x30] sm:$0xf]
  %v69 = vld [vmem:[%s3 + $0x34] sm:$0xf]
  %v70 = vld [vmem:[%s3 + $0x38] sm:$0xf]
  %v71 = vld [vmem:[%s3 + $0x3c] sm:$0xf]
  %v72 = vld [vmem:[%s3 + $0x40] sm:$0xf]
  %v73 = vld [vmem:[%s3 + $0x44] sm:$0xf]
  %v74 = vld [vmem:[%s3 + $0x48] sm:$0xf]
  %v75 = vld [vmem:[%s3 + $0x4c] sm:$0xf]
  %v76 = vld [vmem:[%s3 + $0x50] sm:$0xf]
  %v77 = vld [vmem:[%s3 + $0x54] sm:$0xf]
  %v78 = vld [vmem:[%s3 + $0x58] sm:$0xf]
  %v79 = vld [vmem:[%s3 + $0x5c] sm:$0xf]
  %v80 = vld [vmem:[%s3 + $0x60] sm:$0xf]
  %v81 = vld [vmem:[%s3 + $0x64] sm:$0xf]
  %v82 = vld [vmem:[%s3 + $0x68] sm:$0xf]
  %v83 = vld [vmem:[%s3 + $0x6c] sm:$0xf]
  %v84 = vld [vmem:[%s3 + $0x70] sm:$0xf]
  %v85 = vld [vmem:[%s3 + $0x74] sm:$0xf]
  %v86 = vld [vmem:[%s3 + $0x78] sm:$0xf]
  %v87 = vld [vmem:[%s3 + $0x7c] sm:$0xf]
  %v88 = vld [vmem:[%s3 + $0x80] sm:$0xf]
  %v89 = vld [vmem:[%s3 + $0x84] sm:$0xf]
  %v90 = vld [vmem:[%s3 + $0x88] sm:$0xf]
  %v91 = vld [vmem:[%s3 + $0x8c] sm:$0xf]
  %v92 = vld [vmem:[%s3 + $0x90] sm:$0xf]
  %v93 = vld [vmem:[%s3 + $0x94] sm:$0xf]
  %v94 = vld [vmem:[%s3 + $0x98] sm:$0xf]
  %v95 = vld [vmem:[%s3 + $0x9c] sm:$0xf]
  %v96 = vld [vmem:[%s3 + $0xa0] sm:$0xf]
  %v97 = vld [vmem:[%s3 + $0xa4] sm:$0xf]
  %v98 = vld [vmem:[%s3 + $0xa8] sm:$0xf]
  %v99 = vld [vmem:[%s3 + $0xac] sm:$0xf]
  %v100 = vld [vmem:[%s3 + $0xb0] sm:$0xf]
  %v101 = vld [vmem:[%s3 + $0xb4] sm:$0xf]
  %v102 = vld [vmem:[%s3 + $0xb8] sm:$0xf]
  %v103 = vld [vmem:[%s3 + $0xbc] sm:$0xf]
  %v152 = vunpack.c.l.b16 %v56
  %v153 = vunpack.c.l.b16 %v57
  %v154 = vunpack.c.l.b16 %v58
  %v155 = vunpack.c.l.b16 %v59
  %v156 = vunpack.c.l.b16 %v60
  %v157 = vunpack.c.l.b16 %v61
  %v158 = vunpack.c.l.b16 %v62
  %v159 = vunpack.c.l.b16 %v63
  %v160 = vunpack.c.l.b16 %v64
  %v161 = vunpack.c.l.b16 %v65
  %v162 = vunpack.c.l.b16 %v66
  %v163 = vunpack.c.l.b16 %v67
  %v164 = vunpack.c.l.b16 %v68
  %v165 = vunpack.c.l.b16 %v69
  %v166 = vunpack.c.l.b16 %v70
  %v167 = vunpack.c.l.b16 %v71
  %v168 = vunpack.c.l.b16 %v72
  %v169 = vunpack.c.l.b16 %v73
  %v170 = vunpack.c.l.b16 %v74
  %v171 = vunpack.c.l.b16 %v75
  %v172 = vunpack.c.l.b16 %v76
  %v173 = vunpack.c.l.b16 %v77
  %v174 = vunpack.c.l.b16 %v78
  %v175 = vunpack.c.l.b16 %v79
  %v176 = vunpack.c.l.b16 %v80
  %v177 = vunpack.c.l.b16 %v81
  %v178 = vunpack.c.l.b16 %v82
  %v179 = vunpack.c.l.b16 %v83
  %v180 = vunpack.c.l.b16 %v84
  %v181 = vunpack.c.l.b16 %v85
  %v182 = vunpack.c.l.b16 %v86
  %v183 = vunpack.c.l.b16 %v87
  %v184 = vunpack.c.l.b16 %v88
  %v185 = vunpack.c.l.b16 %v89
  %v186 = vunpack.c.l.b16 %v90
  %v187 = vunpack.c.l.b16 %v91
  %v188 = vunpack.c.l.b16 %v92
  %v189 = vunpack.c.l.b16 %v93
  %v190 = vunpack.c.l.b16 %v94
  %v191 = vunpack.c.l.b16 %v95
  %v192 = vunpack.c.l.b16 %v96
  %v193 = vunpack.c.l.b16 %v97
  %v194 = vunpack.c.l.b16 %v98
  %v195 = vunpack.c.l.b16 %v99
  %v196 = vunpack.c.l.b16 %v100
  %v197 = vunpack.c.l.b16 %v101
  %v198 = vunpack.c.l.b16 %v102
  %v199 = vunpack.c.l.b16 %v103
  %v200 = vpack.c.b16 %v153, %v152
  %v201 = vpack.c.b16 %v155, %v154
  %v202 = vpack.c.b16 %v157, %v156
  %v203 = vpack.c.b16 %v159, %v158
  %v204 = vpack.c.b16 %v161, %v160
  %v205 = vpack.c.b16 %v163, %v162
  %v206 = vpack.c.b16 %v165, %v164
  %v207 = vpack.c.b16 %v167, %v166
  %v208 = vpack.c.b16 %v169, %v168
  %v209 = vpack.c.b16 %v171, %v170
  %v210 = vpack.c.b16 %v173, %v172
  %v211 = vpack.c.b16 %v175, %v174
  %v212 = vpack.c.b16 %v177, %v176
  %v213 = vpack.c.b16 %v179, %v178
  %v214 = vpack.c.b16 %v181, %v180
  %v215 = vpack.c.b16 %v183, %v182
  %v216 = vpack.c.b16 %v185, %v184
  %v217 = vpack.c.b16 %v187, %v186
  %v218 = vpack.c.b16 %v189, %v188
  %v219 = vpack.c.b16 %v191, %v190
  %v220 = vpack.c.b16 %v193, %v192
  %v221 = vpack.c.b16 %v195, %v194
  %v222 = vpack.c.b16 %v197, %v196
  %v223 = vpack.c.b16 %v199, %v198
  %248 = vmatpush.bf16.msra.mxu0 %v207
  %249 = vmatpush.bf16.msra.mxu0 %v206
  %250 = vmatpush.bf16.msra.mxu0 %v205
  %251 = vmatpush.bf16.msra.mxu0 %v204
  %252 = vmatpush.bf16.msra.mxu0 %v203
  %253 = vmatpush.bf16.msra.mxu0 %v202
  %254 = vmatpush.bf16.msra.mxu0 %v201
  %255 = vmatpush.bf16.msra.mxu0 %v200
  %256 = vmatmul.bf16.gmra.mxu0 %v52
  %v257 = vpop.f32.mrf.mxu0
  %v258 = vadd.f32 0.0, %v257
  %v259 = vpop.f32.mrf.mxu0
  %260 = vdwg.mxu0
  %261 = vmatpush.bf16.msra.mxu0 %v215
  %262 = vmatpush.bf16.msra.mxu0 %v214
  %263 = vmatpush.bf16.msra.mxu0 %v213
  %264 = vmatpush.bf16.msra.mxu0 %v212
  %265 = vmatpush.bf16.msra.mxu0 %v211
  %266 = vmatpush.bf16.msra.mxu0 %v210
  %267 = vmatpush.bf16.msra.mxu0 %v209
  %268 = vmatpush.bf16.msra.mxu0 %v208
  %269 = vmatmul.bf16.gmra.mxu0 %v53
  %v270 = vpop.f32.mrf.mxu0
  %v271 = vadd.f32 %v258, %v270
  %v272 = vpop.f32.mrf.mxu0
  %273 = vdwg.mxu0
  %274 = vmatpush.bf16.msra.mxu0 %v223
  %275 = vmatpush.bf16.msra.mxu0 %v222
  %276 = vmatpush.bf16.msra.mxu0 %v221
  %277 = vmatpush.bf16.msra.mxu0 %v220
  %278 = vmatpush.bf16.msra.mxu0 %v219
  %279 = vmatpush.bf16.msra.mxu0 %v218
  %280 = vmatpush.bf16.msra.mxu0 %v217
  %281 = vmatpush.bf16.msra.mxu0 %v216
  %282 = vmatmul.bf16.gmra.mxu0 %v54
  %v283 = vpop.f32.mrf.mxu0
  %v284 = vadd.f32 %v271, %v283
  %v285 = vpop.f32.mrf.mxu0
  %286 = vdwg.mxu0
  %v287 = vadd.f32 %v55, %v284
  %288 = vst [vmem:[#allocation2] sm:$0xff] %v287
  // Predicated region
  $region22: #{densenet_forward.35} parent=0 // pred_check
    %p289 = pneg %p17
  $region23: #{densenet_forward.35} parent=0 // pred_check_branch
    %291 = sbr.rel (%p289) target = $region25
  $region24: #{densenet_forward.35} parent=0 // pred_region
    %v292 = vld [vmem:[#allocation2] sm:$0xff]
    %v293 = vpack.c.bf16 %v292, %v292
    %294 = vst [vmem:[%s4] sm:$0xf] %v293
  $region25: #{densenet_forward.35} parent=0 // pred_fallthru
    _
  // Predicated region
  $region26: #{densenet_forward.35} parent=0 // pred_check
    _
  $region27: #{densenet_forward.35} parent=0 // pred_check_branch
    %296 = sbr.rel (0) target = $region29
  $region28: #{densenet_forward.35} parent=0 // pred_region
    _
  $region29: #{densenet_forward.35} parent=0 // pred_fallthru
    _
  // Predicated region
  $region30: #{densenet_forward.35} parent=0 // pred_check
    _
  $region31: #{densenet_forward.35} parent=0 // pred_check_branch
    %298 = sbr.rel (0) target = $region33
  $region32: #{densenet_forward.35} parent=0 // pred_region
    _
  $region33: #{densenet_forward.35} parent=0 // pred_fallthru
    _

// kernel: densenet_forward.43
$region0: #{densenet_forward.43}
  #allocation0 [shape = 'u32[]', space=smem, size = 0x4, offset = 0x4, fixed_abs, tag = 'smem constant byte address 0x4 - core index']
  #allocation1 [shape = 'u32[72,128]{1,0:T(1,128)}', space=vmem, size = 0x9000, scoped, tag = 'internal scratch']
  %s0 = inlined_call_operand.vmem [shape: bf16[8,128], index: 0, kind: input, shape index: {}]
  %s1 = inlined_call_operand.vmem [shape: f32[1,128], index: 1, kind: input, shape index: {}]
  %s2 = inlined_call_operand.vmem [shape: f32[1,128], index: 2, kind: input, shape index: {}]
  %s3 = inlined_call_operand.vmem [shape: f32[8,128], index: 3, kind: output, shape index: {}]
  %s4 = sld [smem:[#allocation0]]
  $region22: #{densenet_forward.43} parent=0
    _
  %s6 = ssub.s32 1, %s4
  %s7 = scalar_select 0, %s6, %s4
  // Predicated region
  $region2: #{densenet_forward.43} parent=0 // pred_check
    _
  $region3: #{densenet_forward.43} parent=0 // pred_check_branch
    %9 = sbr.rel (0) target = $region5
  $region4: #{densenet_forward.43} parent=0 // pred_region
    _
  $region5: #{densenet_forward.43} parent=0 // pred_fallthru
    _
  // Predicated region
  $region6: #{densenet_forward.43} parent=0 // pred_check
    _
  $region7: #{densenet_forward.43} parent=0 // pred_check_branch
    %11 = sbr.rel (0) target = $region9
  $region8: #{densenet_forward.43} parent=0 // pred_region
    _
  $region9: #{densenet_forward.43} parent=0 // pred_fallthru
    _
  // Predicated region
  $region10: #{densenet_forward.43} parent=0 // pred_check
    _
  $region11: #{densenet_forward.43} parent=0 // pred_check_branch
    %13 = sbr.rel (0) target = $region13
  $region12: #{densenet_forward.43} parent=0 // pred_region
    _
  $region13: #{densenet_forward.43} parent=0 // pred_fallthru
    _
  %v14 = vld [vmem:[%s0] sm:$0xf]
  %v15 = vunpack.c.l.bf16 %v14
  %v16 = vld [vmem:[%s1] sm:$0x1]
  %v18 = vperm.slane %v16, 0
  %v20 = vmul.f32 %v15, %v18
  %v21 = vld [vmem:[%s2] sm:$0x1]
  %v23 = vperm.slane %v21, 0
  %v25 = vadd.f32 %v20, %v23
  %v26 = vmax.f32 %v25, 0.0
  %27 = vst [vmem:[%s3] sm:$0xff] %v26
  // Predicated region
  $region14: #{densenet_forward.43} parent=0 // pred_check
    _
  $region15: #{densenet_forward.43} parent=0 // pred_check_branch
    %29 = sbr.rel (0) target = $region17
  $region16: #{densenet_forward.43} parent=0 // pred_region
    _
  $region17: #{densenet_forward.43} parent=0 // pred_fallthru
    _
  // Predicated region
  $region18: #{densenet_forward.43} parent=0 // pred_check
    _
  $region19: #{densenet_forward.43} parent=0 // pred_check_branch
    %31 = sbr.rel (0) target = $region21
  $region20: #{densenet_forward.43} parent=0 // pred_region
    _
  $region21: #{densenet_forward.43} parent=0 // pred_fallthru
    _

</llo_original>
